<compile_context>
chip_gen: v7x
topology: tpu7x:2x2x1
jax: 0.10.0
libtpu: 0.0.40
codegen_flags: <defaults>
</compile_context>

<pallas_src>
import functools

import jax
import jax.numpy as jnp
from jax.experimental import pallas as pl
from jax.experimental.pallas import tpu as pltpu


# ----------------------------------------------------------------------------
# Static planning (pure Python at trace time)
# ----------------------------------------------------------------------------
def _expand_order(order):
    """Storage ordering for the input rows of a stride-2 layer whose output
    rows are produced in `order`: even rows (in `order` order) first, then
    odd rows.  Makes every kh tap a few contiguous row slices."""
    return [2 * h for h in order] + [2 * h + 1 for h in order]


def _row_runs(idx_list):
    """Split a static storage-row-index list (-1 == zero row) into runs:
    ('zero', 0, length) or ('slice', start, length) with consecutive rows."""
    runs = []
    i, n = 0, len(idx_list)
    while i < n:
        if idx_list[i] < 0:
            j = i
            while j < n and idx_list[j] < 0:
                j += 1
            runs.append(("zero", 0, j - i))
        else:
            j = i + 1
            while j < n and idx_list[j] == idx_list[j - 1] + 1:
                j += 1
            runs.append(("slice", idx_list[i], j - i))
        i = j
    return runs


def _build_plan(cin, cout, nf, H, W):
    """Per-layer static metadata (shapes, row orderings, slice runs)."""
    layer_defs = [
        dict(cin=cin,    cout=nf,     k=4, s=2, p=1, act="relu"),
        dict(cin=nf,     cout=2 * nf, k=4, s=2, p=1, act="relu"),
        dict(cin=2 * nf, cout=4 * nf, k=4, s=2, p=1, act="relu"),
        dict(cin=4 * nf, cout=8 * nf, k=4, s=2, p=1, act="relu"),
        dict(cin=8 * nf, cout=8 * nf, k=4, s=1, p=0, act="relu"),
        dict(cin=8 * nf, cout=cout,   k=1, s=1, p=0, act="tanh"),
    ]
    hs, ws = [H], [W]
    for d in layer_defs:
        hs.append((hs[-1] + 2 * d["p"] - d["k"]) // d["s"] + 1)
        ws.append((ws[-1] + 2 * d["p"] - d["k"]) // d["s"] + 1)

    # H-row storage orderings per activation, derived consumer-first.
    orders = [None] * (len(layer_defs) + 1)
    orders[-1] = list(range(hs[-1]))
    for li in range(len(layer_defs) - 1, -1, -1):
        if layer_defs[li]["s"] == 2:
            orders[li] = _expand_order(orders[li + 1])
        else:
            orders[li] = list(range(hs[li]))

    plan = []
    for li, d in enumerate(layer_defs):
        h_in, h_out = hs[li], hs[li + 1]
        w_in, w_out = ws[li], ws[li + 1]
        pos_in = {row: idx for idx, row in enumerate(orders[li])}
        runs = []
        for kh in range(d["k"]):
            idx = []
            for ho in orders[li + 1]:
                h = d["s"] * ho + kh - d["p"]
                idx.append(pos_in[h] if 0 <= h < h_in else -1)
            runs.append(_row_runs(idx))
        plan.append(dict(k=d["k"], s=d["s"], p=d["p"], act=d["act"],
                         cin=d["cin"], cout=d["cout"],
                         h_in=h_in, w_in=w_in, h_out=h_out, w_out=w_out,
                         win_cin=w_in * d["cin"],
                         wout_cout=w_out * d["cout"],
                         runs=runs))
    return plan, orders


# ----------------------------------------------------------------------------
# Weight folding (wrapper-side glue, done once per jit trace):
#   PyTorch (Cout, Cin, kh, kw)  ->  (kh * W_in * Cin, W_out * Cout) bf16.
# Encodes the kw taps, the W stride and the W zero-padding, so the kernel only
# ever does 2-D matmuls on row-major (H, W*C) activation slabs.
# ----------------------------------------------------------------------------
def _fold_weight(w_pt, s, p, w_in, w_out, dtype=jnp.bfloat16):
    c_out, c_in, k_h, k_w = w_pt.shape
    w = jnp.transpose(w_pt, (2, 3, 1, 0)).astype(jnp.float32)   # (kh, kw, Ci, Co)
    wi = jnp.arange(w_in)[None, :, None]
    wo = jnp.arange(w_out)[None, None, :]
    kw = jnp.arange(k_w)[:, None, None]
    sel = (wi == s * wo + kw - p).astype(jnp.float32)            # (kw, Wi, Wo)
    folded = jnp.einsum("awo,kacd->kwcod", sel, w)               # (kh, Wi, Ci, Wo, Co)
    folded = folded.reshape(k_h * w_in * c_in, w_out * c_out)
    return folded.astype(dtype)


# ----------------------------------------------------------------------------
# Fused encoder kernel: one grid step == one sample, all 6 layers in VMEM.
# ----------------------------------------------------------------------------
def _gather_rows(x, runs, ncols):
    pieces = []
    for kind, start, length in runs:
        if kind == "zero":
            pieces.append(jnp.zeros((length, ncols), dtype=x.dtype))
        else:
            pieces.append(x[start:start + length, :])
    return pieces[0] if len(pieces) == 1 else jnp.concatenate(pieces, axis=0)


def _encoder_kernel(*refs, plan):
    x_ref = refs[0]
    w_refs = refs[1:1 + len(plan)]
    o_ref = refs[1 + len(plan)]

    a = x_ref[0]                                       # (H0, W0*Cin) f32
    for lp, w_ref in zip(plan, w_refs):
        wc = lp["win_cin"]
        acc = None
        for kh in range(lp["k"]):
            # Static contiguous row slices (+ zero rows) of the previous
            # activation; cast to bf16 right before hitting the MXU.
            lhs = _gather_rows(a, lp["runs"][kh], wc).astype(jnp.bfloat16)
            rhs = w_ref[kh * wc:(kh + 1) * wc, :]      # (Wi*Ci, Wo*Co) bf16
            d = jnp.dot(lhs, rhs, preferred_element_type=jnp.float32)
            acc = d if acc is None else acc + d
        a = jnp.maximum(acc, 0.0) if lp["act"] == "relu" else jnp.tanh(acc)

    o_ref[0] = a.astype(o_ref.dtype)                   # (1, cout)


# ----------------------------------------------------------------------------
# Public forward
# ----------------------------------------------------------------------------
def init_encoder_params(key, cin, cout, nf):
    shapes = [
        (nf,     cin,    4, 4),
        (nf * 2, nf,     4, 4),
        (nf * 4, nf * 2, 4, 4),
        (nf * 8, nf * 4, 4, 4),
        (nf * 8, nf * 8, 4, 4),
        (cout,   nf * 8, 1, 1),
    ]
    keys = jax.random.split(key, len(shapes))
    weights = []
    for k, s in zip(keys, shapes):
        fan_in = s[1] * s[2] * s[3]
        weights.append(
            jax.random.normal(k, s, dtype=jnp.float32) / jnp.sqrt(fan_in))
    return weights


@jax.jit
def encoder_forward(x_nchw, weights):
    """x_nchw: (B, cin, 64, 64) float32 -> (B, cout) float32."""
    B, cin, H, W = x_nchw.shape
    assert H == 64 and W == 64, "Encoder expects 64x64 inputs."
    nf = weights[0].shape[0]
    cout = weights[5].shape[0]

    plan, orders = _build_plan(cin, cout, nf, H, W)

    # Input-layout glue only: NCHW -> (B, H, W*C) row-major slabs, with rows
    # pre-permuted into the phase-major order the layer-1 row gathers expect.
    x = jnp.transpose(x_nchw, (0, 2, 3, 1)).reshape(B, H, W * cin)
    x = x[:, jnp.asarray(orders[0], dtype=jnp.int32), :].astype(jnp.float32)

    folded = [
        _fold_weight(w, lp["s"], lp["p"], lp["w_in"], lp["w_out"])
        for w, lp in zip(weights, plan)
    ]

    in_specs = [pl.BlockSpec((1, H, W * cin), lambda b: (b, 0, 0))]
    for fw in folded:
        in_specs.append(pl.BlockSpec(fw.shape, lambda b: (0, 0)))

    kernel = functools.partial(_encoder_kernel, plan=plan)
    out = pl.pallas_call(
        kernel,
        out_shape=jax.ShapeDtypeStruct((B, 1, cout), jnp.float32),
        grid_spec=pltpu.PrefetchScalarGridSpec(
            num_scalar_prefetch=0,
            grid=(B,),
            in_specs=in_specs,
            out_specs=pl.BlockSpec((1, 1, cout), lambda b: (b, 0, 0)),
        ),
        compiler_params=pltpu.CompilerParams(
            dimension_semantics=("parallel",)),
    )(x, *folded)
    return out.reshape(B, cout)


# ----------------------------------------------------------------------------
# Plain XLA reference (for the correctness cross-check in __main__)
# ----------------------------------------------------------------------------
def encoder_reference(x_nchw, weights):
    specs = [(2, 1), (2, 1), (2, 1), (2, 1), (1, 0), (1, 0)]
    x = x_nchw
    for i, (w, (s, p)) in enumerate(zip(weights, specs)):
        x = jax.lax.conv_general_dilated(
            x, w, window_strides=(s, s), padding=[(p, p), (p, p)],
            dimension_numbers=("NCHW", "OIHW", "NCHW"))
        x = jnp.maximum(x, 0.0) if i < 5 else jnp.tanh(x)
    return x.reshape(x.shape[0], -1)


if __name__ == "__main__":
    # Small, architecture-consistent shapes: batch=2, cin=3, cout=16, nf=8,
    # spatial=64 (required by the 4x4 valid conv after four stride-2 convs).
    B, cin, cout, nf, H = 2, 3, 16, 8, 64

    key = jax.random.PRNGKey(0)
    k_x, k_w = jax.random.split(key)
    x = jax.random.normal(k_x, (B, cin, H, H), dtype=jnp.float32)
    weights = init_encoder_params(k_w, cin, cout, nf)

    out = encoder_forward(x, weights)
    out = jax.block_until_ready(out)

    assert out.shape == (B, cout), out.shape
    assert out.dtype == jnp.float32
    assert bool(jnp.all(jnp.isfinite(out)))
    assert bool(jnp.all(jnp.abs(out) <= 1.0))  # tanh output range

    # Cross-check against a plain XLA conv reference (bf16 MXU inputs in the
    # kernel -> loose tolerance on the tanh-squashed outputs).
    ref = jax.block_until_ready(encoder_reference(x, weights))
    max_err = float(jnp.max(jnp.abs(out - ref)))
    assert max_err < 0.1, max_err

    print("KERNEL_OK")
</pallas_src>

<mosaic_0001>
module attributes {stable_mosaic.version = 11 : i64} {
  func.func @_encoder_kernel(%arg0: i32, %arg1: memref<1x64x192xf32, #tpu.memory_space<vmem>>, %arg2: memref<768x256xbf16, #tpu.memory_space<vmem>>, %arg3: memref<1024x256xbf16, #tpu.memory_space<vmem>>, %arg4: memref<1024x256xbf16, #tpu.memory_space<vmem>>, %arg5: memref<1024x256xbf16, #tpu.memory_space<vmem>>, %arg6: memref<1024x64xbf16, #tpu.memory_space<vmem>>, %arg7: memref<64x16xbf16, #tpu.memory_space<vmem>>, %arg8: memref<1x1x16xf32, #tpu.memory_space<vmem>>) attributes {dimension_semantics = [#tpu.dimension_semantics<parallel>], iteration_bounds = array<i64: 2>, scalar_prefetch = 0 : i64, scratch_operands = 0 : i64, tpu.core_type = #tpu.core_type<tc>, window_params = [{transform_indices = @transform_0, window_bounds = array<i64: 1, 64, 192>}, {pipeline_mode = #tpu.pipeline_mode<synchronous>, transform_indices = @transform_1, window_bounds = array<i64: 768, 256>}, {pipeline_mode = #tpu.pipeline_mode<synchronous>, transform_indices = @transform_2, window_bounds = array<i64: 1024, 256>}, {pipeline_mode = #tpu.pipeline_mode<synchronous>, transform_indices = @transform_3, window_bounds = array<i64: 1024, 256>}, {pipeline_mode = #tpu.pipeline_mode<synchronous>, transform_indices = @transform_4, window_bounds = array<i64: 1024, 256>}, {pipeline_mode = #tpu.pipeline_mode<synchronous>, transform_indices = @transform_5, window_bounds = array<i64: 1024, 64>}, {pipeline_mode = #tpu.pipeline_mode<synchronous>, transform_indices = @transform_6, window_bounds = array<i64: 64, 16>}, {transform_indices = @transform_7, window_bounds = array<i64: 1, 1, 16>}]} {
    %c0 = arith.constant 0 : index
    %c0_0 = arith.constant 0 : index
    %c0_1 = arith.constant 0 : index
    %0 = vector.load %arg1[%c0, %c0_0, %c0_1] : memref<1x64x192xf32, #tpu.memory_space<vmem>>, vector<1x64x192xf32>
    %1 = vector.shape_cast %0 : vector<1x64x192xf32> to vector<64x192xf32>
    %cst = arith.constant 0.000000e+00 : f32
    %2 = vector.broadcast %cst : f32 to vector<1x192xf32>
    %3 = vector.extract_strided_slice %1 {offsets = [60, 0], sizes = [3, 192], strides = [1, 1]} : vector<64x192xf32> to vector<3x192xf32>
    %4 = vector.extract_strided_slice %1 {offsets = [56, 0], sizes = [4, 192], strides = [1, 1]} : vector<64x192xf32> to vector<4x192xf32>
    %5 = vector.extract_strided_slice %1 {offsets = [48, 0], sizes = [8, 192], strides = [1, 1]} : vector<64x192xf32> to vector<8x192xf32>
    %6 = vector.extract_strided_slice %1 {offsets = [32, 0], sizes = [16, 192], strides = [1, 1]} : vector<64x192xf32> to vector<16x192xf32>
    %7 = tpu.concatenate %2, %3, %4, %5, %6 in 0 : vector<1x192xf32>, vector<3x192xf32>, vector<4x192xf32>, vector<8x192xf32>, vector<16x192xf32> -> vector<32x192xf32>
    %8 = arith.truncf %7 : vector<32x192xf32> to vector<32x192xbf16>
    %c0_2 = arith.constant 0 : index
    %c0_3 = arith.constant 0 : index
    %9 = vector.load %arg2[%c0_2, %c0_3] : memref<768x256xbf16, #tpu.memory_space<vmem>>, vector<192x256xbf16>
    %cst_4 = arith.constant dense<0.000000e+00> : vector<32x256xf32>
    %10 = tpu.matmul %8, %9, %cst_4 {dimension_numbers = #tpu.dot_dimension_numbers<[1], [0], [0], [1], [0, 0, 1, 1], [], []>} : vector<32x192xbf16>, vector<192x256xbf16>, vector<32x256xf32> -> vector<32x256xf32>
    %11 = vector.extract_strided_slice %1 {offsets = [0, 0], sizes = [32, 192], strides = [1, 1]} : vector<64x192xf32> to vector<32x192xf32>
    %12 = arith.truncf %11 : vector<32x192xf32> to vector<32x192xbf16>
    %c192 = arith.constant 192 : index
    %c0_5 = arith.constant 0 : index
    %13 = vector.load %arg2[%c192, %c0_5] : memref<768x256xbf16, #tpu.memory_space<vmem>>, vector<192x256xbf16>
    %cst_6 = arith.constant dense<0.000000e+00> : vector<32x256xf32>
    %14 = tpu.matmul %12, %13, %cst_6 {dimension_numbers = #tpu.dot_dimension_numbers<[1], [0], [0], [1], [0, 0, 1, 1], [], []>} : vector<32x192xbf16>, vector<192x256xbf16>, vector<32x256xf32> -> vector<32x256xf32>
    %15 = arith.addf %10, %14 : vector<32x256xf32>
    %16 = vector.extract_strided_slice %1 {offsets = [32, 0], sizes = [32, 192], strides = [1, 1]} : vector<64x192xf32> to vector<32x192xf32>
    %17 = arith.truncf %16 : vector<32x192xf32> to vector<32x192xbf16>
    %c384 = arith.constant 384 : index
    %c0_7 = arith.constant 0 : index
    %18 = vector.load %arg2[%c384, %c0_7] : memref<768x256xbf16, #tpu.memory_space<vmem>>, vector<192x256xbf16>
    %cst_8 = arith.constant dense<0.000000e+00> : vector<32x256xf32>
    %19 = tpu.matmul %17, %18, %cst_8 {dimension_numbers = #tpu.dot_dimension_numbers<[1], [0], [0], [1], [0, 0, 1, 1], [], []>} : vector<32x192xbf16>, vector<192x256xbf16>, vector<32x256xf32> -> vector<32x256xf32>
    %20 = arith.addf %15, %19 : vector<32x256xf32>
    %21 = vector.extract_strided_slice %1 {offsets = [16, 0], sizes = [16, 192], strides = [1, 1]} : vector<64x192xf32> to vector<16x192xf32>
    %22 = vector.extract_strided_slice %1 {offsets = [8, 0], sizes = [8, 192], strides = [1, 1]} : vector<64x192xf32> to vector<8x192xf32>
    %23 = vector.extract_strided_slice %1 {offsets = [4, 0], sizes = [4, 192], strides = [1, 1]} : vector<64x192xf32> to vector<4x192xf32>
    %24 = vector.extract_strided_slice %1 {offsets = [1, 0], sizes = [3, 192], strides = [1, 1]} : vector<64x192xf32> to vector<3x192xf32>
    %cst_9 = arith.constant 0.000000e+00 : f32
    %25 = vector.broadcast %cst_9 : f32 to vector<1x192xf32>
    %26 = tpu.concatenate %21, %22, %23, %24, %25 in 0 : vector<16x192xf32>, vector<8x192xf32>, vector<4x192xf32>, vector<3x192xf32>, vector<1x192xf32> -> vector<32x192xf32>
    %27 = arith.truncf %26 : vector<32x192xf32> to vector<32x192xbf16>
    %c576 = arith.constant 576 : index
    %c0_10 = arith.constant 0 : index
    %28 = vector.load %arg2[%c576, %c0_10] : memref<768x256xbf16, #tpu.memory_space<vmem>>, vector<192x256xbf16>
    %cst_11 = arith.constant dense<0.000000e+00> : vector<32x256xf32>
    %29 = tpu.matmul %27, %28, %cst_11 {dimension_numbers = #tpu.dot_dimension_numbers<[1], [0], [0], [1], [0, 0, 1, 1], [], []>} : vector<32x192xbf16>, vector<192x256xbf16>, vector<32x256xf32> -> vector<32x256xf32>
    %30 = arith.addf %20, %29 : vector<32x256xf32>
    %cst_12 = arith.constant 0.000000e+00 : f32
    %31 = vector.broadcast %cst_12 : f32 to vector<32x256xf32>
    %32 = arith.maximumf %30, %31 : vector<32x256xf32>
    %cst_13 = arith.constant 0.000000e+00 : f32
    %33 = vector.broadcast %cst_13 : f32 to vector<1x256xf32>
    %34 = vector.extract_strided_slice %32 {offsets = [28, 0], sizes = [3, 256], strides = [1, 1]} : vector<32x256xf32> to vector<3x256xf32>
    %35 = vector.extract_strided_slice %32 {offsets = [24, 0], sizes = [4, 256], strides = [1, 1]} : vector<32x256xf32> to vector<4x256xf32>
    %36 = vector.extract_strided_slice %32 {offsets = [16, 0], sizes = [8, 256], strides = [1, 1]} : vector<32x256xf32> to vector<8x256xf32>
    %37 = tpu.concatenate %33, %34, %35, %36 in 0 : vector<1x256xf32>, vector<3x256xf32>, vector<4x256xf32>, vector<8x256xf32> -> vector<16x256xf32>
    %38 = arith.truncf %37 : vector<16x256xf32> to vector<16x256xbf16>
    %c0_14 = arith.constant 0 : index
    %c0_15 = arith.constant 0 : index
    %39 = vector.load %arg3[%c0_14, %c0_15] : memref<1024x256xbf16, #tpu.memory_space<vmem>>, vector<256x256xbf16>
    %cst_16 = arith.constant dense<0.000000e+00> : vector<16x256xf32>
    %40 = tpu.matmul %38, %39, %cst_16 {dimension_numbers = #tpu.dot_dimension_numbers<[1], [0], [0], [1], [0, 0, 1, 1], [], []>} : vector<16x256xbf16>, vector<256x256xbf16>, vector<16x256xf32> -> vector<16x256xf32>
    %41 = vector.extract_strided_slice %32 {offsets = [0, 0], sizes = [16, 256], strides = [1, 1]} : vector<32x256xf32> to vector<16x256xf32>
    %42 = arith.truncf %41 : vector<16x256xf32> to vector<16x256xbf16>
    %c256 = arith.constant 256 : index
    %c0_17 = arith.constant 0 : index
    %43 = vector.load %arg3[%c256, %c0_17] : memref<1024x256xbf16, #tpu.memory_space<vmem>>, vector<256x256xbf16>
    %cst_18 = arith.constant dense<0.000000e+00> : vector<16x256xf32>
    %44 = tpu.matmul %42, %43, %cst_18 {dimension_numbers = #tpu.dot_dimension_numbers<[1], [0], [0], [1], [0, 0, 1, 1], [], []>} : vector<16x256xbf16>, vector<256x256xbf16>, vector<16x256xf32> -> vector<16x256xf32>
    %45 = arith.addf %40, %44 : vector<16x256xf32>
    %46 = vector.extract_strided_slice %32 {offsets = [16, 0], sizes = [16, 256], strides = [1, 1]} : vector<32x256xf32> to vector<16x256xf32>
    %47 = arith.truncf %46 : vector<16x256xf32> to vector<16x256xbf16>
    %c512 = arith.constant 512 : index
    %c0_19 = arith.constant 0 : index
    %48 = vector.load %arg3[%c512, %c0_19] : memref<1024x256xbf16, #tpu.memory_space<vmem>>, vector<256x256xbf16>
    %cst_20 = arith.constant dense<0.000000e+00> : vector<16x256xf32>
    %49 = tpu.matmul %47, %48, %cst_20 {dimension_numbers = #tpu.dot_dimension_numbers<[1], [0], [0], [1], [0, 0, 1, 1], [], []>} : vector<16x256xbf16>, vector<256x256xbf16>, vector<16x256xf32> -> vector<16x256xf32>
    %50 = arith.addf %45, %49 : vector<16x256xf32>
    %51 = vector.extract_strided_slice %32 {offsets = [8, 0], sizes = [8, 256], strides = [1, 1]} : vector<32x256xf32> to vector<8x256xf32>
    %52 = vector.extract_strided_slice %32 {offsets = [4, 0], sizes = [4, 256], strides = [1, 1]} : vector<32x256xf32> to vector<4x256xf32>
    %53 = vector.extract_strided_slice %32 {offsets = [1, 0], sizes = [3, 256], strides = [1, 1]} : vector<32x256xf32> to vector<3x256xf32>
    %cst_21 = arith.constant 0.000000e+00 : f32
    %54 = vector.broadcast %cst_21 : f32 to vector<1x256xf32>
    %55 = tpu.concatenate %51, %52, %53, %54 in 0 : vector<8x256xf32>, vector<4x256xf32>, vector<3x256xf32>, vector<1x256xf32> -> vector<16x256xf32>
    %56 = arith.truncf %55 : vector<16x256xf32> to vector<16x256xbf16>
    %c768 = arith.constant 768 : index
    %c0_22 = arith.constant 0 : index
    %57 = vector.load %arg3[%c768, %c0_22] : memref<1024x256xbf16, #tpu.memory_space<vmem>>, vector<256x256xbf16>
    %cst_23 = arith.constant dense<0.000000e+00> : vector<16x256xf32>
    %58 = tpu.matmul %56, %57, %cst_23 {dimension_numbers = #tpu.dot_dimension_numbers<[1], [0], [0], [1], [0, 0, 1, 1], [], []>} : vector<16x256xbf16>, vector<256x256xbf16>, vector<16x256xf32> -> vector<16x256xf32>
    %59 = arith.addf %50, %58 : vector<16x256xf32>
    %cst_24 = arith.constant 0.000000e+00 : f32
    %60 = vector.broadcast %cst_24 : f32 to vector<16x256xf32>
    %61 = arith.maximumf %59, %60 : vector<16x256xf32>
    %cst_25 = arith.constant 0.000000e+00 : f32
    %62 = vector.broadcast %cst_25 : f32 to vector<1x256xf32>
    %63 = vector.extract_strided_slice %61 {offsets = [12, 0], sizes = [3, 256], strides = [1, 1]} : vector<16x256xf32> to vector<3x256xf32>
    %64 = vector.extract_strided_slice %61 {offsets = [8, 0], sizes = [4, 256], strides = [1, 1]} : vector<16x256xf32> to vector<4x256xf32>
    %65 = tpu.concatenate %62, %63, %64 in 0 : vector<1x256xf32>, vector<3x256xf32>, vector<4x256xf32> -> vector<8x256xf32>
    %66 = arith.truncf %65 : vector<8x256xf32> to vector<8x256xbf16>
    %c0_26 = arith.constant 0 : index
    %c0_27 = arith.constant 0 : index
    %67 = vector.load %arg4[%c0_26, %c0_27] : memref<1024x256xbf16, #tpu.memory_space<vmem>>, vector<256x256xbf16>
    %cst_28 = arith.constant dense<0.000000e+00> : vector<8x256xf32>
    %68 = tpu.matmul %66, %67, %cst_28 {dimension_numbers = #tpu.dot_dimension_numbers<[1], [0], [0], [1], [0, 0, 1, 1], [], []>} : vector<8x256xbf16>, vector<256x256xbf16>, vector<8x256xf32> -> vector<8x256xf32>
    %69 = vector.extract_strided_slice %61 {offsets = [0, 0], sizes = [8, 256], strides = [1, 1]} : vector<16x256xf32> to vector<8x256xf32>
    %70 = arith.truncf %69 : vector<8x256xf32> to vector<8x256xbf16>
    %c256_29 = arith.constant 256 : index
    %c0_30 = arith.constant 0 : index
    %71 = vector.load %arg4[%c256_29, %c0_30] : memref<1024x256xbf16, #tpu.memory_space<vmem>>, vector<256x256xbf16>
    %cst_31 = arith.constant dense<0.000000e+00> : vector<8x256xf32>
    %72 = tpu.matmul %70, %71, %cst_31 {dimension_numbers = #tpu.dot_dimension_numbers<[1], [0], [0], [1], [0, 0, 1, 1], [], []>} : vector<8x256xbf16>, vector<256x256xbf16>, vector<8x256xf32> -> vector<8x256xf32>
    %73 = arith.addf %68, %72 : vector<8x256xf32>
    %74 = vector.extract_strided_slice %61 {offsets = [8, 0], sizes = [8, 256], strides = [1, 1]} : vector<16x256xf32> to vector<8x256xf32>
    %75 = arith.truncf %74 : vector<8x256xf32> to vector<8x256xbf16>
    %c512_32 = arith.constant 512 : index
    %c0_33 = arith.constant 0 : index
    %76 = vector.load %arg4[%c512_32, %c0_33] : memref<1024x256xbf16, #tpu.memory_space<vmem>>, vector<256x256xbf16>
    %cst_34 = arith.constant dense<0.000000e+00> : vector<8x256xf32>
    %77 = tpu.matmul %75, %76, %cst_34 {dimension_numbers = #tpu.dot_dimension_numbers<[1], [0], [0], [1], [0, 0, 1, 1], [], []>} : vector<8x256xbf16>, vector<256x256xbf16>, vector<8x256xf32> -> vector<8x256xf32>
    %78 = arith.addf %73, %77 : vector<8x256xf32>
    %79 = vector.extract_strided_slice %61 {offsets = [4, 0], sizes = [4, 256], strides = [1, 1]} : vector<16x256xf32> to vector<4x256xf32>
    %80 = vector.extract_strided_slice %61 {offsets = [1, 0], sizes = [3, 256], strides = [1, 1]} : vector<16x256xf32> to vector<3x256xf32>
    %cst_35 = arith.constant 0.000000e+00 : f32
    %81 = vector.broadcast %cst_35 : f32 to vector<1x256xf32>
    %82 = tpu.concatenate %79, %80, %81 in 0 : vector<4x256xf32>, vector<3x256xf32>, vector<1x256xf32> -> vector<8x256xf32>
    %83 = arith.truncf %82 : vector<8x256xf32> to vector<8x256xbf16>
    %c768_36 = arith.constant 768 : index
    %c0_37 = arith.constant 0 : index
    %84 = vector.load %arg4[%c768_36, %c0_37] : memref<1024x256xbf16, #tpu.memory_space<vmem>>, vector<256x256xbf16>
    %cst_38 = arith.constant dense<0.000000e+00> : vector<8x256xf32>
    %85 = tpu.matmul %83, %84, %cst_38 {dimension_numbers = #tpu.dot_dimension_numbers<[1], [0], [0], [1], [0, 0, 1, 1], [], []>} : vector<8x256xbf16>, vector<256x256xbf16>, vector<8x256xf32> -> vector<8x256xf32>
    %86 = arith.addf %78, %85 : vector<8x256xf32>
    %cst_39 = arith.constant 0.000000e+00 : f32
    %87 = vector.broadcast %cst_39 : f32 to vector<8x256xf32>
    %88 = arith.maximumf %86, %87 : vector<8x256xf32>
    %cst_40 = arith.constant 0.000000e+00 : f32
    %89 = vector.broadcast %cst_40 : f32 to vector<1x256xf32>
    %90 = vector.extract_strided_slice %88 {offsets = [4, 0], sizes = [3, 256], strides = [1, 1]} : vector<8x256xf32> to vector<3x256xf32>
    %91 = tpu.concatenate %89, %90 in 0 : vector<1x256xf32>, vector<3x256xf32> -> vector<4x256xf32>
    %92 = arith.truncf %91 : vector<4x256xf32> to vector<4x256xbf16>
    %c0_41 = arith.constant 0 : index
    %c0_42 = arith.constant 0 : index
    %93 = vector.load %arg5[%c0_41, %c0_42] : memref<1024x256xbf16, #tpu.memory_space<vmem>>, vector<256x256xbf16>
    %cst_43 = arith.constant dense<0.000000e+00> : vector<4x256xf32>
    %94 = tpu.matmul %92, %93, %cst_43 {dimension_numbers = #tpu.dot_dimension_numbers<[1], [0], [0], [1], [0, 0, 1, 1], [], []>} : vector<4x256xbf16>, vector<256x256xbf16>, vector<4x256xf32> -> vector<4x256xf32>
    %95 = vector.extract_strided_slice %88 {offsets = [0, 0], sizes = [4, 256], strides = [1, 1]} : vector<8x256xf32> to vector<4x256xf32>
    %96 = arith.truncf %95 : vector<4x256xf32> to vector<4x256xbf16>
    %c256_44 = arith.constant 256 : index
    %c0_45 = arith.constant 0 : index
    %97 = vector.load %arg5[%c256_44, %c0_45] : memref<1024x256xbf16, #tpu.memory_space<vmem>>, vector<256x256xbf16>
    %cst_46 = arith.constant dense<0.000000e+00> : vector<4x256xf32>
    %98 = tpu.matmul %96, %97, %cst_46 {dimension_numbers = #tpu.dot_dimension_numbers<[1], [0], [0], [1], [0, 0, 1, 1], [], []>} : vector<4x256xbf16>, vector<256x256xbf16>, vector<4x256xf32> -> vector<4x256xf32>
    %99 = arith.addf %94, %98 : vector<4x256xf32>
    %100 = vector.extract_strided_slice %88 {offsets = [4, 0], sizes = [4, 256], strides = [1, 1]} : vector<8x256xf32> to vector<4x256xf32>
    %101 = arith.truncf %100 : vector<4x256xf32> to vector<4x256xbf16>
    %c512_47 = arith.constant 512 : index
    %c0_48 = arith.constant 0 : index
    %102 = vector.load %arg5[%c512_47, %c0_48] : memref<1024x256xbf16, #tpu.memory_space<vmem>>, vector<256x256xbf16>
    %cst_49 = arith.constant dense<0.000000e+00> : vector<4x256xf32>
    %103 = tpu.matmul %101, %102, %cst_49 {dimension_numbers = #tpu.dot_dimension_numbers<[1], [0], [0], [1], [0, 0, 1, 1], [], []>} : vector<4x256xbf16>, vector<256x256xbf16>, vector<4x256xf32> -> vector<4x256xf32>
    %104 = arith.addf %99, %103 : vector<4x256xf32>
    %105 = vector.extract_strided_slice %88 {offsets = [1, 0], sizes = [3, 256], strides = [1, 1]} : vector<8x256xf32> to vector<3x256xf32>
    %cst_50 = arith.constant 0.000000e+00 : f32
    %106 = vector.broadcast %cst_50 : f32 to vector<1x256xf32>
    %107 = tpu.concatenate %105, %106 in 0 : vector<3x256xf32>, vector<1x256xf32> -> vector<4x256xf32>
    %108 = arith.truncf %107 : vector<4x256xf32> to vector<4x256xbf16>
    %c768_51 = arith.constant 768 : index
    %c0_52 = arith.constant 0 : index
    %109 = vector.load %arg5[%c768_51, %c0_52] : memref<1024x256xbf16, #tpu.memory_space<vmem>>, vector<256x256xbf16>
    %cst_53 = arith.constant dense<0.000000e+00> : vector<4x256xf32>
    %110 = tpu.matmul %108, %109, %cst_53 {dimension_numbers = #tpu.dot_dimension_numbers<[1], [0], [0], [1], [0, 0, 1, 1], [], []>} : vector<4x256xbf16>, vector<256x256xbf16>, vector<4x256xf32> -> vector<4x256xf32>
    %111 = arith.addf %104, %110 : vector<4x256xf32>
    %cst_54 = arith.constant 0.000000e+00 : f32
    %112 = vector.broadcast %cst_54 : f32 to vector<4x256xf32>
    %113 = arith.maximumf %111, %112 : vector<4x256xf32>
    %114 = vector.extract_strided_slice %113 {offsets = [0, 0], sizes = [1, 256], strides = [1, 1]} : vector<4x256xf32> to vector<1x256xf32>
    %115 = arith.truncf %114 : vector<1x256xf32> to vector<1x256xbf16>
    %c0_55 = arith.constant 0 : index
    %c0_56 = arith.constant 0 : index
    %116 = vector.load %arg6[%c0_55, %c0_56] : memref<1024x64xbf16, #tpu.memory_space<vmem>>, vector<256x64xbf16>
    %cst_57 = arith.constant dense<0.000000e+00> : vector<1x64xf32>
    %117 = tpu.matmul %115, %116, %cst_57 {dimension_numbers = #tpu.dot_dimension_numbers<[1], [0], [0], [1], [0, 0, 1, 1], [], []>} : vector<1x256xbf16>, vector<256x64xbf16>, vector<1x64xf32> -> vector<1x64xf32>
    %118 = vector.extract_strided_slice %113 {offsets = [1, 0], sizes = [1, 256], strides = [1, 1]} : vector<4x256xf32> to vector<1x256xf32>
    %119 = arith.truncf %118 : vector<1x256xf32> to vector<1x256xbf16>
    %c256_58 = arith.constant 256 : index
    %c0_59 = arith.constant 0 : index
    %120 = vector.load %arg6[%c256_58, %c0_59] : memref<1024x64xbf16, #tpu.memory_space<vmem>>, vector<256x64xbf16>
    %cst_60 = arith.constant dense<0.000000e+00> : vector<1x64xf32>
    %121 = tpu.matmul %119, %120, %cst_60 {dimension_numbers = #tpu.dot_dimension_numbers<[1], [0], [0], [1], [0, 0, 1, 1], [], []>} : vector<1x256xbf16>, vector<256x64xbf16>, vector<1x64xf32> -> vector<1x64xf32>
    %122 = arith.addf %117, %121 : vector<1x64xf32>
    %123 = vector.extract_strided_slice %113 {offsets = [2, 0], sizes = [1, 256], strides = [1, 1]} : vector<4x256xf32> to vector<1x256xf32>
    %124 = arith.truncf %123 : vector<1x256xf32> to vector<1x256xbf16>
    %c512_61 = arith.constant 512 : index
    %c0_62 = arith.constant 0 : index
    %125 = vector.load %arg6[%c512_61, %c0_62] : memref<1024x64xbf16, #tpu.memory_space<vmem>>, vector<256x64xbf16>
    %cst_63 = arith.constant dense<0.000000e+00> : vector<1x64xf32>
    %126 = tpu.matmul %124, %125, %cst_63 {dimension_numbers = #tpu.dot_dimension_numbers<[1], [0], [0], [1], [0, 0, 1, 1], [], []>} : vector<1x256xbf16>, vector<256x64xbf16>, vector<1x64xf32> -> vector<1x64xf32>
    %127 = arith.addf %122, %126 : vector<1x64xf32>
    %128 = vector.extract_strided_slice %113 {offsets = [3, 0], sizes = [1, 256], strides = [1, 1]} : vector<4x256xf32> to vector<1x256xf32>
    %129 = arith.truncf %128 : vector<1x256xf32> to vector<1x256xbf16>
    %c768_64 = arith.constant 768 : index
    %c0_65 = arith.constant 0 : index
    %130 = vector.load %arg6[%c768_64, %c0_65] : memref<1024x64xbf16, #tpu.memory_space<vmem>>, vector<256x64xbf16>
    %cst_66 = arith.constant dense<0.000000e+00> : vector<1x64xf32>
    %131 = tpu.matmul %129, %130, %cst_66 {dimension_numbers = #tpu.dot_dimension_numbers<[1], [0], [0], [1], [0, 0, 1, 1], [], []>} : vector<1x256xbf16>, vector<256x64xbf16>, vector<1x64xf32> -> vector<1x64xf32>
    %132 = arith.addf %127, %131 : vector<1x64xf32>
    %cst_67 = arith.constant 0.000000e+00 : f32
    %133 = vector.broadcast %cst_67 : f32 to vector<1x64xf32>
    %134 = arith.maximumf %132, %133 : vector<1x64xf32>
    %135 = arith.truncf %134 : vector<1x64xf32> to vector<1x64xbf16>
    %c0_68 = arith.constant 0 : index
    %c0_69 = arith.constant 0 : index
    %136 = vector.load %arg7[%c0_68, %c0_69] : memref<64x16xbf16, #tpu.memory_space<vmem>>, vector<64x16xbf16>
    %cst_70 = arith.constant dense<0.000000e+00> : vector<1x16xf32>
    %137 = tpu.matmul %135, %136, %cst_70 {dimension_numbers = #tpu.dot_dimension_numbers<[1], [0], [0], [1], [0, 0, 1, 1], [], []>} : vector<1x64xbf16>, vector<64x16xbf16>, vector<1x16xf32> -> vector<1x16xf32>
    %138 = math.tanh %137 : vector<1x16xf32>
    %c0_71 = arith.constant 0 : index
    %c0_72 = arith.constant 0 : index
    %c0_73 = arith.constant 0 : index
    %139 = vector.load %arg8[%c0_71, %c0_72, %c0_73] : memref<1x1x16xf32, #tpu.memory_space<vmem>>, vector<1x1x16xf32>
    %140 = vector.shape_cast %139 : vector<1x1x16xf32> to vector<1x16xf32>
    %141 = vector.shape_cast %138 : vector<1x16xf32> to vector<1x1x16xf32>
    tpu.vector_store %arg8[%c0_71, %c0_72, %c0_73], %141 {strides = array<i32>} : memref<1x1x16xf32, #tpu.memory_space<vmem>>, vector<1x1x16xf32>,
    return
  }
  func.func @transform_0(%arg0: i32) -> (i32, i32, i32) {
    %c0_i32 = arith.constant 0 : i32
    %c0_i32_0 = arith.constant 0 : i32
    %c0_i32_1 = arith.constant 0 : i32
    return %arg0, %c0_i32, %c0_i32_0 : i32, i32, i32
  }
  func.func @transform_1(%arg0: i32) -> (i32, i32) {
    %c0_i32 = arith.constant 0 : i32
    %c0_i32_0 = arith.constant 0 : i32
    %c0_i32_1 = arith.constant 0 : i32
    return %c0_i32, %c0_i32_0 : i32, i32
  }
  func.func @transform_2(%arg0: i32) -> (i32, i32) {
    %c0_i32 = arith.constant 0 : i32
    %c0_i32_0 = arith.constant 0 : i32
    %c0_i32_1 = arith.constant 0 : i32
    return %c0_i32, %c0_i32_0 : i32, i32
  }
  func.func @transform_3(%arg0: i32) -> (i32, i32) {
    %c0_i32 = arith.constant 0 : i32
    %c0_i32_0 = arith.constant 0 : i32
    %c0_i32_1 = arith.constant 0 : i32
    return %c0_i32, %c0_i32_0 : i32, i32
  }
  func.func @transform_4(%arg0: i32) -> (i32, i32) {
    %c0_i32 = arith.constant 0 : i32
    %c0_i32_0 = arith.constant 0 : i32
    %c0_i32_1 = arith.constant 0 : i32
    return %c0_i32, %c0_i32_0 : i32, i32
  }
  func.func @transform_5(%arg0: i32) -> (i32, i32) {
    %c0_i32 = arith.constant 0 : i32
    %c0_i32_0 = arith.constant 0 : i32
    %c0_i32_1 = arith.constant 0 : i32
    return %c0_i32, %c0_i32_0 : i32, i32
  }
  func.func @transform_6(%arg0: i32) -> (i32, i32) {
    %c0_i32 = arith.constant 0 : i32
    %c0_i32_0 = arith.constant 0 : i32
    %c0_i32_1 = arith.constant 0 : i32
    return %c0_i32, %c0_i32_0 : i32, i32
  }
  func.func @transform_7(%arg0: i32) -> (i32, i32, i32) {
    %c0_i32 = arith.constant 0 : i32
    %c0_i32_0 = arith.constant 0 : i32
    %c0_i32_1 = arith.constant 0 : i32
    return %arg0, %c0_i32, %c0_i32_0 : i32, i32, i32
  }
}

</mosaic_0001>

<llo_original>
// kernel: encoder_forward.1
$region0: #{encoder_forward.1}
  #allocation0 [shape = 'u32[]', space=smem, size = 0x4, offset = 0x4, fixed_abs, tag = 'smem constant byte address 0x4 - core index']
  #allocation1 [shape = 'u32[144,128]{1,0:T(1,128)}', space=vmem, size = 0x12000, scoped, tag = 'internal scratch']
  %s0 = inlined_call_operand.vmem [shape: f32[2,64,192], index: 0, kind: input, shape index: {}]
  %s1 = inlined_call_operand.vmem [shape: bf16[768,256], index: 1, kind: input, shape index: {}]
  %s2 = inlined_call_operand.vmem [shape: bf16[1024,256], index: 2, kind: input, shape index: {}]
  %s3 = inlined_call_operand.vmem [shape: bf16[1024,256], index: 3, kind: input, shape index: {}]
  %s4 = inlined_call_operand.vmem [shape: bf16[1024,256], index: 4, kind: input, shape index: {}]
  %s5 = inlined_call_operand.vmem [shape: bf16[1024,64], index: 5, kind: input, shape index: {}]
  %s6 = inlined_call_operand.vmem [shape: bf16[64,16], index: 6, kind: input, shape index: {}]
  %s7 = inlined_call_operand.hbm [shape: f32[2,1,16], index: 7, kind: output, shape index: {}]
  %s8 = sld [smem:[#allocation0]]
  $region61: #{encoder_forward.1} parent=0
    _
  %s10 = ssub.s32 1, %s8
  %s11 = scalar_select 0, %s10, %s8
  $region1: #{encoder_forward.1} parent=0
    #allocation2 [shape = 'u8[1024]{0}', space=vmem, size = 0x400, scoped, tag = 'output window, operand 0']
    #allocation3 [shape = 's32[2]{0}', space=sflag, size = 0x8, scoped, tag = 'scoped memory for encoder_forward.1']
    %12 = vsyncpa [#allocation3], 0
    %s13 = scalar_lea.sflag [#allocation3], 1
    %14 = vsyncpa %s13, 0
    loop: start=0, step=1, limit=4
    $region2: #{encoder_forward.1} parent=1 // loop_pre_header
      _
    $region3: #{encoder_forward.1} parent=1 // loop_header
      %s16 = sphi 0, %s20
      %p17 = scmp.ge.s32.totalorder %s16, 4
      %s26 = sphi 0, %s28
      %s29 = sphi 0, %s26
      %s30 = sphi 0, %s29
      %s46 = sphi 0, %s30
      %s50 = sphi 0, %s50
      %s52 = sphi 0, %s50
      %s53 = sphi 0, %s52
      %s67 = sphi 0, %s53
      %s71 = sphi 0, %s71
      %s73 = sphi 0, %s71
      %s74 = sphi 0, %s73
      %s88 = sphi 0, %s74
      %s92 = sphi 0, %s92
      %s94 = sphi 0, %s92
      %s95 = sphi 0, %s94
      %s109 = sphi 0, %s95
      %s113 = sphi 0, %s113
      %s115 = sphi 0, %s113
      %s116 = sphi 0, %s115
      %s130 = sphi 0, %s116
      %s134 = sphi 0, %s134
      %s136 = sphi 0, %s134
      %s137 = sphi 0, %s136
      %s151 = sphi 0, %s137
      %s155 = sphi 0, %s155
      %s157 = sphi 0, %s155
      %s158 = sphi 0, %s157
      %s172 = sphi 0, %s158
      %s178 = sphi 0, %s180
      %s181 = sphi 0, %s178
      %s182 = sphi 0, %s181
      %s198 = sphi 0, %s182
    $region4: #{encoder_forward.1} parent=1 // loop_header_branch
      %19 = sbr.rel (%p17) target = $region8
    $region5: #{encoder_forward.1} parent=1 // loop_body
      %s21 = ssub.s32 %s16, 1
      %s22 = ssub.s32 %s16, 2
      %s23 = sadd.s32 %s16, 1
      %s24 = ssub.s32 %s16, %s23
      %p25 = scmp.eq.s32.totalorder %s24, 0
      %s27 = sadd.s32 %s26, 1
      %s28 = scalar_select %p25, %s26, %s27
      %p31 = pneg %p25
      %p32 = scmp.eq.s32.totalorder %s16, 1
      %p33 = por %p31, %p32
      %p34 = scmp.ne.s32.totalorder %s26, %s29
      %p35 = scmp.eq.s32.totalorder %s16, 0
      %p36 = por %p34, %p35
      %p37 = scmp.ne.s32.totalorder %s26, %s29
      %p38 = scmp.eq.s32.totalorder %s21, 1
      %p39 = por %p37, %p38
      %p40 = scmp.ne.s32.totalorder %s29, %s30
      %p41 = scmp.eq.s32.totalorder %s21, 0
      %p42 = por %p40, %p41
      %p43 = scmp.ne.s32.totalorder %s29, %s30
      %p44 = scmp.eq.s32.totalorder %s22, 1
      %p45 = por %p43, %p44
      %p47 = scmp.ne.s32.totalorder %s30, %s46
      %p48 = scmp.eq.s32.totalorder %s22, 0
      %p49 = por %p47, %p48
      %s51 = sadd.s32 %s50, 1
      %p54 = scmp.eq.s32.totalorder %s16, 1
      %p55 = scmp.ne.s32.totalorder %s50, %s52
      %p56 = scmp.eq.s32.totalorder %s16, 0
      %p57 = por %p55, %p56
      %p58 = scmp.ne.s32.totalorder %s50, %s52
      %p59 = scmp.eq.s32.totalorder %s21, 1
      %p60 = por %p58, %p59
      %p61 = scmp.ne.s32.totalorder %s52, %s53
      %p62 = scmp.eq.s32.totalorder %s21, 0
      %p63 = por %p61, %p62
      %p64 = scmp.ne.s32.totalorder %s52, %s53
      %p65 = scmp.eq.s32.totalorder %s22, 1
      %p66 = por %p64, %p65
      %p68 = scmp.ne.s32.totalorder %s53, %s67
      %p69 = scmp.eq.s32.totalorder %s22, 0
      %p70 = por %p68, %p69
      %s72 = sadd.s32 %s71, 1
      %p75 = scmp.eq.s32.totalorder %s16, 1
      %p76 = scmp.ne.s32.totalorder %s71, %s73
      %p77 = scmp.eq.s32.totalorder %s16, 0
      %p78 = por %p76, %p77
      %p79 = scmp.ne.s32.totalorder %s71, %s73
      %p80 = scmp.eq.s32.totalorder %s21, 1
      %p81 = por %p79, %p80
      %p82 = scmp.ne.s32.totalorder %s73, %s74
      %p83 = scmp.eq.s32.totalorder %s21, 0
      %p84 = por %p82, %p83
      %p85 = scmp.ne.s32.totalorder %s73, %s74
      %p86 = scmp.eq.s32.totalorder %s22, 1
      %p87 = por %p85, %p86
      %p89 = scmp.ne.s32.totalorder %s74, %s88
      %p90 = scmp.eq.s32.totalorder %s22, 0
      %p91 = por %p89, %p90
      %s93 = sadd.s32 %s92, 1
      %p96 = scmp.eq.s32.totalorder %s16, 1
      %p97 = scmp.ne.s32.totalorder %s92, %s94
      %p98 = scmp.eq.s32.totalorder %s16, 0
      %p99 = por %p97, %p98
      %p100 = scmp.ne.s32.totalorder %s92, %s94
      %p101 = scmp.eq.s32.totalorder %s21, 1
      %p102 = por %p100, %p101
      %p103 = scmp.ne.s32.totalorder %s94, %s95
      %p104 = scmp.eq.s32.totalorder %s21, 0
      %p105 = por %p103, %p104
      %p106 = scmp.ne.s32.totalorder %s94, %s95
      %p107 = scmp.eq.s32.totalorder %s22, 1
      %p108 = por %p106, %p107
      %p110 = scmp.ne.s32.totalorder %s95, %s109
      %p111 = scmp.eq.s32.totalorder %s22, 0
      %p112 = por %p110, %p111
      %s114 = sadd.s32 %s113, 1
      %p117 = scmp.eq.s32.totalorder %s16, 1
      %p118 = scmp.ne.s32.totalorder %s113, %s115
      %p119 = scmp.eq.s32.totalorder %s16, 0
      %p120 = por %p118, %p119
      %p121 = scmp.ne.s32.totalorder %s113, %s115
      %p122 = scmp.eq.s32.totalorder %s21, 1
      %p123 = por %p121, %p122
      %p124 = scmp.ne.s32.totalorder %s115, %s116
      %p125 = scmp.eq.s32.totalorder %s21, 0
      %p126 = por %p124, %p125
      %p127 = scmp.ne.s32.totalorder %s115, %s116
      %p128 = scmp.eq.s32.totalorder %s22, 1
      %p129 = por %p127, %p128
      %p131 = scmp.ne.s32.totalorder %s116, %s130
      %p132 = scmp.eq.s32.totalorder %s22, 0
      %p133 = por %p131, %p132
      %s135 = sadd.s32 %s134, 1
      %p138 = scmp.eq.s32.totalorder %s16, 1
      %p139 = scmp.ne.s32.totalorder %s134, %s136
      %p140 = scmp.eq.s32.totalorder %s16, 0
      %p141 = por %p139, %p140
      %p142 = scmp.ne.s32.totalorder %s134, %s136
      %p143 = scmp.eq.s32.totalorder %s21, 1
      %p144 = por %p142, %p143
      %p145 = scmp.ne.s32.totalorder %s136, %s137
      %p146 = scmp.eq.s32.totalorder %s21, 0
      %p147 = por %p145, %p146
      %p148 = scmp.ne.s32.totalorder %s136, %s137
      %p149 = scmp.eq.s32.totalorder %s22, 1
      %p150 = por %p148, %p149
      %p152 = scmp.ne.s32.totalorder %s137, %s151
      %p153 = scmp.eq.s32.totalorder %s22, 0
      %p154 = por %p152, %p153
      %s156 = sadd.s32 %s155, 1
      %p159 = scmp.eq.s32.totalorder %s16, 1
      %p160 = scmp.ne.s32.totalorder %s155, %s157
      %p161 = scmp.eq.s32.totalorder %s16, 0
      %p162 = por %p160, %p161
      %p163 = scmp.ne.s32.totalorder %s155, %s157
      %p164 = scmp.eq.s32.totalorder %s21, 1
      %p165 = por %p163, %p164
      %p166 = scmp.ne.s32.totalorder %s157, %s158
      %p167 = scmp.eq.s32.totalorder %s21, 0
      %p168 = por %p166, %p167
      %p169 = scmp.ne.s32.totalorder %s157, %s158
      %p170 = scmp.eq.s32.totalorder %s22, 1
      %p171 = por %p169, %p170
      %p173 = scmp.ne.s32.totalorder %s158, %s172
      %p174 = scmp.eq.s32.totalorder %s22, 0
      %p175 = por %p173, %p174
      %s176 = ssub.s32 %s16, %s23
      %p177 = scmp.eq.s32.totalorder %s176, 0
      %s179 = sadd.s32 %s178, 1
      %s180 = scalar_select %p177, %s178, %s179
      %p183 = pneg %p177
      %p184 = scmp.eq.s32.totalorder %s16, 1
      %p185 = por %p183, %p184
      %p186 = scmp.ne.s32.totalorder %s178, %s181
      %p187 = scmp.eq.s32.totalorder %s16, 0
      %p188 = por %p186, %p187
      %p189 = scmp.ne.s32.totalorder %s178, %s181
      %p190 = scmp.eq.s32.totalorder %s21, 1
      %p191 = por %p189, %p190
      %p192 = scmp.ne.s32.totalorder %s181, %s182
      %p193 = scmp.eq.s32.totalorder %s21, 0
      %p194 = por %p192, %p193
      %p195 = scmp.ne.s32.totalorder %s181, %s182
      %p196 = scmp.eq.s32.totalorder %s22, 1
      %p197 = por %p195, %p196
      %p199 = scmp.ne.s32.totalorder %s182, %s198
      %p200 = scmp.eq.s32.totalorder %s22, 0
      %p201 = por %p199, %p200
      %p202 = scmp.le.s32.totalorder 1, %s16
      %p203 = scmp.lt.s32.totalorder %s16, 3
      %p204 = pnand %p202, %p203
      %p205 = pneg %p204
      // Predicated region
      $region9: #{encoder_forward.1} parent=5 // pred_check
        _
      $region10: #{encoder_forward.1} parent=5 // pred_check_branch
        %207 = sbr.rel (%p204) target = $region12
      $region11: #{encoder_forward.1} parent=5 // pred_region
        %s208 = ssub.s32 %s16, 1
        // Predicated region
        $region13: #{encoder_forward.1} parent=11 // pred_check
          %p209 = pneg %p63
        $region14: #{encoder_forward.1} parent=11 // pred_check_branch
          %211 = sbr.rel (%p209) target = $region16
        $region15: #{encoder_forward.1} parent=11 // pred_region
          _
        $region16: #{encoder_forward.1} parent=11 // pred_fallthru
          _
        // Predicated region
        $region17: #{encoder_forward.1} parent=11 // pred_check
          %p212 = pneg %p84
        $region18: #{encoder_forward.1} parent=11 // pred_check_branch
          %214 = sbr.rel (%p212) target = $region20
        $region19: #{encoder_forward.1} parent=11 // pred_region
          _
        $region20: #{encoder_forward.1} parent=11 // pred_fallthru
          _
        // Predicated region
        $region21: #{encoder_forward.1} parent=11 // pred_check
          %p215 = pneg %p105
        $region22: #{encoder_forward.1} parent=11 // pred_check_branch
          %217 = sbr.rel (%p215) target = $region24
        $region23: #{encoder_forward.1} parent=11 // pred_region
          _
        $region24: #{encoder_forward.1} parent=11 // pred_fallthru
          _
        // Predicated region
        $region25: #{encoder_forward.1} parent=11 // pred_check
          %p218 = pneg %p126
        $region26: #{encoder_forward.1} parent=11 // pred_check_branch
          %220 = sbr.rel (%p218) target = $region28
        $region27: #{encoder_forward.1} parent=11 // pred_region
          _
        $region28: #{encoder_forward.1} parent=11 // pred_fallthru
          _
        // Predicated region
        $region29: #{encoder_forward.1} parent=11 // pred_check
          %p221 = pneg %p147
        $region30: #{encoder_forward.1} parent=11 // pred_check_branch
          %223 = sbr.rel (%p221) target = $region32
        $region31: #{encoder_forward.1} parent=11 // pred_region
          _
        $region32: #{encoder_forward.1} parent=11 // pred_fallthru
          _
        // Predicated region
        $region33: #{encoder_forward.1} parent=11 // pred_check
          %p224 = pneg %p168
        $region34: #{encoder_forward.1} parent=11 // pred_check_branch
          %226 = sbr.rel (%p224) target = $region36
        $region35: #{encoder_forward.1} parent=11 // pred_region
          _
        $region36: #{encoder_forward.1} parent=11 // pred_fallthru
          _
      $region12: #{encoder_forward.1} parent=5 // pred_fallthru
        _
      %p227 = scmp.lt.s32.totalorder %s16, 2
      // Predicated region
      $region37: #{encoder_forward.1} parent=5 // pred_check
        %p228 = pneg %p227
      $region38: #{encoder_forward.1} parent=5 // pred_check_branch
        %230 = sbr.rel (%p228) target = $region40
      $region39: #{encoder_forward.1} parent=5 // pred_region
        // Predicated region
        $region41: #{encoder_forward.1} parent=39 // pred_check
          %p231 = pneg %p36
        $region42: #{encoder_forward.1} parent=39 // pred_check_branch
          %233 = sbr.rel (%p231) target = $region44
        $region43: #{encoder_forward.1} parent=39 // pred_region
          %p234 = scmp.lt.s32.totalorder %s16, 1
          %s235 = scalar_select %p234, %s16, 1
          %s236 = smul.addr %s235, 16
          %s237 = smul.addr %s236, 8
          %s238 = scalar_lea.vmem %s0, %s237
        $region44: #{encoder_forward.1} parent=39 // pred_fallthru
          _
      $region40: #{encoder_forward.1} parent=5 // pred_fallthru
        _
      %p239 = scmp.le.s32.totalorder 1, %s16
      %p240 = scmp.lt.s32.totalorder %s16, 3
      %p241 = pnand %p239, %p240
      %p242 = pneg %p241
      // Predicated region
      $region45: #{encoder_forward.1} parent=5 // pred_check
        _
      $region46: #{encoder_forward.1} parent=5 // pred_check_branch
        %244 = sbr.rel (%p241) target = $region48
      $region47: #{encoder_forward.1} parent=5 // pred_region
        %s245 = ssub.s32 %s16, 1
        %p246 = scmp.lt.s32.totalorder %s21, 1
        %s247 = scalar_select %p246, %s21, 1
        %s248 = smul.addr %s247, 16
        %s249 = smul.addr %s248, 8
        %s250 = scalar_lea.vmem %s0, %s249
        %p251 = pneg %p42
        %p252 = pneg %p39
        %p253 = pneg %p63
        %p254 = pneg %p60
        %p255 = pneg %p84
        %p256 = pneg %p81
        %p257 = pneg %p105
        %p258 = pneg %p102
        %p259 = pneg %p126
        %p260 = pneg %p123
        %p261 = pneg %p147
        %p262 = pneg %p144
        %p263 = pneg %p168
        %p264 = pneg %p165
        %p265 = pneg %p194
        %p266 = pneg %p191
        %s267 = sand.u32 %s181, 1
        %s268 = scalar_lea.sflag [#allocation3], %s267
        %s269 = sand.u32 %s181, 1
        %s270 = scalar_lea.vmem [#allocation2], %s269
        %p271 = scmp.lt.s32.totalorder %s21, 1
        %s272 = scalar_select %p271, %s21, 1
        %s273 = smul.addr %s272, 16
        %s274 = smul.addr %s273, 8
        %s275 = scalar_lea.vmem %s0, %s274
        %v277 = vld [vmem:[%s275] sm:$0xff]
        %v278 = vld [vmem:[%s275 + $0x8] sm:$0xff]
        %v279 = vld [vmem:[%s275 + $0x10] sm:$0xff]
        %v280 = vld [vmem:[%s275 + $0x18] sm:$0xff]
        %v281 = vld [vmem:[%s275 + $0x20] sm:$0xff]
        %v282 = vld [vmem:[%s275 + $0x28] sm:$0xff]
        %v283 = vld [vmem:[%s275 + $0x30] sm:$0xff]
        %v284 = vld [vmem:[%s275 + $0x38] sm:$0xff]
        %v285 = vld [vmem:[%s275 + $0x40] sm:$0xff]
        %v286 = vld [vmem:[%s275 + $0x48] sm:$0xff]
        %v287 = vld [vmem:[%s275 + $0x50] sm:$0xff]
        %v288 = vld [vmem:[%s275 + $0x58] sm:$0xff]
        %v289 = vld [vmem:[%s275 + $0x60] sm:$0xff]
        %v290 = vld [vmem:[%s275 + $0x68] sm:$0xff]
        %v291 = vld [vmem:[%s275 + $0x70] sm:$0xff]
        %v292 = vld [vmem:[%s275 + $0x78] sm:$0xff]
        %v295 = vrot.slane %v291, 3
        %v296 = vrot.slane %v292, 3
        %v299 = vrot.slane %v291, 4
        %v300 = vrot.slane %v292, 4
        %vm303 = vcmask 1040384
        %v304 = vsel %vm303, 0.0, %v295
        %v305 = vsel %vm303, 0.0, %v296
        %vm306 = vcmask 1043456
        %v307 = vsel %vm306, %v304, %v299
        %v308 = vsel %vm306, %v305, %v300
        %v309 = vpack.c.bf16 %v289, %v307
        %v310 = vpack.c.bf16 %v290, %v308
        %v311 = vpack.c.bf16 %v287, %v285
        %v312 = vpack.c.bf16 %v288, %v286
        %v313 = vld [vmem:[%s1] sm:$0xff]
        %v314 = vld [vmem:[%s1 + $0x8] sm:$0xff]
        %v315 = vld [vmem:[%s1 + $0x10] sm:$0xff]
        %v316 = vld [vmem:[%s1 + $0x18] sm:$0xff]
        %v317 = vld [vmem:[%s1 + $0x20] sm:$0xff]
        %v318 = vld [vmem:[%s1 + $0x28] sm:$0xff]
        %v319 = vld [vmem:[%s1 + $0x30] sm:$0xff]
        %v320 = vld [vmem:[%s1 + $0x38] sm:$0xff]
        %v321 = vld [vmem:[%s1 + $0x40] sm:$0xff]
        %v322 = vld [vmem:[%s1 + $0x48] sm:$0xff]
        %v323 = vld [vmem:[%s1 + $0x50] sm:$0xff]
        %v324 = vld [vmem:[%s1 + $0x58] sm:$0xff]
        %v325 = vld [vmem:[%s1 + $0x60] sm:$0xff]
        %v326 = vld [vmem:[%s1 + $0x68] sm:$0xff]
        %v327 = vld [vmem:[%s1 + $0x70] sm:$0xff]
        %v328 = vld [vmem:[%s1 + $0x78] sm:$0xff]
        %v329 = vld [vmem:[%s1 + $0x80] sm:$0xff]
        %v330 = vld [vmem:[%s1 + $0x88] sm:$0xff]
        %v331 = vld [vmem:[%s1 + $0x90] sm:$0xff]
        %v332 = vld [vmem:[%s1 + $0x98] sm:$0xff]
        %v333 = vld [vmem:[%s1 + $0xa0] sm:$0xff]
        %v334 = vld [vmem:[%s1 + $0xa8] sm:$0xff]
        %v335 = vld [vmem:[%s1 + $0xb0] sm:$0xff]
        %v336 = vld [vmem:[%s1 + $0xb8] sm:$0xff]
        %v337 = vpack.c.bf16 %v279, %v277
        %v338 = vpack.c.bf16 %v280, %v278
        %v339 = vpack.c.bf16 %v283, %v281
        %v340 = vpack.c.bf16 %v284, %v282
        %v341 = vld [vmem:[%s1 + $0xc0] sm:$0xff]
        %v342 = vld [vmem:[%s1 + $0xc8] sm:$0xff]
        %v343 = vld [vmem:[%s1 + $0xd0] sm:$0xff]
        %v344 = vld [vmem:[%s1 + $0xd8] sm:$0xff]
        %v345 = vld [vmem:[%s1 + $0xe0] sm:$0xff]
        %v346 = vld [vmem:[%s1 + $0xe8] sm:$0xff]
        %v347 = vld [vmem:[%s1 + $0xf0] sm:$0xff]
        %v348 = vld [vmem:[%s1 + $0xf8] sm:$0xff]
        %v349 = vld [vmem:[%s1 + $0x100] sm:$0xff]
        %v350 = vld [vmem:[%s1 + $0x108] sm:$0xff]
        %v351 = vld [vmem:[%s1 + $0x110] sm:$0xff]
        %v352 = vld [vmem:[%s1 + $0x118] sm:$0xff]
        %v353 = vld [vmem:[%s1 + $0x120] sm:$0xff]
        %v354 = vld [vmem:[%s1 + $0x128] sm:$0xff]
        %v355 = vld [vmem:[%s1 + $0x130] sm:$0xff]
        %v356 = vld [vmem:[%s1 + $0x138] sm:$0xff]
        %v357 = vld [vmem:[%s1 + $0x140] sm:$0xff]
        %v358 = vld [vmem:[%s1 + $0x148] sm:$0xff]
        %v359 = vld [vmem:[%s1 + $0x150] sm:$0xff]
        %v360 = vld [vmem:[%s1 + $0x158] sm:$0xff]
        %v361 = vld [vmem:[%s1 + $0x160] sm:$0xff]
        %v362 = vld [vmem:[%s1 + $0x168] sm:$0xff]
        %v363 = vld [vmem:[%s1 + $0x170] sm:$0xff]
        %v364 = vld [vmem:[%s1 + $0x178] sm:$0xff]
        %v389 = vunpack.c.l.b16 %v341
        %v390 = vunpack.c.h.b16 %v341
        %v391 = vunpack.c.l.b16 %v342
        %v392 = vunpack.c.h.b16 %v342
        %v393 = vunpack.c.l.b16 %v343
        %v394 = vunpack.c.h.b16 %v343
        %v395 = vunpack.c.l.b16 %v344
        %v396 = vunpack.c.h.b16 %v344
        %v397 = vunpack.c.l.b16 %v345
        %v398 = vunpack.c.h.b16 %v345
        %v399 = vunpack.c.l.b16 %v346
        %v400 = vunpack.c.h.b16 %v346
        %v401 = vunpack.c.l.b16 %v347
        %v402 = vunpack.c.h.b16 %v347
        %v403 = vunpack.c.l.b16 %v348
        %v404 = vunpack.c.h.b16 %v348
        %v405 = vunpack.c.l.b16 %v349
        %v406 = vunpack.c.h.b16 %v349
        %v407 = vunpack.c.l.b16 %v350
        %v408 = vunpack.c.h.b16 %v350
        %v409 = vunpack.c.l.b16 %v351
        %v410 = vunpack.c.h.b16 %v351
        %v411 = vunpack.c.l.b16 %v352
        %v412 = vunpack.c.h.b16 %v352
        %v413 = vunpack.c.l.b16 %v353
        %v414 = vunpack.c.h.b16 %v353
        %v415 = vunpack.c.l.b16 %v354
        %v416 = vunpack.c.h.b16 %v354
        %v417 = vunpack.c.l.b16 %v355
        %v418 = vunpack.c.h.b16 %v355
        %v419 = vunpack.c.l.b16 %v356
        %v420 = vunpack.c.h.b16 %v356
        %v421 = vunpack.c.l.b16 %v357
        %v422 = vunpack.c.h.b16 %v357
        %v423 = vunpack.c.l.b16 %v358
        %v424 = vunpack.c.h.b16 %v358
        %v425 = vunpack.c.l.b16 %v359
        %v426 = vunpack.c.h.b16 %v359
        %v427 = vunpack.c.l.b16 %v360
        %v428 = vunpack.c.h.b16 %v360
        %v429 = vunpack.c.l.b16 %v361
        %v430 = vunpack.c.h.b16 %v361
        %v431 = vunpack.c.l.b16 %v362
        %v432 = vunpack.c.h.b16 %v362
        %v433 = vunpack.c.l.b16 %v363
        %v434 = vunpack.c.h.b16 %v363
        %v435 = vunpack.c.l.b16 %v364
        %v436 = vunpack.c.h.b16 %v364
        %v437 = vpack.c.b16 %v391, %v389
        %v438 = vpack.c.b16 %v392, %v390
        %v439 = vpack.c.b16 %v395, %v393
        %v440 = vpack.c.b16 %v396, %v394
        %v441 = vpack.c.b16 %v399, %v397
        %v442 = vpack.c.b16 %v400, %v398
        %v443 = vpack.c.b16 %v403, %v401
        %v444 = vpack.c.b16 %v404, %v402
        %v445 = vpack.c.b16 %v407, %v405
        %v446 = vpack.c.b16 %v408, %v406
        %v447 = vpack.c.b16 %v411, %v409
        %v448 = vpack.c.b16 %v412, %v410
        %v449 = vpack.c.b16 %v415, %v413
        %v450 = vpack.c.b16 %v416, %v414
        %v451 = vpack.c.b16 %v419, %v417
        %v452 = vpack.c.b16 %v420, %v418
        %v453 = vpack.c.b16 %v423, %v421
        %v454 = vpack.c.b16 %v424, %v422
        %v455 = vpack.c.b16 %v427, %v425
        %v456 = vpack.c.b16 %v428, %v426
        %v457 = vpack.c.b16 %v431, %v429
        %v458 = vpack.c.b16 %v432, %v430
        %v459 = vpack.c.b16 %v435, %v433
        %v460 = vpack.c.b16 %v436, %v434
        %vm485 = vcmask 523264
        %v487 = vsel %vm485, %v338, 0
        %v490 = vsel %vm485, %v340, 0
        %492 = vmatprep.subr.bf16.mxu0 %v438
        %493 = vmatpush1.bf16.msra.mxu0 %v437
        %494 = vmatprep.subr.bf16.mxu0 %v440
        %495 = vmatpush1.bf16.msra.mxu0 %v439
        %496 = vmatprep.subr.bf16.mxu0 %v442
        %497 = vmatpush1.bf16.msra.mxu0 %v441
        %498 = vmatprep.subr.bf16.mxu0 %v444
        %499 = vmatpush1.bf16.msra.mxu0 %v443
        %500 = vmatprep.subr.bf16.mxu0 %v446
        %501 = vmatpush1.bf16.msra.mxu0 %v445
        %502 = vmatprep.subr.bf16.mxu0 %v448
        %503 = vmatpush1.bf16.msra.mxu0 %v447
        %504 = vmatprep.subr.bf16.mxu0 %v450
        %505 = vmatpush1.bf16.msra.mxu0 %v449
        %506 = vmatprep.subr.bf16.mxu0 %v452
        %507 = vmatpush1.bf16.msra.mxu0 %v451
        %508 = vmatprep.subr.bf16.mxu0 %v454
        %509 = vmatpush1.bf16.msra.mxu0 %v453
        %510 = vmatprep.subr.bf16.mxu0 %v456
        %511 = vmatpush1.bf16.msra.mxu0 %v455
        %512 = vmatprep.subr.bf16.mxu0 %v458
        %513 = vmatpush1.bf16.msra.mxu0 %v457
        %514 = vmatprep.subr.bf16.mxu0 %v460
        %515 = vmatpush1.bf16.msra.mxu0 %v459
        %516 = vmatprep.subr.bf16.mxu0 0
        %517 = vmatpush1.bf16.msra.mxu0 0
        %518 = vmatprep.subr.bf16.mxu0 0
        %519 = vmatpush1.bf16.msra.mxu0 0
        %520 = vmatprep.subr.bf16.mxu0 0
        %521 = vmatpush1.bf16.msra.mxu0 0
        %522 = vmatprep.subr.bf16.mxu0 0
        %523 = vmatpush1.bf16.msra.mxu0 0
        %524 = vmatprep.mubr.bf16.mxu0 %v487
        %525 = vmatmul.mubr.bf16.gmra.mrb[0].mxu0 %v337
        %v526 = vpop.f32.mrb[0].mxu0
        %v527 = vadd.f32 0.0, %v526
        %v528 = vpop.f32.mrb[0].mxu0
        %v529 = vadd.f32 0.0, %v528
        %v530 = vpop.f32.mrb[0].mxu0
        %v531 = vadd.f32 0.0, %v530
        %v532 = vpop.f32.mrb[0].mxu0
        %v533 = vadd.f32 0.0, %v532
        %534 = vmatprep.mubr.bf16.mxu0 %v490
        %535 = vmatmul.mubr.bf16.gmra.mrb[0].mxu0 %v339
        %v536 = vpop.f32.mrb[0].mxu0
        %v537 = vadd.f32 0.0, %v536
        %v538 = vpop.f32.mrb[0].mxu0
        %v539 = vadd.f32 0.0, %v538
        %v540 = vpop.f32.mrb[0].mxu0
        %v541 = vadd.f32 0.0, %v540
        %v542 = vpop.f32.mrb[0].mxu0
        %v543 = vadd.f32 0.0, %v542
        %544 = vdwg.mxu0
        %v569 = vunpack.c.l.b16 %v313
        %v570 = vunpack.c.h.b16 %v313
        %v571 = vunpack.c.l.b16 %v314
        %v572 = vunpack.c.h.b16 %v314
        %v573 = vunpack.c.l.b16 %v315
        %v574 = vunpack.c.h.b16 %v315
        %v575 = vunpack.c.l.b16 %v316
        %v576 = vunpack.c.h.b16 %v316
        %v577 = vunpack.c.l.b16 %v317
        %v578 = vunpack.c.h.b16 %v317
        %v579 = vunpack.c.l.b16 %v318
        %v580 = vunpack.c.h.b16 %v318
        %v581 = vunpack.c.l.b16 %v319
        %v582 = vunpack.c.h.b16 %v319
        %v583 = vunpack.c.l.b16 %v320
        %v584 = vunpack.c.h.b16 %v320
        %v585 = vunpack.c.l.b16 %v321
        %v586 = vunpack.c.h.b16 %v321
        %v587 = vunpack.c.l.b16 %v322
        %v588 = vunpack.c.h.b16 %v322
        %v589 = vunpack.c.l.b16 %v323
        %v590 = vunpack.c.h.b16 %v323
        %v591 = vunpack.c.l.b16 %v324
        %v592 = vunpack.c.h.b16 %v324
        %v593 = vunpack.c.l.b16 %v325
        %v594 = vunpack.c.h.b16 %v325
        %v595 = vunpack.c.l.b16 %v326
        %v596 = vunpack.c.h.b16 %v326
        %v597 = vunpack.c.l.b16 %v327
        %v598 = vunpack.c.h.b16 %v327
        %v599 = vunpack.c.l.b16 %v328
        %v600 = vunpack.c.h.b16 %v328
        %v601 = vunpack.c.l.b16 %v329
        %v602 = vunpack.c.h.b16 %v329
        %v603 = vunpack.c.l.b16 %v330
        %v604 = vunpack.c.h.b16 %v330
        %v605 = vunpack.c.l.b16 %v331
        %v606 = vunpack.c.h.b16 %v331
        %v607 = vunpack.c.l.b16 %v332
        %v608 = vunpack.c.h.b16 %v332
        %v609 = vunpack.c.l.b16 %v333
        %v610 = vunpack.c.h.b16 %v333
        %v611 = vunpack.c.l.b16 %v334
        %v612 = vunpack.c.h.b16 %v334
        %v613 = vunpack.c.l.b16 %v335
        %v614 = vunpack.c.h.b16 %v335
        %v615 = vunpack.c.l.b16 %v336
        %v616 = vunpack.c.h.b16 %v336
        %v617 = vpack.c.b16 %v571, %v569
        %v618 = vpack.c.b16 %v572, %v570
        %v619 = vpack.c.b16 %v575, %v573
        %v620 = vpack.c.b16 %v576, %v574
        %v621 = vpack.c.b16 %v579, %v577
        %v622 = vpack.c.b16 %v580, %v578
        %v623 = vpack.c.b16 %v583, %v581
        %v624 = vpack.c.b16 %v584, %v582
        %v625 = vpack.c.b16 %v587, %v585
        %v626 = vpack.c.b16 %v588, %v586
        %v627 = vpack.c.b16 %v591, %v589
        %v628 = vpack.c.b16 %v592, %v590
        %v629 = vpack.c.b16 %v595, %v593
        %v630 = vpack.c.b16 %v596, %v594
        %v631 = vpack.c.b16 %v599, %v597
        %v632 = vpack.c.b16 %v600, %v598
        %v633 = vpack.c.b16 %v603, %v601
        %v634 = vpack.c.b16 %v604, %v602
        %v635 = vpack.c.b16 %v607, %v605
        %v636 = vpack.c.b16 %v608, %v606
        %v637 = vpack.c.b16 %v611, %v609
        %v638 = vpack.c.b16 %v612, %v610
        %v639 = vpack.c.b16 %v615, %v613
        %v640 = vpack.c.b16 %v616, %v614
        %v666 = vsel %vm485, %v310, 0
        %v669 = vsel %vm485, %v312, 0
        %671 = vmatprep.subr.bf16.mxu0 %v618
        %672 = vmatpush1.bf16.msra.mxu0 %v617
        %673 = vmatprep.subr.bf16.mxu0 %v620
        %674 = vmatpush1.bf16.msra.mxu0 %v619
        %675 = vmatprep.subr.bf16.mxu0 %v622
        %676 = vmatpush1.bf16.msra.mxu0 %v621
        %677 = vmatprep.subr.bf16.mxu0 %v624
        %678 = vmatpush1.bf16.msra.mxu0 %v623
        %679 = vmatprep.subr.bf16.mxu0 %v626
        %680 = vmatpush1.bf16.msra.mxu0 %v625
        %681 = vmatprep.subr.bf16.mxu0 %v628
        %682 = vmatpush1.bf16.msra.mxu0 %v627
        %683 = vmatprep.subr.bf16.mxu0 %v630
        %684 = vmatpush1.bf16.msra.mxu0 %v629
        %685 = vmatprep.subr.bf16.mxu0 %v632
        %686 = vmatpush1.bf16.msra.mxu0 %v631
        %687 = vmatprep.subr.bf16.mxu0 %v634
        %688 = vmatpush1.bf16.msra.mxu0 %v633
        %689 = vmatprep.subr.bf16.mxu0 %v636
        %690 = vmatpush1.bf16.msra.mxu0 %v635
        %691 = vmatprep.subr.bf16.mxu0 %v638
        %692 = vmatpush1.bf16.msra.mxu0 %v637
        %693 = vmatprep.subr.bf16.mxu0 %v640
        %694 = vmatpush1.bf16.msra.mxu0 %v639
        %695 = vmatprep.subr.bf16.mxu0 0
        %696 = vmatpush1.bf16.msra.mxu0 0
        %697 = vmatprep.subr.bf16.mxu0 0
        %698 = vmatpush1.bf16.msra.mxu0 0
        %699 = vmatprep.subr.bf16.mxu0 0
        %700 = vmatpush1.bf16.msra.mxu0 0
        %701 = vmatprep.subr.bf16.mxu0 0
        %702 = vmatpush1.bf16.msra.mxu0 0
        %703 = vmatprep.mubr.bf16.mxu0 %v666
        %704 = vmatmul.mubr.bf16.gmra.mrb[0].mxu0 %v309
        %v705 = vpop.f32.mrb[0].mxu0
        %v706 = vadd.f32 %v527, %v705
        %v707 = vpop.f32.mrb[0].mxu0
        %v708 = vadd.f32 %v529, %v707
        %v709 = vpop.f32.mrb[0].mxu0
        %v710 = vadd.f32 %v531, %v709
        %v711 = vpop.f32.mrb[0].mxu0
        %v712 = vadd.f32 %v533, %v711
        %713 = vmatprep.mubr.bf16.mxu0 %v669
        %714 = vmatmul.mubr.bf16.gmra.mrb[0].mxu0 %v311
        %v715 = vpop.f32.mrb[0].mxu0
        %v716 = vadd.f32 %v537, %v715
        %v717 = vpop.f32.mrb[0].mxu0
        %v718 = vadd.f32 %v539, %v717
        %v719 = vpop.f32.mrb[0].mxu0
        %v720 = vadd.f32 %v541, %v719
        %v721 = vpop.f32.mrb[0].mxu0
        %v722 = vadd.f32 %v543, %v721
        %723 = vdwg.mxu0
        %v724 = vpack.c.bf16 %v291, %v289
        %v725 = vpack.c.bf16 %v292, %v290
        %v726 = vld [vmem:[%s1 + $0x180] sm:$0xff]
        %v727 = vld [vmem:[%s1 + $0x188] sm:$0xff]
        %v728 = vld [vmem:[%s1 + $0x190] sm:$0xff]
        %v729 = vld [vmem:[%s1 + $0x198] sm:$0xff]
        %v730 = vld [vmem:[%s1 + $0x1a0] sm:$0xff]
        %v731 = vld [vmem:[%s1 + $0x1a8] sm:$0xff]
        %v732 = vld [vmem:[%s1 + $0x1b0] sm:$0xff]
        %v733 = vld [vmem:[%s1 + $0x1b8] sm:$0xff]
        %v734 = vld [vmem:[%s1 + $0x1c0] sm:$0xff]
        %v735 = vld [vmem:[%s1 + $0x1c8] sm:$0xff]
        %v736 = vld [vmem:[%s1 + $0x1d0] sm:$0xff]
        %v737 = vld [vmem:[%s1 + $0x1d8] sm:$0xff]
        %v738 = vld [vmem:[%s1 + $0x1e0] sm:$0xff]
        %v739 = vld [vmem:[%s1 + $0x1e8] sm:$0xff]
        %v740 = vld [vmem:[%s1 + $0x1f0] sm:$0xff]
        %v741 = vld [vmem:[%s1 + $0x1f8] sm:$0xff]
        %v742 = vld [vmem:[%s1 + $0x200] sm:$0xff]
        %v743 = vld [vmem:[%s1 + $0x208] sm:$0xff]
        %v744 = vld [vmem:[%s1 + $0x210] sm:$0xff]
        %v745 = vld [vmem:[%s1 + $0x218] sm:$0xff]
        %v746 = vld [vmem:[%s1 + $0x220] sm:$0xff]
        %v747 = vld [vmem:[%s1 + $0x228] sm:$0xff]
        %v748 = vld [vmem:[%s1 + $0x230] sm:$0xff]
        %v749 = vld [vmem:[%s1 + $0x238] sm:$0xff]
        %v774 = vunpack.c.l.b16 %v726
        %v775 = vunpack.c.h.b16 %v726
        %v776 = vunpack.c.l.b16 %v727
        %v777 = vunpack.c.h.b16 %v727
        %v778 = vunpack.c.l.b16 %v728
        %v779 = vunpack.c.h.b16 %v728
        %v780 = vunpack.c.l.b16 %v729
        %v781 = vunpack.c.h.b16 %v729
        %v782 = vunpack.c.l.b16 %v730
        %v783 = vunpack.c.h.b16 %v730
        %v784 = vunpack.c.l.b16 %v731
        %v785 = vunpack.c.h.b16 %v731
        %v786 = vunpack.c.l.b16 %v732
        %v787 = vunpack.c.h.b16 %v732
        %v788 = vunpack.c.l.b16 %v733
        %v789 = vunpack.c.h.b16 %v733
        %v790 = vunpack.c.l.b16 %v734
        %v791 = vunpack.c.h.b16 %v734
        %v792 = vunpack.c.l.b16 %v735
        %v793 = vunpack.c.h.b16 %v735
        %v794 = vunpack.c.l.b16 %v736
        %v795 = vunpack.c.h.b16 %v736
        %v796 = vunpack.c.l.b16 %v737
        %v797 = vunpack.c.h.b16 %v737
        %v798 = vunpack.c.l.b16 %v738
        %v799 = vunpack.c.h.b16 %v738
        %v800 = vunpack.c.l.b16 %v739
        %v801 = vunpack.c.h.b16 %v739
        %v802 = vunpack.c.l.b16 %v740
        %v803 = vunpack.c.h.b16 %v740
        %v804 = vunpack.c.l.b16 %v741
        %v805 = vunpack.c.h.b16 %v741
        %v806 = vunpack.c.l.b16 %v742
        %v807 = vunpack.c.h.b16 %v742
        %v808 = vunpack.c.l.b16 %v743
        %v809 = vunpack.c.h.b16 %v743
        %v810 = vunpack.c.l.b16 %v744
        %v811 = vunpack.c.h.b16 %v744
        %v812 = vunpack.c.l.b16 %v745
        %v813 = vunpack.c.h.b16 %v745
        %v814 = vunpack.c.l.b16 %v746
        %v815 = vunpack.c.h.b16 %v746
        %v816 = vunpack.c.l.b16 %v747
        %v817 = vunpack.c.h.b16 %v747
        %v818 = vunpack.c.l.b16 %v748
        %v819 = vunpack.c.h.b16 %v748
        %v820 = vunpack.c.l.b16 %v749
        %v821 = vunpack.c.h.b16 %v749
        %v822 = vpack.c.b16 %v776, %v774
        %v823 = vpack.c.b16 %v777, %v775
        %v824 = vpack.c.b16 %v780, %v778
        %v825 = vpack.c.b16 %v781, %v779
        %v826 = vpack.c.b16 %v784, %v782
        %v827 = vpack.c.b16 %v785, %v783
        %v828 = vpack.c.b16 %v788, %v786
        %v829 = vpack.c.b16 %v789, %v787
        %v830 = vpack.c.b16 %v792, %v790
        %v831 = vpack.c.b16 %v793, %v791
        %v832 = vpack.c.b16 %v796, %v794
        %v833 = vpack.c.b16 %v797, %v795
        %v834 = vpack.c.b16 %v800, %v798
        %v835 = vpack.c.b16 %v801, %v799
        %v836 = vpack.c.b16 %v804, %v802
        %v837 = vpack.c.b16 %v805, %v803
        %v838 = vpack.c.b16 %v808, %v806
        %v839 = vpack.c.b16 %v809, %v807
        %v840 = vpack.c.b16 %v812, %v810
        %v841 = vpack.c.b16 %v813, %v811
        %v842 = vpack.c.b16 %v816, %v814
        %v843 = vpack.c.b16 %v817, %v815
        %v844 = vpack.c.b16 %v820, %v818
        %v845 = vpack.c.b16 %v821, %v819
        %v871 = vsel %vm485, %v725, 0
        %873 = vmatprep.subr.bf16.mxu0 %v823
        %874 = vmatpush1.bf16.msra.mxu0 %v822
        %875 = vmatprep.subr.bf16.mxu0 %v825
        %876 = vmatpush1.bf16.msra.mxu0 %v824
        %877 = vmatprep.subr.bf16.mxu0 %v827
        %878 = vmatpush1.bf16.msra.mxu0 %v826
        %879 = vmatprep.subr.bf16.mxu0 %v829
        %880 = vmatpush1.bf16.msra.mxu0 %v828
        %881 = vmatprep.subr.bf16.mxu0 %v831
        %882 = vmatpush1.bf16.msra.mxu0 %v830
        %883 = vmatprep.subr.bf16.mxu0 %v833
        %884 = vmatpush1.bf16.msra.mxu0 %v832
        %885 = vmatprep.subr.bf16.mxu0 %v835
        %886 = vmatpush1.bf16.msra.mxu0 %v834
        %887 = vmatprep.subr.bf16.mxu0 %v837
        %888 = vmatpush1.bf16.msra.mxu0 %v836
        %889 = vmatprep.subr.bf16.mxu0 %v839
        %890 = vmatpush1.bf16.msra.mxu0 %v838
        %891 = vmatprep.subr.bf16.mxu0 %v841
        %892 = vmatpush1.bf16.msra.mxu0 %v840
        %893 = vmatprep.subr.bf16.mxu0 %v843
        %894 = vmatpush1.bf16.msra.mxu0 %v842
        %895 = vmatprep.subr.bf16.mxu0 %v845
        %896 = vmatpush1.bf16.msra.mxu0 %v844
        %897 = vmatprep.subr.bf16.mxu0 0
        %898 = vmatpush1.bf16.msra.mxu0 0
        %899 = vmatprep.subr.bf16.mxu0 0
        %900 = vmatpush1.bf16.msra.mxu0 0
        %901 = vmatprep.subr.bf16.mxu0 0
        %902 = vmatpush1.bf16.msra.mxu0 0
        %903 = vmatprep.subr.bf16.mxu0 0
        %904 = vmatpush1.bf16.msra.mxu0 0
        %905 = vmatprep.mubr.bf16.mxu0 %v669
        %906 = vmatmul.mubr.bf16.gmra.mrb[0].mxu0 %v311
        %v907 = vpop.f32.mrb[0].mxu0
        %v908 = vadd.f32 0.0, %v907
        %v909 = vpop.f32.mrb[0].mxu0
        %v910 = vadd.f32 0.0, %v909
        %v911 = vpop.f32.mrb[0].mxu0
        %v912 = vadd.f32 0.0, %v911
        %v913 = vpop.f32.mrb[0].mxu0
        %v914 = vadd.f32 0.0, %v913
        %915 = vmatprep.mubr.bf16.mxu0 %v871
        %916 = vmatmul.mubr.bf16.gmra.mrb[0].mxu0 %v724
        %v917 = vpop.f32.mrb[0].mxu0
        %v918 = vadd.f32 0.0, %v917
        %v919 = vpop.f32.mrb[0].mxu0
        %v920 = vadd.f32 0.0, %v919
        %v921 = vpop.f32.mrb[0].mxu0
        %v922 = vadd.f32 0.0, %v921
        %v923 = vpop.f32.mrb[0].mxu0
        %v924 = vadd.f32 0.0, %v923
        %925 = vdwg.mxu0
        %v926 = vadd.f32 %v706, %v908
        %v927 = vadd.f32 %v708, %v910
        %v928 = vadd.f32 %v710, %v912
        %v929 = vadd.f32 %v712, %v914
        %v930 = vadd.f32 %v716, %v918
        %v931 = vadd.f32 %v718, %v920
        %v932 = vadd.f32 %v720, %v922
        %v933 = vadd.f32 %v722, %v924
        %v936 = vrot.slane %v277, 4
        %v937 = vrot.slane %v278, 4
        %v940 = vrot.slane %v277, 5
        %v941 = vrot.slane %v278, 5
        %v944 = vsel %vm306, %v936, %v940
        %v945 = vsel %vm306, %v937, %v941
        %vm946 = vcmask 1046528
        %v947 = vsel %vm946, %v944, 0.0
        %v948 = vsel %vm946, %v945, 0.0
        %v949 = vpack.c.bf16 %v947, %v279
        %v950 = vpack.c.bf16 %v948, %v280
        %v951 = vld [vmem:[%s1 + $0x240] sm:$0xff]
        %v952 = vld [vmem:[%s1 + $0x248] sm:$0xff]
        %v953 = vld [vmem:[%s1 + $0x250] sm:$0xff]
        %v954 = vld [vmem:[%s1 + $0x258] sm:$0xff]
        %v955 = vld [vmem:[%s1 + $0x260] sm:$0xff]
        %v956 = vld [vmem:[%s1 + $0x268] sm:$0xff]
        %v957 = vld [vmem:[%s1 + $0x270] sm:$0xff]
        %v958 = vld [vmem:[%s1 + $0x278] sm:$0xff]
        %v959 = vld [vmem:[%s1 + $0x280] sm:$0xff]
        %v960 = vld [vmem:[%s1 + $0x288] sm:$0xff]
        %v961 = vld [vmem:[%s1 + $0x290] sm:$0xff]
        %v962 = vld [vmem:[%s1 + $0x298] sm:$0xff]
        %v963 = vld [vmem:[%s1 + $0x2a0] sm:$0xff]
        %v964 = vld [vmem:[%s1 + $0x2a8] sm:$0xff]
        %v965 = vld [vmem:[%s1 + $0x2b0] sm:$0xff]
        %v966 = vld [vmem:[%s1 + $0x2b8] sm:$0xff]
        %v967 = vld [vmem:[%s1 + $0x2c0] sm:$0xff]
        %v968 = vld [vmem:[%s1 + $0x2c8] sm:$0xff]
        %v969 = vld [vmem:[%s1 + $0x2d0] sm:$0xff]
        %v970 = vld [vmem:[%s1 + $0x2d8] sm:$0xff]
        %v971 = vld [vmem:[%s1 + $0x2e0] sm:$0xff]
        %v972 = vld [vmem:[%s1 + $0x2e8] sm:$0xff]
        %v973 = vld [vmem:[%s1 + $0x2f0] sm:$0xff]
        %v974 = vld [vmem:[%s1 + $0x2f8] sm:$0xff]
        %v999 = vunpack.c.l.b16 %v951
        %v1000 = vunpack.c.h.b16 %v951
        %v1001 = vunpack.c.l.b16 %v952
        %v1002 = vunpack.c.h.b16 %v952
        %v1003 = vunpack.c.l.b16 %v953
        %v1004 = vunpack.c.h.b16 %v953
        %v1005 = vunpack.c.l.b16 %v954
        %v1006 = vunpack.c.h.b16 %v954
        %v1007 = vunpack.c.l.b16 %v955
        %v1008 = vunpack.c.h.b16 %v955
        %v1009 = vunpack.c.l.b16 %v956
        %v1010 = vunpack.c.h.b16 %v956
        %v1011 = vunpack.c.l.b16 %v957
        %v1012 = vunpack.c.h.b16 %v957
        %v1013 = vunpack.c.l.b16 %v958
        %v1014 = vunpack.c.h.b16 %v958
        %v1015 = vunpack.c.l.b16 %v959
        %v1016 = vunpack.c.h.b16 %v959
        %v1017 = vunpack.c.l.b16 %v960
        %v1018 = vunpack.c.h.b16 %v960
        %v1019 = vunpack.c.l.b16 %v961
        %v1020 = vunpack.c.h.b16 %v961
        %v1021 = vunpack.c.l.b16 %v962
        %v1022 = vunpack.c.h.b16 %v962
        %v1023 = vunpack.c.l.b16 %v963
        %v1024 = vunpack.c.h.b16 %v963
        %v1025 = vunpack.c.l.b16 %v964
        %v1026 = vunpack.c.h.b16 %v964
        %v1027 = vunpack.c.l.b16 %v965
        %v1028 = vunpack.c.h.b16 %v965
        %v1029 = vunpack.c.l.b16 %v966
        %v1030 = vunpack.c.h.b16 %v966
        %v1031 = vunpack.c.l.b16 %v967
        %v1032 = vunpack.c.h.b16 %v967
        %v1033 = vunpack.c.l.b16 %v968
        %v1034 = vunpack.c.h.b16 %v968
        %v1035 = vunpack.c.l.b16 %v969
        %v1036 = vunpack.c.h.b16 %v969
        %v1037 = vunpack.c.l.b16 %v970
        %v1038 = vunpack.c.h.b16 %v970
        %v1039 = vunpack.c.l.b16 %v971
        %v1040 = vunpack.c.h.b16 %v971
        %v1041 = vunpack.c.l.b16 %v972
        %v1042 = vunpack.c.h.b16 %v972
        %v1043 = vunpack.c.l.b16 %v973
        %v1044 = vunpack.c.h.b16 %v973
        %v1045 = vunpack.c.l.b16 %v974
        %v1046 = vunpack.c.h.b16 %v974
        %v1047 = vpack.c.b16 %v1001, %v999
        %v1048 = vpack.c.b16 %v1002, %v1000
        %v1049 = vpack.c.b16 %v1005, %v1003
        %v1050 = vpack.c.b16 %v1006, %v1004
        %v1051 = vpack.c.b16 %v1009, %v1007
        %v1052 = vpack.c.b16 %v1010, %v1008
        %v1053 = vpack.c.b16 %v1013, %v1011
        %v1054 = vpack.c.b16 %v1014, %v1012
        %v1055 = vpack.c.b16 %v1017, %v1015
        %v1056 = vpack.c.b16 %v1018, %v1016
        %v1057 = vpack.c.b16 %v1021, %v1019
        %v1058 = vpack.c.b16 %v1022, %v1020
        %v1059 = vpack.c.b16 %v1025, %v1023
        %v1060 = vpack.c.b16 %v1026, %v1024
        %v1061 = vpack.c.b16 %v1029, %v1027
        %v1062 = vpack.c.b16 %v1030, %v1028
        %v1063 = vpack.c.b16 %v1033, %v1031
        %v1064 = vpack.c.b16 %v1034, %v1032
        %v1065 = vpack.c.b16 %v1037, %v1035
        %v1066 = vpack.c.b16 %v1038, %v1036
        %v1067 = vpack.c.b16 %v1041, %v1039
        %v1068 = vpack.c.b16 %v1042, %v1040
        %v1069 = vpack.c.b16 %v1045, %v1043
        %v1070 = vpack.c.b16 %v1046, %v1044
        %v1096 = vsel %vm485, %v950, 0
        %1098 = vmatprep.subr.bf16.mxu0 %v1048
        %1099 = vmatpush1.bf16.msra.mxu0 %v1047
        %1100 = vmatprep.subr.bf16.mxu0 %v1050
        %1101 = vmatpush1.bf16.msra.mxu0 %v1049
        %1102 = vmatprep.subr.bf16.mxu0 %v1052
        %1103 = vmatpush1.bf16.msra.mxu0 %v1051
        %1104 = vmatprep.subr.bf16.mxu0 %v1054
        %1105 = vmatpush1.bf16.msra.mxu0 %v1053
        %1106 = vmatprep.subr.bf16.mxu0 %v1056
        %1107 = vmatpush1.bf16.msra.mxu0 %v1055
        %1108 = vmatprep.subr.bf16.mxu0 %v1058
        %1109 = vmatpush1.bf16.msra.mxu0 %v1057
        %1110 = vmatprep.subr.bf16.mxu0 %v1060
        %1111 = vmatpush1.bf16.msra.mxu0 %v1059
        %1112 = vmatprep.subr.bf16.mxu0 %v1062
        %1113 = vmatpush1.bf16.msra.mxu0 %v1061
        %1114 = vmatprep.subr.bf16.mxu0 %v1064
        %1115 = vmatpush1.bf16.msra.mxu0 %v1063
        %1116 = vmatprep.subr.bf16.mxu0 %v1066
        %1117 = vmatpush1.bf16.msra.mxu0 %v1065
        %1118 = vmatprep.subr.bf16.mxu0 %v1068
        %1119 = vmatpush1.bf16.msra.mxu0 %v1067
        %1120 = vmatprep.subr.bf16.mxu0 %v1070
        %1121 = vmatpush1.bf16.msra.mxu0 %v1069
        %1122 = vmatprep.subr.bf16.mxu0 0
        %1123 = vmatpush1.bf16.msra.mxu0 0
        %1124 = vmatprep.subr.bf16.mxu0 0
        %1125 = vmatpush1.bf16.msra.mxu0 0
        %1126 = vmatprep.subr.bf16.mxu0 0
        %1127 = vmatpush1.bf16.msra.mxu0 0
        %1128 = vmatprep.subr.bf16.mxu0 0
        %1129 = vmatpush1.bf16.msra.mxu0 0
        %1130 = vmatprep.mubr.bf16.mxu0 %v490
        %1131 = vmatmul.mubr.bf16.gmra.mrb[0].mxu0 %v339
        %v1132 = vpop.f32.mrb[0].mxu0
        %v1133 = vadd.f32 0.0, %v1132
        %v1134 = vpop.f32.mrb[0].mxu0
        %v1135 = vadd.f32 0.0, %v1134
        %v1136 = vpop.f32.mrb[0].mxu0
        %v1137 = vadd.f32 0.0, %v1136
        %v1138 = vpop.f32.mrb[0].mxu0
        %v1139 = vadd.f32 0.0, %v1138
        %1140 = vmatprep.mubr.bf16.mxu0 %v1096
        %1141 = vmatmul.mubr.bf16.gmra.mrb[0].mxu0 %v949
        %v1142 = vpop.f32.mrb[0].mxu0
        %v1143 = vadd.f32 0.0, %v1142
        %v1144 = vpop.f32.mrb[0].mxu0
        %v1145 = vadd.f32 0.0, %v1144
        %v1146 = vpop.f32.mrb[0].mxu0
        %v1147 = vadd.f32 0.0, %v1146
        %v1148 = vpop.f32.mrb[0].mxu0
        %v1149 = vadd.f32 0.0, %v1148
        %1150 = vdwg.mxu0
        %v1151 = vadd.f32 %v926, %v1133
        %v1152 = vadd.f32 %v927, %v1135
        %v1153 = vadd.f32 %v928, %v1137
        %v1154 = vadd.f32 %v929, %v1139
        %v1155 = vadd.f32 %v930, %v1143
        %v1156 = vadd.f32 %v931, %v1145
        %v1157 = vadd.f32 %v932, %v1147
        %v1158 = vadd.f32 %v933, %v1149
        %v1159 = vmax.f32 %v1151, 0.0
        %v1160 = vmax.f32 %v1152, 0.0
        %v1161 = vmax.f32 %v1153, 0.0
        %v1162 = vmax.f32 %v1154, 0.0
        %v1163 = vmax.f32 %v1155, 0.0
        %v1164 = vmax.f32 %v1156, 0.0
        %v1165 = vmax.f32 %v1157, 0.0
        %v1166 = vmax.f32 %v1158, 0.0
        %v1169 = vrot.slane %v1165, 3
        %v1170 = vrot.slane %v1166, 3
        %v1173 = vrot.slane %v1165, 4
        %v1174 = vrot.slane %v1166, 4
        %v1177 = vsel %vm303, 0.0, %v1169
        %v1178 = vsel %vm303, 0.0, %v1170
        %v1179 = vsel %vm306, %v1177, %v1173
        %v1180 = vsel %vm306, %v1178, %v1174
        %v1181 = vpack.c.bf16 %v1163, %v1179
        %v1182 = vpack.c.bf16 %v1164, %v1180
        %v1183 = vld [vmem:[%s2] sm:$0xff]
        %v1184 = vld [vmem:[%s2 + $0x8] sm:$0xff]
        %v1185 = vld [vmem:[%s2 + $0x10] sm:$0xff]
        %v1186 = vld [vmem:[%s2 + $0x18] sm:$0xff]
        %v1187 = vld [vmem:[%s2 + $0x20] sm:$0xff]
        %v1188 = vld [vmem:[%s2 + $0x28] sm:$0xff]
        %v1189 = vld [vmem:[%s2 + $0x30] sm:$0xff]
        %v1190 = vld [vmem:[%s2 + $0x38] sm:$0xff]
        %v1191 = vld [vmem:[%s2 + $0x40] sm:$0xff]
        %v1192 = vld [vmem:[%s2 + $0x48] sm:$0xff]
        %v1193 = vld [vmem:[%s2 + $0x50] sm:$0xff]
        %v1194 = vld [vmem:[%s2 + $0x58] sm:$0xff]
        %v1195 = vld [vmem:[%s2 + $0x60] sm:$0xff]
        %v1196 = vld [vmem:[%s2 + $0x68] sm:$0xff]
        %v1197 = vld [vmem:[%s2 + $0x70] sm:$0xff]
        %v1198 = vld [vmem:[%s2 + $0x78] sm:$0xff]
        %v1199 = vld [vmem:[%s2 + $0x80] sm:$0xff]
        %v1200 = vld [vmem:[%s2 + $0x88] sm:$0xff]
        %v1201 = vld [vmem:[%s2 + $0x90] sm:$0xff]
        %v1202 = vld [vmem:[%s2 + $0x98] sm:$0xff]
        %v1203 = vld [vmem:[%s2 + $0xa0] sm:$0xff]
        %v1204 = vld [vmem:[%s2 + $0xa8] sm:$0xff]
        %v1205 = vld [vmem:[%s2 + $0xb0] sm:$0xff]
        %v1206 = vld [vmem:[%s2 + $0xb8] sm:$0xff]
        %v1207 = vld [vmem:[%s2 + $0xc0] sm:$0xff]
        %v1208 = vld [vmem:[%s2 + $0xc8] sm:$0xff]
        %v1209 = vld [vmem:[%s2 + $0xd0] sm:$0xff]
        %v1210 = vld [vmem:[%s2 + $0xd8] sm:$0xff]
        %v1211 = vld [vmem:[%s2 + $0xe0] sm:$0xff]
        %v1212 = vld [vmem:[%s2 + $0xe8] sm:$0xff]
        %v1213 = vld [vmem:[%s2 + $0xf0] sm:$0xff]
        %v1214 = vld [vmem:[%s2 + $0xf8] sm:$0xff]
        %v1215 = vpack.c.bf16 %v1161, %v1159
        %v1216 = vpack.c.bf16 %v1162, %v1160
        %v1217 = vld [vmem:[%s2 + $0x100] sm:$0xff]
        %v1218 = vld [vmem:[%s2 + $0x108] sm:$0xff]
        %v1219 = vld [vmem:[%s2 + $0x110] sm:$0xff]
        %v1220 = vld [vmem:[%s2 + $0x118] sm:$0xff]
        %v1221 = vld [vmem:[%s2 + $0x120] sm:$0xff]
        %v1222 = vld [vmem:[%s2 + $0x128] sm:$0xff]
        %v1223 = vld [vmem:[%s2 + $0x130] sm:$0xff]
        %v1224 = vld [vmem:[%s2 + $0x138] sm:$0xff]
        %v1225 = vld [vmem:[%s2 + $0x140] sm:$0xff]
        %v1226 = vld [vmem:[%s2 + $0x148] sm:$0xff]
        %v1227 = vld [vmem:[%s2 + $0x150] sm:$0xff]
        %v1228 = vld [vmem:[%s2 + $0x158] sm:$0xff]
        %v1229 = vld [vmem:[%s2 + $0x160] sm:$0xff]
        %v1230 = vld [vmem:[%s2 + $0x168] sm:$0xff]
        %v1231 = vld [vmem:[%s2 + $0x170] sm:$0xff]
        %v1232 = vld [vmem:[%s2 + $0x178] sm:$0xff]
        %v1233 = vld [vmem:[%s2 + $0x180] sm:$0xff]
        %v1234 = vld [vmem:[%s2 + $0x188] sm:$0xff]
        %v1235 = vld [vmem:[%s2 + $0x190] sm:$0xff]
        %v1236 = vld [vmem:[%s2 + $0x198] sm:$0xff]
        %v1237 = vld [vmem:[%s2 + $0x1a0] sm:$0xff]
        %v1238 = vld [vmem:[%s2 + $0x1a8] sm:$0xff]
        %v1239 = vld [vmem:[%s2 + $0x1b0] sm:$0xff]
        %v1240 = vld [vmem:[%s2 + $0x1b8] sm:$0xff]
        %v1241 = vld [vmem:[%s2 + $0x1c0] sm:$0xff]
        %v1242 = vld [vmem:[%s2 + $0x1c8] sm:$0xff]
        %v1243 = vld [vmem:[%s2 + $0x1d0] sm:$0xff]
        %v1244 = vld [vmem:[%s2 + $0x1d8] sm:$0xff]
        %v1245 = vld [vmem:[%s2 + $0x1e0] sm:$0xff]
        %v1246 = vld [vmem:[%s2 + $0x1e8] sm:$0xff]
        %v1247 = vld [vmem:[%s2 + $0x1f0] sm:$0xff]
        %v1248 = vld [vmem:[%s2 + $0x1f8] sm:$0xff]
        %v1281 = vunpack.c.l.b16 %v1217
        %v1282 = vunpack.c.h.b16 %v1217
        %v1283 = vunpack.c.l.b16 %v1218
        %v1284 = vunpack.c.h.b16 %v1218
        %v1285 = vunpack.c.l.b16 %v1219
        %v1286 = vunpack.c.h.b16 %v1219
        %v1287 = vunpack.c.l.b16 %v1220
        %v1288 = vunpack.c.h.b16 %v1220
        %v1289 = vunpack.c.l.b16 %v1221
        %v1290 = vunpack.c.h.b16 %v1221
        %v1291 = vunpack.c.l.b16 %v1222
        %v1292 = vunpack.c.h.b16 %v1222
        %v1293 = vunpack.c.l.b16 %v1223
        %v1294 = vunpack.c.h.b16 %v1223
        %v1295 = vunpack.c.l.b16 %v1224
        %v1296 = vunpack.c.h.b16 %v1224
        %v1297 = vunpack.c.l.b16 %v1225
        %v1298 = vunpack.c.h.b16 %v1225
        %v1299 = vunpack.c.l.b16 %v1226
        %v1300 = vunpack.c.h.b16 %v1226
        %v1301 = vunpack.c.l.b16 %v1227
        %v1302 = vunpack.c.h.b16 %v1227
        %v1303 = vunpack.c.l.b16 %v1228
        %v1304 = vunpack.c.h.b16 %v1228
        %v1305 = vunpack.c.l.b16 %v1229
        %v1306 = vunpack.c.h.b16 %v1229
        %v1307 = vunpack.c.l.b16 %v1230
        %v1308 = vunpack.c.h.b16 %v1230
        %v1309 = vunpack.c.l.b16 %v1231
        %v1310 = vunpack.c.h.b16 %v1231
        %v1311 = vunpack.c.l.b16 %v1232
        %v1312 = vunpack.c.h.b16 %v1232
        %v1313 = vunpack.c.l.b16 %v1233
        %v1314 = vunpack.c.h.b16 %v1233
        %v1315 = vunpack.c.l.b16 %v1234
        %v1316 = vunpack.c.h.b16 %v1234
        %v1317 = vunpack.c.l.b16 %v1235
        %v1318 = vunpack.c.h.b16 %v1235
        %v1319 = vunpack.c.l.b16 %v1236
        %v1320 = vunpack.c.h.b16 %v1236
        %v1321 = vunpack.c.l.b16 %v1237
        %v1322 = vunpack.c.h.b16 %v1237
        %v1323 = vunpack.c.l.b16 %v1238
        %v1324 = vunpack.c.h.b16 %v1238
        %v1325 = vunpack.c.l.b16 %v1239
        %v1326 = vunpack.c.h.b16 %v1239
        %v1327 = vunpack.c.l.b16 %v1240
        %v1328 = vunpack.c.h.b16 %v1240
        %v1329 = vunpack.c.l.b16 %v1241
        %v1330 = vunpack.c.h.b16 %v1241
        %v1331 = vunpack.c.l.b16 %v1242
        %v1332 = vunpack.c.h.b16 %v1242
        %v1333 = vunpack.c.l.b16 %v1243
        %v1334 = vunpack.c.h.b16 %v1243
        %v1335 = vunpack.c.l.b16 %v1244
        %v1336 = vunpack.c.h.b16 %v1244
        %v1337 = vunpack.c.l.b16 %v1245
        %v1338 = vunpack.c.h.b16 %v1245
        %v1339 = vunpack.c.l.b16 %v1246
        %v1340 = vunpack.c.h.b16 %v1246
        %v1341 = vunpack.c.l.b16 %v1247
        %v1342 = vunpack.c.h.b16 %v1247
        %v1343 = vunpack.c.l.b16 %v1248
        %v1344 = vunpack.c.h.b16 %v1248
        %v1345 = vpack.c.b16 %v1283, %v1281
        %v1346 = vpack.c.b16 %v1284, %v1282
        %v1347 = vpack.c.b16 %v1287, %v1285
        %v1348 = vpack.c.b16 %v1288, %v1286
        %v1349 = vpack.c.b16 %v1291, %v1289
        %v1350 = vpack.c.b16 %v1292, %v1290
        %v1351 = vpack.c.b16 %v1295, %v1293
        %v1352 = vpack.c.b16 %v1296, %v1294
        %v1353 = vpack.c.b16 %v1299, %v1297
        %v1354 = vpack.c.b16 %v1300, %v1298
        %v1355 = vpack.c.b16 %v1303, %v1301
        %v1356 = vpack.c.b16 %v1304, %v1302
        %v1357 = vpack.c.b16 %v1307, %v1305
        %v1358 = vpack.c.b16 %v1308, %v1306
        %v1359 = vpack.c.b16 %v1311, %v1309
        %v1360 = vpack.c.b16 %v1312, %v1310
        %v1361 = vpack.c.b16 %v1315, %v1313
        %v1362 = vpack.c.b16 %v1316, %v1314
        %v1363 = vpack.c.b16 %v1319, %v1317
        %v1364 = vpack.c.b16 %v1320, %v1318
        %v1365 = vpack.c.b16 %v1323, %v1321
        %v1366 = vpack.c.b16 %v1324, %v1322
        %v1367 = vpack.c.b16 %v1327, %v1325
        %v1368 = vpack.c.b16 %v1328, %v1326
        %v1369 = vpack.c.b16 %v1331, %v1329
        %v1370 = vpack.c.b16 %v1332, %v1330
        %v1371 = vpack.c.b16 %v1335, %v1333
        %v1372 = vpack.c.b16 %v1336, %v1334
        %v1373 = vpack.c.b16 %v1339, %v1337
        %v1374 = vpack.c.b16 %v1340, %v1338
        %v1375 = vpack.c.b16 %v1343, %v1341
        %v1376 = vpack.c.b16 %v1344, %v1342
        %1409 = vmatprep.subr.bf16.mxu0 %v1346
        %1410 = vmatpush1.bf16.msra.mxu0 %v1345
        %1411 = vmatprep.subr.bf16.mxu0 %v1348
        %1412 = vmatpush1.bf16.msra.mxu0 %v1347
        %1413 = vmatprep.subr.bf16.mxu0 %v1350
        %1414 = vmatpush1.bf16.msra.mxu0 %v1349
        %1415 = vmatprep.subr.bf16.mxu0 %v1352
        %1416 = vmatpush1.bf16.msra.mxu0 %v1351
        %1417 = vmatprep.subr.bf16.mxu0 %v1354
        %1418 = vmatpush1.bf16.msra.mxu0 %v1353
        %1419 = vmatprep.subr.bf16.mxu0 %v1356
        %1420 = vmatpush1.bf16.msra.mxu0 %v1355
        %1421 = vmatprep.subr.bf16.mxu0 %v1358
        %1422 = vmatpush1.bf16.msra.mxu0 %v1357
        %1423 = vmatprep.subr.bf16.mxu0 %v1360
        %1424 = vmatpush1.bf16.msra.mxu0 %v1359
        %1425 = vmatprep.subr.bf16.mxu0 %v1362
        %1426 = vmatpush1.bf16.msra.mxu0 %v1361
        %1427 = vmatprep.subr.bf16.mxu0 %v1364
        %1428 = vmatpush1.bf16.msra.mxu0 %v1363
        %1429 = vmatprep.subr.bf16.mxu0 %v1366
        %1430 = vmatpush1.bf16.msra.mxu0 %v1365
        %1431 = vmatprep.subr.bf16.mxu0 %v1368
        %1432 = vmatpush1.bf16.msra.mxu0 %v1367
        %1433 = vmatprep.subr.bf16.mxu0 %v1370
        %1434 = vmatpush1.bf16.msra.mxu0 %v1369
        %1435 = vmatprep.subr.bf16.mxu0 %v1372
        %1436 = vmatpush1.bf16.msra.mxu0 %v1371
        %1437 = vmatprep.subr.bf16.mxu0 %v1374
        %1438 = vmatpush1.bf16.msra.mxu0 %v1373
        %1439 = vmatprep.subr.bf16.mxu0 %v1376
        %1440 = vmatpush1.bf16.msra.mxu0 %v1375
        %1441 = vmatprep.mubr.bf16.mxu0 %v1216
        %1442 = vmatmul.mubr.bf16.gmra.mrb[0].mxu0 %v1215
        %v1443 = vpop.f32.mrb[0].mxu0
        %v1444 = vadd.f32 0.0, %v1443
        %v1445 = vpop.f32.mrb[0].mxu0
        %v1446 = vadd.f32 0.0, %v1445
        %v1447 = vpop.f32.mrb[0].mxu0
        %v1448 = vadd.f32 0.0, %v1447
        %v1449 = vpop.f32.mrb[0].mxu0
        %v1450 = vadd.f32 0.0, %v1449
        %1451 = vdwg.mxu0
        %v1484 = vunpack.c.l.b16 %v1183
        %v1485 = vunpack.c.h.b16 %v1183
        %v1486 = vunpack.c.l.b16 %v1184
        %v1487 = vunpack.c.h.b16 %v1184
        %v1488 = vunpack.c.l.b16 %v1185
        %v1489 = vunpack.c.h.b16 %v1185
        %v1490 = vunpack.c.l.b16 %v1186
        %v1491 = vunpack.c.h.b16 %v1186
        %v1492 = vunpack.c.l.b16 %v1187
        %v1493 = vunpack.c.h.b16 %v1187
        %v1494 = vunpack.c.l.b16 %v1188
        %v1495 = vunpack.c.h.b16 %v1188
        %v1496 = vunpack.c.l.b16 %v1189
        %v1497 = vunpack.c.h.b16 %v1189
        %v1498 = vunpack.c.l.b16 %v1190
        %v1499 = vunpack.c.h.b16 %v1190
        %v1500 = vunpack.c.l.b16 %v1191
        %v1501 = vunpack.c.h.b16 %v1191
        %v1502 = vunpack.c.l.b16 %v1192
        %v1503 = vunpack.c.h.b16 %v1192
        %v1504 = vunpack.c.l.b16 %v1193
        %v1505 = vunpack.c.h.b16 %v1193
        %v1506 = vunpack.c.l.b16 %v1194
        %v1507 = vunpack.c.h.b16 %v1194
        %v1508 = vunpack.c.l.b16 %v1195
        %v1509 = vunpack.c.h.b16 %v1195
        %v1510 = vunpack.c.l.b16 %v1196
        %v1511 = vunpack.c.h.b16 %v1196
        %v1512 = vunpack.c.l.b16 %v1197
        %v1513 = vunpack.c.h.b16 %v1197
        %v1514 = vunpack.c.l.b16 %v1198
        %v1515 = vunpack.c.h.b16 %v1198
        %v1516 = vunpack.c.l.b16 %v1199
        %v1517 = vunpack.c.h.b16 %v1199
        %v1518 = vunpack.c.l.b16 %v1200
        %v1519 = vunpack.c.h.b16 %v1200
        %v1520 = vunpack.c.l.b16 %v1201
        %v1521 = vunpack.c.h.b16 %v1201
        %v1522 = vunpack.c.l.b16 %v1202
        %v1523 = vunpack.c.h.b16 %v1202
        %v1524 = vunpack.c.l.b16 %v1203
        %v1525 = vunpack.c.h.b16 %v1203
        %v1526 = vunpack.c.l.b16 %v1204
        %v1527 = vunpack.c.h.b16 %v1204
        %v1528 = vunpack.c.l.b16 %v1205
        %v1529 = vunpack.c.h.b16 %v1205
        %v1530 = vunpack.c.l.b16 %v1206
        %v1531 = vunpack.c.h.b16 %v1206
        %v1532 = vunpack.c.l.b16 %v1207
        %v1533 = vunpack.c.h.b16 %v1207
        %v1534 = vunpack.c.l.b16 %v1208
        %v1535 = vunpack.c.h.b16 %v1208
        %v1536 = vunpack.c.l.b16 %v1209
        %v1537 = vunpack.c.h.b16 %v1209
        %v1538 = vunpack.c.l.b16 %v1210
        %v1539 = vunpack.c.h.b16 %v1210
        %v1540 = vunpack.c.l.b16 %v1211
        %v1541 = vunpack.c.h.b16 %v1211
        %v1542 = vunpack.c.l.b16 %v1212
        %v1543 = vunpack.c.h.b16 %v1212
        %v1544 = vunpack.c.l.b16 %v1213
        %v1545 = vunpack.c.h.b16 %v1213
        %v1546 = vunpack.c.l.b16 %v1214
        %v1547 = vunpack.c.h.b16 %v1214
        %v1548 = vpack.c.b16 %v1486, %v1484
        %v1549 = vpack.c.b16 %v1487, %v1485
        %v1550 = vpack.c.b16 %v1490, %v1488
        %v1551 = vpack.c.b16 %v1491, %v1489
        %v1552 = vpack.c.b16 %v1494, %v1492
        %v1553 = vpack.c.b16 %v1495, %v1493
        %v1554 = vpack.c.b16 %v1498, %v1496
        %v1555 = vpack.c.b16 %v1499, %v1497
        %v1556 = vpack.c.b16 %v1502, %v1500
        %v1557 = vpack.c.b16 %v1503, %v1501
        %v1558 = vpack.c.b16 %v1506, %v1504
        %v1559 = vpack.c.b16 %v1507, %v1505
        %v1560 = vpack.c.b16 %v1510, %v1508
        %v1561 = vpack.c.b16 %v1511, %v1509
        %v1562 = vpack.c.b16 %v1514, %v1512
        %v1563 = vpack.c.b16 %v1515, %v1513
        %v1564 = vpack.c.b16 %v1518, %v1516
        %v1565 = vpack.c.b16 %v1519, %v1517
        %v1566 = vpack.c.b16 %v1522, %v1520
        %v1567 = vpack.c.b16 %v1523, %v1521
        %v1568 = vpack.c.b16 %v1526, %v1524
        %v1569 = vpack.c.b16 %v1527, %v1525
        %v1570 = vpack.c.b16 %v1530, %v1528
        %v1571 = vpack.c.b16 %v1531, %v1529
        %v1572 = vpack.c.b16 %v1534, %v1532
        %v1573 = vpack.c.b16 %v1535, %v1533
        %v1574 = vpack.c.b16 %v1538, %v1536
        %v1575 = vpack.c.b16 %v1539, %v1537
        %v1576 = vpack.c.b16 %v1542, %v1540
        %v1577 = vpack.c.b16 %v1543, %v1541
        %v1578 = vpack.c.b16 %v1546, %v1544
        %v1579 = vpack.c.b16 %v1547, %v1545
        %1612 = vmatprep.subr.bf16.mxu0 %v1549
        %1613 = vmatpush1.bf16.msra.mxu0 %v1548
        %1614 = vmatprep.subr.bf16.mxu0 %v1551
        %1615 = vmatpush1.bf16.msra.mxu0 %v1550
        %1616 = vmatprep.subr.bf16.mxu0 %v1553
        %1617 = vmatpush1.bf16.msra.mxu0 %v1552
        %1618 = vmatprep.subr.bf16.mxu0 %v1555
        %1619 = vmatpush1.bf16.msra.mxu0 %v1554
        %1620 = vmatprep.subr.bf16.mxu0 %v1557
        %1621 = vmatpush1.bf16.msra.mxu0 %v1556
        %1622 = vmatprep.subr.bf16.mxu0 %v1559
        %1623 = vmatpush1.bf16.msra.mxu0 %v1558
        %1624 = vmatprep.subr.bf16.mxu0 %v1561
        %1625 = vmatpush1.bf16.msra.mxu0 %v1560
        %1626 = vmatprep.subr.bf16.mxu0 %v1563
        %1627 = vmatpush1.bf16.msra.mxu0 %v1562
        %1628 = vmatprep.subr.bf16.mxu0 %v1565
        %1629 = vmatpush1.bf16.msra.mxu0 %v1564
        %1630 = vmatprep.subr.bf16.mxu0 %v1567
        %1631 = vmatpush1.bf16.msra.mxu0 %v1566
        %1632 = vmatprep.subr.bf16.mxu0 %v1569
        %1633 = vmatpush1.bf16.msra.mxu0 %v1568
        %1634 = vmatprep.subr.bf16.mxu0 %v1571
        %1635 = vmatpush1.bf16.msra.mxu0 %v1570
        %1636 = vmatprep.subr.bf16.mxu0 %v1573
        %1637 = vmatpush1.bf16.msra.mxu0 %v1572
        %1638 = vmatprep.subr.bf16.mxu0 %v1575
        %1639 = vmatpush1.bf16.msra.mxu0 %v1574
        %1640 = vmatprep.subr.bf16.mxu0 %v1577
        %1641 = vmatpush1.bf16.msra.mxu0 %v1576
        %1642 = vmatprep.subr.bf16.mxu0 %v1579
        %1643 = vmatpush1.bf16.msra.mxu0 %v1578
        %1644 = vmatprep.mubr.bf16.mxu0 %v1182
        %1645 = vmatmul.mubr.bf16.gmra.mrb[0].mxu0 %v1181
        %v1646 = vpop.f32.mrb[0].mxu0
        %v1647 = vadd.f32 %v1444, %v1646
        %v1648 = vpop.f32.mrb[0].mxu0
        %v1649 = vadd.f32 %v1446, %v1648
        %v1650 = vpop.f32.mrb[0].mxu0
        %v1651 = vadd.f32 %v1448, %v1650
        %v1652 = vpop.f32.mrb[0].mxu0
        %v1653 = vadd.f32 %v1450, %v1652
        %1654 = vdwg.mxu0
        %v1655 = vpack.c.bf16 %v1165, %v1163
        %v1656 = vpack.c.bf16 %v1166, %v1164
        %v1657 = vld [vmem:[%s2 + $0x200] sm:$0xff]
        %v1658 = vld [vmem:[%s2 + $0x208] sm:$0xff]
        %v1659 = vld [vmem:[%s2 + $0x210] sm:$0xff]
        %v1660 = vld [vmem:[%s2 + $0x218] sm:$0xff]
        %v1661 = vld [vmem:[%s2 + $0x220] sm:$0xff]
        %v1662 = vld [vmem:[%s2 + $0x228] sm:$0xff]
        %v1663 = vld [vmem:[%s2 + $0x230] sm:$0xff]
        %v1664 = vld [vmem:[%s2 + $0x238] sm:$0xff]
        %v1665 = vld [vmem:[%s2 + $0x240] sm:$0xff]
        %v1666 = vld [vmem:[%s2 + $0x248] sm:$0xff]
        %v1667 = vld [vmem:[%s2 + $0x250] sm:$0xff]
        %v1668 = vld [vmem:[%s2 + $0x258] sm:$0xff]
        %v1669 = vld [vmem:[%s2 + $0x260] sm:$0xff]
        %v1670 = vld [vmem:[%s2 + $0x268] sm:$0xff]
        %v1671 = vld [vmem:[%s2 + $0x270] sm:$0xff]
        %v1672 = vld [vmem:[%s2 + $0x278] sm:$0xff]
        %v1673 = vld [vmem:[%s2 + $0x280] sm:$0xff]
        %v1674 = vld [vmem:[%s2 + $0x288] sm:$0xff]
        %v1675 = vld [vmem:[%s2 + $0x290] sm:$0xff]
        %v1676 = vld [vmem:[%s2 + $0x298] sm:$0xff]
        %v1677 = vld [vmem:[%s2 + $0x2a0] sm:$0xff]
        %v1678 = vld [vmem:[%s2 + $0x2a8] sm:$0xff]
        %v1679 = vld [vmem:[%s2 + $0x2b0] sm:$0xff]
        %v1680 = vld [vmem:[%s2 + $0x2b8] sm:$0xff]
        %v1681 = vld [vmem:[%s2 + $0x2c0] sm:$0xff]
        %v1682 = vld [vmem:[%s2 + $0x2c8] sm:$0xff]
        %v1683 = vld [vmem:[%s2 + $0x2d0] sm:$0xff]
        %v1684 = vld [vmem:[%s2 + $0x2d8] sm:$0xff]
        %v1685 = vld [vmem:[%s2 + $0x2e0] sm:$0xff]
        %v1686 = vld [vmem:[%s2 + $0x2e8] sm:$0xff]
        %v1687 = vld [vmem:[%s2 + $0x2f0] sm:$0xff]
        %v1688 = vld [vmem:[%s2 + $0x2f8] sm:$0xff]
        %v1721 = vunpack.c.l.b16 %v1657
        %v1722 = vunpack.c.h.b16 %v1657
        %v1723 = vunpack.c.l.b16 %v1658
        %v1724 = vunpack.c.h.b16 %v1658
        %v1725 = vunpack.c.l.b16 %v1659
        %v1726 = vunpack.c.h.b16 %v1659
        %v1727 = vunpack.c.l.b16 %v1660
        %v1728 = vunpack.c.h.b16 %v1660
        %v1729 = vunpack.c.l.b16 %v1661
        %v1730 = vunpack.c.h.b16 %v1661
        %v1731 = vunpack.c.l.b16 %v1662
        %v1732 = vunpack.c.h.b16 %v1662
        %v1733 = vunpack.c.l.b16 %v1663
        %v1734 = vunpack.c.h.b16 %v1663
        %v1735 = vunpack.c.l.b16 %v1664
        %v1736 = vunpack.c.h.b16 %v1664
        %v1737 = vunpack.c.l.b16 %v1665
        %v1738 = vunpack.c.h.b16 %v1665
        %v1739 = vunpack.c.l.b16 %v1666
        %v1740 = vunpack.c.h.b16 %v1666
        %v1741 = vunpack.c.l.b16 %v1667
        %v1742 = vunpack.c.h.b16 %v1667
        %v1743 = vunpack.c.l.b16 %v1668
        %v1744 = vunpack.c.h.b16 %v1668
        %v1745 = vunpack.c.l.b16 %v1669
        %v1746 = vunpack.c.h.b16 %v1669
        %v1747 = vunpack.c.l.b16 %v1670
        %v1748 = vunpack.c.h.b16 %v1670
        %v1749 = vunpack.c.l.b16 %v1671
        %v1750 = vunpack.c.h.b16 %v1671
        %v1751 = vunpack.c.l.b16 %v1672
        %v1752 = vunpack.c.h.b16 %v1672
        %v1753 = vunpack.c.l.b16 %v1673
        %v1754 = vunpack.c.h.b16 %v1673
        %v1755 = vunpack.c.l.b16 %v1674
        %v1756 = vunpack.c.h.b16 %v1674
        %v1757 = vunpack.c.l.b16 %v1675
        %v1758 = vunpack.c.h.b16 %v1675
        %v1759 = vunpack.c.l.b16 %v1676
        %v1760 = vunpack.c.h.b16 %v1676
        %v1761 = vunpack.c.l.b16 %v1677
        %v1762 = vunpack.c.h.b16 %v1677
        %v1763 = vunpack.c.l.b16 %v1678
        %v1764 = vunpack.c.h.b16 %v1678
        %v1765 = vunpack.c.l.b16 %v1679
        %v1766 = vunpack.c.h.b16 %v1679
        %v1767 = vunpack.c.l.b16 %v1680
        %v1768 = vunpack.c.h.b16 %v1680
        %v1769 = vunpack.c.l.b16 %v1681
        %v1770 = vunpack.c.h.b16 %v1681
        %v1771 = vunpack.c.l.b16 %v1682
        %v1772 = vunpack.c.h.b16 %v1682
        %v1773 = vunpack.c.l.b16 %v1683
        %v1774 = vunpack.c.h.b16 %v1683
        %v1775 = vunpack.c.l.b16 %v1684
        %v1776 = vunpack.c.h.b16 %v1684
        %v1777 = vunpack.c.l.b16 %v1685
        %v1778 = vunpack.c.h.b16 %v1685
        %v1779 = vunpack.c.l.b16 %v1686
        %v1780 = vunpack.c.h.b16 %v1686
        %v1781 = vunpack.c.l.b16 %v1687
        %v1782 = vunpack.c.h.b16 %v1687
        %v1783 = vunpack.c.l.b16 %v1688
        %v1784 = vunpack.c.h.b16 %v1688
        %v1785 = vpack.c.b16 %v1723, %v1721
        %v1786 = vpack.c.b16 %v1724, %v1722
        %v1787 = vpack.c.b16 %v1727, %v1725
        %v1788 = vpack.c.b16 %v1728, %v1726
        %v1789 = vpack.c.b16 %v1731, %v1729
        %v1790 = vpack.c.b16 %v1732, %v1730
        %v1791 = vpack.c.b16 %v1735, %v1733
        %v1792 = vpack.c.b16 %v1736, %v1734
        %v1793 = vpack.c.b16 %v1739, %v1737
        %v1794 = vpack.c.b16 %v1740, %v1738
        %v1795 = vpack.c.b16 %v1743, %v1741
        %v1796 = vpack.c.b16 %v1744, %v1742
        %v1797 = vpack.c.b16 %v1747, %v1745
        %v1798 = vpack.c.b16 %v1748, %v1746
        %v1799 = vpack.c.b16 %v1751, %v1749
        %v1800 = vpack.c.b16 %v1752, %v1750
        %v1801 = vpack.c.b16 %v1755, %v1753
        %v1802 = vpack.c.b16 %v1756, %v1754
        %v1803 = vpack.c.b16 %v1759, %v1757
        %v1804 = vpack.c.b16 %v1760, %v1758
        %v1805 = vpack.c.b16 %v1763, %v1761
        %v1806 = vpack.c.b16 %v1764, %v1762
        %v1807 = vpack.c.b16 %v1767, %v1765
        %v1808 = vpack.c.b16 %v1768, %v1766
        %v1809 = vpack.c.b16 %v1771, %v1769
        %v1810 = vpack.c.b16 %v1772, %v1770
        %v1811 = vpack.c.b16 %v1775, %v1773
        %v1812 = vpack.c.b16 %v1776, %v1774
        %v1813 = vpack.c.b16 %v1779, %v1777
        %v1814 = vpack.c.b16 %v1780, %v1778
        %v1815 = vpack.c.b16 %v1783, %v1781
        %v1816 = vpack.c.b16 %v1784, %v1782
        %1849 = vmatprep.subr.bf16.mxu0 %v1786
        %1850 = vmatpush1.bf16.msra.mxu0 %v1785
        %1851 = vmatprep.subr.bf16.mxu0 %v1788
        %1852 = vmatpush1.bf16.msra.mxu0 %v1787
        %1853 = vmatprep.subr.bf16.mxu0 %v1790
        %1854 = vmatpush1.bf16.msra.mxu0 %v1789
        %1855 = vmatprep.subr.bf16.mxu0 %v1792
        %1856 = vmatpush1.bf16.msra.mxu0 %v1791
        %1857 = vmatprep.subr.bf16.mxu0 %v1794
        %1858 = vmatpush1.bf16.msra.mxu0 %v1793
        %1859 = vmatprep.subr.bf16.mxu0 %v1796
        %1860 = vmatpush1.bf16.msra.mxu0 %v1795
        %1861 = vmatprep.subr.bf16.mxu0 %v1798
        %1862 = vmatpush1.bf16.msra.mxu0 %v1797
        %1863 = vmatprep.subr.bf16.mxu0 %v1800
        %1864 = vmatpush1.bf16.msra.mxu0 %v1799
        %1865 = vmatprep.subr.bf16.mxu0 %v1802
        %1866 = vmatpush1.bf16.msra.mxu0 %v1801
        %1867 = vmatprep.subr.bf16.mxu0 %v1804
        %1868 = vmatpush1.bf16.msra.mxu0 %v1803
        %1869 = vmatprep.subr.bf16.mxu0 %v1806
        %1870 = vmatpush1.bf16.msra.mxu0 %v1805
        %1871 = vmatprep.subr.bf16.mxu0 %v1808
        %1872 = vmatpush1.bf16.msra.mxu0 %v1807
        %1873 = vmatprep.subr.bf16.mxu0 %v1810
        %1874 = vmatpush1.bf16.msra.mxu0 %v1809
        %1875 = vmatprep.subr.bf16.mxu0 %v1812
        %1876 = vmatpush1.bf16.msra.mxu0 %v1811
        %1877 = vmatprep.subr.bf16.mxu0 %v1814
        %1878 = vmatpush1.bf16.msra.mxu0 %v1813
        %1879 = vmatprep.subr.bf16.mxu0 %v1816
        %1880 = vmatpush1.bf16.msra.mxu0 %v1815
        %1881 = vmatprep.mubr.bf16.mxu0 %v1656
        %1882 = vmatmul.mubr.bf16.gmra.mrb[0].mxu0 %v1655
        %v1883 = vpop.f32.mrb[0].mxu0
        %v1884 = vadd.f32 0.0, %v1883
        %v1885 = vpop.f32.mrb[0].mxu0
        %v1886 = vadd.f32 0.0, %v1885
        %v1887 = vpop.f32.mrb[0].mxu0
        %v1888 = vadd.f32 0.0, %v1887
        %v1889 = vpop.f32.mrb[0].mxu0
        %v1890 = vadd.f32 0.0, %v1889
        %1891 = vdwg.mxu0
        %v1892 = vadd.f32 %v1647, %v1884
        %v1893 = vadd.f32 %v1649, %v1886
        %v1894 = vadd.f32 %v1651, %v1888
        %v1895 = vadd.f32 %v1653, %v1890
        %v1898 = vrot.slane %v1159, 4
        %v1899 = vrot.slane %v1160, 4
        %v1902 = vrot.slane %v1159, 5
        %v1903 = vrot.slane %v1160, 5
        %v1906 = vsel %vm306, %v1898, %v1902
        %v1907 = vsel %vm306, %v1899, %v1903
        %v1908 = vsel %vm946, %v1906, 0.0
        %v1909 = vsel %vm946, %v1907, 0.0
        %v1910 = vpack.c.bf16 %v1908, %v1161
        %v1911 = vpack.c.bf16 %v1909, %v1162
        %v1912 = vld [vmem:[%s2 + $0x300] sm:$0xff]
        %v1913 = vld [vmem:[%s2 + $0x308] sm:$0xff]
        %v1914 = vld [vmem:[%s2 + $0x310] sm:$0xff]
        %v1915 = vld [vmem:[%s2 + $0x318] sm:$0xff]
        %v1916 = vld [vmem:[%s2 + $0x320] sm:$0xff]
        %v1917 = vld [vmem:[%s2 + $0x328] sm:$0xff]
        %v1918 = vld [vmem:[%s2 + $0x330] sm:$0xff]
        %v1919 = vld [vmem:[%s2 + $0x338] sm:$0xff]
        %v1920 = vld [vmem:[%s2 + $0x340] sm:$0xff]
        %v1921 = vld [vmem:[%s2 + $0x348] sm:$0xff]
        %v1922 = vld [vmem:[%s2 + $0x350] sm:$0xff]
        %v1923 = vld [vmem:[%s2 + $0x358] sm:$0xff]
        %v1924 = vld [vmem:[%s2 + $0x360] sm:$0xff]
        %v1925 = vld [vmem:[%s2 + $0x368] sm:$0xff]
        %v1926 = vld [vmem:[%s2 + $0x370] sm:$0xff]
        %v1927 = vld [vmem:[%s2 + $0x378] sm:$0xff]
        %v1928 = vld [vmem:[%s2 + $0x380] sm:$0xff]
        %v1929 = vld [vmem:[%s2 + $0x388] sm:$0xff]
        %v1930 = vld [vmem:[%s2 + $0x390] sm:$0xff]
        %v1931 = vld [vmem:[%s2 + $0x398] sm:$0xff]
        %v1932 = vld [vmem:[%s2 + $0x3a0] sm:$0xff]
        %v1933 = vld [vmem:[%s2 + $0x3a8] sm:$0xff]
        %v1934 = vld [vmem:[%s2 + $0x3b0] sm:$0xff]
        %v1935 = vld [vmem:[%s2 + $0x3b8] sm:$0xff]
        %v1936 = vld [vmem:[%s2 + $0x3c0] sm:$0xff]
        %v1937 = vld [vmem:[%s2 + $0x3c8] sm:$0xff]
        %v1938 = vld [vmem:[%s2 + $0x3d0] sm:$0xff]
        %v1939 = vld [vmem:[%s2 + $0x3d8] sm:$0xff]
        %v1940 = vld [vmem:[%s2 + $0x3e0] sm:$0xff]
        %v1941 = vld [vmem:[%s2 + $0x3e8] sm:$0xff]
        %v1942 = vld [vmem:[%s2 + $0x3f0] sm:$0xff]
        %v1943 = vld [vmem:[%s2 + $0x3f8] sm:$0xff]
        %v1976 = vunpack.c.l.b16 %v1912
        %v1977 = vunpack.c.h.b16 %v1912
        %v1978 = vunpack.c.l.b16 %v1913
        %v1979 = vunpack.c.h.b16 %v1913
        %v1980 = vunpack.c.l.b16 %v1914
        %v1981 = vunpack.c.h.b16 %v1914
        %v1982 = vunpack.c.l.b16 %v1915
        %v1983 = vunpack.c.h.b16 %v1915
        %v1984 = vunpack.c.l.b16 %v1916
        %v1985 = vunpack.c.h.b16 %v1916
        %v1986 = vunpack.c.l.b16 %v1917
        %v1987 = vunpack.c.h.b16 %v1917
        %v1988 = vunpack.c.l.b16 %v1918
        %v1989 = vunpack.c.h.b16 %v1918
        %v1990 = vunpack.c.l.b16 %v1919
        %v1991 = vunpack.c.h.b16 %v1919
        %v1992 = vunpack.c.l.b16 %v1920
        %v1993 = vunpack.c.h.b16 %v1920
        %v1994 = vunpack.c.l.b16 %v1921
        %v1995 = vunpack.c.h.b16 %v1921
        %v1996 = vunpack.c.l.b16 %v1922
        %v1997 = vunpack.c.h.b16 %v1922
        %v1998 = vunpack.c.l.b16 %v1923
        %v1999 = vunpack.c.h.b16 %v1923
        %v2000 = vunpack.c.l.b16 %v1924
        %v2001 = vunpack.c.h.b16 %v1924
        %v2002 = vunpack.c.l.b16 %v1925
        %v2003 = vunpack.c.h.b16 %v1925
        %v2004 = vunpack.c.l.b16 %v1926
        %v2005 = vunpack.c.h.b16 %v1926
        %v2006 = vunpack.c.l.b16 %v1927
        %v2007 = vunpack.c.h.b16 %v1927
        %v2008 = vunpack.c.l.b16 %v1928
        %v2009 = vunpack.c.h.b16 %v1928
        %v2010 = vunpack.c.l.b16 %v1929
        %v2011 = vunpack.c.h.b16 %v1929
        %v2012 = vunpack.c.l.b16 %v1930
        %v2013 = vunpack.c.h.b16 %v1930
        %v2014 = vunpack.c.l.b16 %v1931
        %v2015 = vunpack.c.h.b16 %v1931
        %v2016 = vunpack.c.l.b16 %v1932
        %v2017 = vunpack.c.h.b16 %v1932
        %v2018 = vunpack.c.l.b16 %v1933
        %v2019 = vunpack.c.h.b16 %v1933
        %v2020 = vunpack.c.l.b16 %v1934
        %v2021 = vunpack.c.h.b16 %v1934
        %v2022 = vunpack.c.l.b16 %v1935
        %v2023 = vunpack.c.h.b16 %v1935
        %v2024 = vunpack.c.l.b16 %v1936
        %v2025 = vunpack.c.h.b16 %v1936
        %v2026 = vunpack.c.l.b16 %v1937
        %v2027 = vunpack.c.h.b16 %v1937
        %v2028 = vunpack.c.l.b16 %v1938
        %v2029 = vunpack.c.h.b16 %v1938
        %v2030 = vunpack.c.l.b16 %v1939
        %v2031 = vunpack.c.h.b16 %v1939
        %v2032 = vunpack.c.l.b16 %v1940
        %v2033 = vunpack.c.h.b16 %v1940
        %v2034 = vunpack.c.l.b16 %v1941
        %v2035 = vunpack.c.h.b16 %v1941
        %v2036 = vunpack.c.l.b16 %v1942
        %v2037 = vunpack.c.h.b16 %v1942
        %v2038 = vunpack.c.l.b16 %v1943
        %v2039 = vunpack.c.h.b16 %v1943
        %v2040 = vpack.c.b16 %v1978, %v1976
        %v2041 = vpack.c.b16 %v1979, %v1977
        %v2042 = vpack.c.b16 %v1982, %v1980
        %v2043 = vpack.c.b16 %v1983, %v1981
        %v2044 = vpack.c.b16 %v1986, %v1984
        %v2045 = vpack.c.b16 %v1987, %v1985
        %v2046 = vpack.c.b16 %v1990, %v1988
        %v2047 = vpack.c.b16 %v1991, %v1989
        %v2048 = vpack.c.b16 %v1994, %v1992
        %v2049 = vpack.c.b16 %v1995, %v1993
        %v2050 = vpack.c.b16 %v1998, %v1996
        %v2051 = vpack.c.b16 %v1999, %v1997
        %v2052 = vpack.c.b16 %v2002, %v2000
        %v2053 = vpack.c.b16 %v2003, %v2001
        %v2054 = vpack.c.b16 %v2006, %v2004
        %v2055 = vpack.c.b16 %v2007, %v2005
        %v2056 = vpack.c.b16 %v2010, %v2008
        %v2057 = vpack.c.b16 %v2011, %v2009
        %v2058 = vpack.c.b16 %v2014, %v2012
        %v2059 = vpack.c.b16 %v2015, %v2013
        %v2060 = vpack.c.b16 %v2018, %v2016
        %v2061 = vpack.c.b16 %v2019, %v2017
        %v2062 = vpack.c.b16 %v2022, %v2020
        %v2063 = vpack.c.b16 %v2023, %v2021
        %v2064 = vpack.c.b16 %v2026, %v2024
        %v2065 = vpack.c.b16 %v2027, %v2025
        %v2066 = vpack.c.b16 %v2030, %v2028
        %v2067 = vpack.c.b16 %v2031, %v2029
        %v2068 = vpack.c.b16 %v2034, %v2032
        %v2069 = vpack.c.b16 %v2035, %v2033
        %v2070 = vpack.c.b16 %v2038, %v2036
        %v2071 = vpack.c.b16 %v2039, %v2037
        %2104 = vmatprep.subr.bf16.mxu0 %v2041
        %2105 = vmatpush1.bf16.msra.mxu0 %v2040
        %2106 = vmatprep.subr.bf16.mxu0 %v2043
        %2107 = vmatpush1.bf16.msra.mxu0 %v2042
        %2108 = vmatprep.subr.bf16.mxu0 %v2045
        %2109 = vmatpush1.bf16.msra.mxu0 %v2044
        %2110 = vmatprep.subr.bf16.mxu0 %v2047
        %2111 = vmatpush1.bf16.msra.mxu0 %v2046
        %2112 = vmatprep.subr.bf16.mxu0 %v2049
        %2113 = vmatpush1.bf16.msra.mxu0 %v2048
        %2114 = vmatprep.subr.bf16.mxu0 %v2051
        %2115 = vmatpush1.bf16.msra.mxu0 %v2050
        %2116 = vmatprep.subr.bf16.mxu0 %v2053
        %2117 = vmatpush1.bf16.msra.mxu0 %v2052
        %2118 = vmatprep.subr.bf16.mxu0 %v2055
        %2119 = vmatpush1.bf16.msra.mxu0 %v2054
        %2120 = vmatprep.subr.bf16.mxu0 %v2057
        %2121 = vmatpush1.bf16.msra.mxu0 %v2056
        %2122 = vmatprep.subr.bf16.mxu0 %v2059
        %2123 = vmatpush1.bf16.msra.mxu0 %v2058
        %2124 = vmatprep.subr.bf16.mxu0 %v2061
        %2125 = vmatpush1.bf16.msra.mxu0 %v2060
        %2126 = vmatprep.subr.bf16.mxu0 %v2063
        %2127 = vmatpush1.bf16.msra.mxu0 %v2062
        %2128 = vmatprep.subr.bf16.mxu0 %v2065
        %2129 = vmatpush1.bf16.msra.mxu0 %v2064
        %2130 = vmatprep.subr.bf16.mxu0 %v2067
        %2131 = vmatpush1.bf16.msra.mxu0 %v2066
        %2132 = vmatprep.subr.bf16.mxu0 %v2069
        %2133 = vmatpush1.bf16.msra.mxu0 %v2068
        %2134 = vmatprep.subr.bf16.mxu0 %v2071
        %2135 = vmatpush1.bf16.msra.mxu0 %v2070
        %2136 = vmatprep.mubr.bf16.mxu0 %v1911
        %2137 = vmatmul.mubr.bf16.gmra.mrb[0].mxu0 %v1910
        %v2138 = vpop.f32.mrb[0].mxu0
        %v2139 = vadd.f32 0.0, %v2138
        %v2140 = vpop.f32.mrb[0].mxu0
        %v2141 = vadd.f32 0.0, %v2140
        %v2142 = vpop.f32.mrb[0].mxu0
        %v2143 = vadd.f32 0.0, %v2142
        %v2144 = vpop.f32.mrb[0].mxu0
        %v2145 = vadd.f32 0.0, %v2144
        %2146 = vdwg.mxu0
        %v2147 = vadd.f32 %v1892, %v2139
        %v2148 = vadd.f32 %v1893, %v2141
        %v2149 = vadd.f32 %v1894, %v2143
        %v2150 = vadd.f32 %v1895, %v2145
        %v2151 = vmax.f32 %v2147, 0.0
        %v2152 = vmax.f32 %v2148, 0.0
        %v2153 = vmax.f32 %v2149, 0.0
        %v2154 = vmax.f32 %v2150, 0.0
        %v2157 = vrot.slane %v2153, 3
        %v2158 = vrot.slane %v2154, 3
        %v2161 = vrot.slane %v2153, 4
        %v2162 = vrot.slane %v2154, 4
        %v2165 = vsel %vm303, 0.0, %v2157
        %v2166 = vsel %vm303, 0.0, %v2158
        %v2167 = vsel %vm306, %v2165, %v2161
        %v2168 = vsel %vm306, %v2166, %v2162
        %v2169 = vpack.c.bf16 %v2167, %v2167
        %v2170 = vpack.c.bf16 %v2168, %v2168
        %v2171 = vld [vmem:[%s3] sm:$0xff]
        %v2172 = vld [vmem:[%s3 + $0x8] sm:$0xff]
        %v2173 = vld [vmem:[%s3 + $0x10] sm:$0xff]
        %v2174 = vld [vmem:[%s3 + $0x18] sm:$0xff]
        %v2175 = vld [vmem:[%s3 + $0x20] sm:$0xff]
        %v2176 = vld [vmem:[%s3 + $0x28] sm:$0xff]
        %v2177 = vld [vmem:[%s3 + $0x30] sm:$0xff]
        %v2178 = vld [vmem:[%s3 + $0x38] sm:$0xff]
        %v2179 = vld [vmem:[%s3 + $0x40] sm:$0xff]
        %v2180 = vld [vmem:[%s3 + $0x48] sm:$0xff]
        %v2181 = vld [vmem:[%s3 + $0x50] sm:$0xff]
        %v2182 = vld [vmem:[%s3 + $0x58] sm:$0xff]
        %v2183 = vld [vmem:[%s3 + $0x60] sm:$0xff]
        %v2184 = vld [vmem:[%s3 + $0x68] sm:$0xff]
        %v2185 = vld [vmem:[%s3 + $0x70] sm:$0xff]
        %v2186 = vld [vmem:[%s3 + $0x78] sm:$0xff]
        %v2187 = vld [vmem:[%s3 + $0x80] sm:$0xff]
        %v2188 = vld [vmem:[%s3 + $0x88] sm:$0xff]
        %v2189 = vld [vmem:[%s3 + $0x90] sm:$0xff]
        %v2190 = vld [vmem:[%s3 + $0x98] sm:$0xff]
        %v2191 = vld [vmem:[%s3 + $0xa0] sm:$0xff]
        %v2192 = vld [vmem:[%s3 + $0xa8] sm:$0xff]
        %v2193 = vld [vmem:[%s3 + $0xb0] sm:$0xff]
        %v2194 = vld [vmem:[%s3 + $0xb8] sm:$0xff]
        %v2195 = vld [vmem:[%s3 + $0xc0] sm:$0xff]
        %v2196 = vld [vmem:[%s3 + $0xc8] sm:$0xff]
        %v2197 = vld [vmem:[%s3 + $0xd0] sm:$0xff]
        %v2198 = vld [vmem:[%s3 + $0xd8] sm:$0xff]
        %v2199 = vld [vmem:[%s3 + $0xe0] sm:$0xff]
        %v2200 = vld [vmem:[%s3 + $0xe8] sm:$0xff]
        %v2201 = vld [vmem:[%s3 + $0xf0] sm:$0xff]
        %v2202 = vld [vmem:[%s3 + $0xf8] sm:$0xff]
        %v2203 = vpack.c.bf16 %v2151, %v2151
        %v2204 = vpack.c.bf16 %v2152, %v2152
        %v2205 = vld [vmem:[%s3 + $0x100] sm:$0xff]
        %v2206 = vld [vmem:[%s3 + $0x108] sm:$0xff]
        %v2207 = vld [vmem:[%s3 + $0x110] sm:$0xff]
        %v2208 = vld [vmem:[%s3 + $0x118] sm:$0xff]
        %v2209 = vld [vmem:[%s3 + $0x120] sm:$0xff]
        %v2210 = vld [vmem:[%s3 + $0x128] sm:$0xff]
        %v2211 = vld [vmem:[%s3 + $0x130] sm:$0xff]
        %v2212 = vld [vmem:[%s3 + $0x138] sm:$0xff]
        %v2213 = vld [vmem:[%s3 + $0x140] sm:$0xff]
        %v2214 = vld [vmem:[%s3 + $0x148] sm:$0xff]
        %v2215 = vld [vmem:[%s3 + $0x150] sm:$0xff]
        %v2216 = vld [vmem:[%s3 + $0x158] sm:$0xff]
        %v2217 = vld [vmem:[%s3 + $0x160] sm:$0xff]
        %v2218 = vld [vmem:[%s3 + $0x168] sm:$0xff]
        %v2219 = vld [vmem:[%s3 + $0x170] sm:$0xff]
        %v2220 = vld [vmem:[%s3 + $0x178] sm:$0xff]
        %v2221 = vld [vmem:[%s3 + $0x180] sm:$0xff]
        %v2222 = vld [vmem:[%s3 + $0x188] sm:$0xff]
        %v2223 = vld [vmem:[%s3 + $0x190] sm:$0xff]
        %v2224 = vld [vmem:[%s3 + $0x198] sm:$0xff]
        %v2225 = vld [vmem:[%s3 + $0x1a0] sm:$0xff]
        %v2226 = vld [vmem:[%s3 + $0x1a8] sm:$0xff]
        %v2227 = vld [vmem:[%s3 + $0x1b0] sm:$0xff]
        %v2228 = vld [vmem:[%s3 + $0x1b8] sm:$0xff]
        %v2229 = vld [vmem:[%s3 + $0x1c0] sm:$0xff]
        %v2230 = vld [vmem:[%s3 + $0x1c8] sm:$0xff]
        %v2231 = vld [vmem:[%s3 + $0x1d0] sm:$0xff]
        %v2232 = vld [vmem:[%s3 + $0x1d8] sm:$0xff]
        %v2233 = vld [vmem:[%s3 + $0x1e0] sm:$0xff]
        %v2234 = vld [vmem:[%s3 + $0x1e8] sm:$0xff]
        %v2235 = vld [vmem:[%s3 + $0x1f0] sm:$0xff]
        %v2236 = vld [vmem:[%s3 + $0x1f8] sm:$0xff]
        %v2269 = vunpack.c.l.b16 %v2205
        %v2270 = vunpack.c.h.b16 %v2205
        %v2271 = vunpack.c.l.b16 %v2206
        %v2272 = vunpack.c.h.b16 %v2206
        %v2273 = vunpack.c.l.b16 %v2207
        %v2274 = vunpack.c.h.b16 %v2207
        %v2275 = vunpack.c.l.b16 %v2208
        %v2276 = vunpack.c.h.b16 %v2208
        %v2277 = vunpack.c.l.b16 %v2209
        %v2278 = vunpack.c.h.b16 %v2209
        %v2279 = vunpack.c.l.b16 %v2210
        %v2280 = vunpack.c.h.b16 %v2210
        %v2281 = vunpack.c.l.b16 %v2211
        %v2282 = vunpack.c.h.b16 %v2211
        %v2283 = vunpack.c.l.b16 %v2212
        %v2284 = vunpack.c.h.b16 %v2212
        %v2285 = vunpack.c.l.b16 %v2213
        %v2286 = vunpack.c.h.b16 %v2213
        %v2287 = vunpack.c.l.b16 %v2214
        %v2288 = vunpack.c.h.b16 %v2214
        %v2289 = vunpack.c.l.b16 %v2215
        %v2290 = vunpack.c.h.b16 %v2215
        %v2291 = vunpack.c.l.b16 %v2216
        %v2292 = vunpack.c.h.b16 %v2216
        %v2293 = vunpack.c.l.b16 %v2217
        %v2294 = vunpack.c.h.b16 %v2217
        %v2295 = vunpack.c.l.b16 %v2218
        %v2296 = vunpack.c.h.b16 %v2218
        %v2297 = vunpack.c.l.b16 %v2219
        %v2298 = vunpack.c.h.b16 %v2219
        %v2299 = vunpack.c.l.b16 %v2220
        %v2300 = vunpack.c.h.b16 %v2220
        %v2301 = vunpack.c.l.b16 %v2221
        %v2302 = vunpack.c.h.b16 %v2221
        %v2303 = vunpack.c.l.b16 %v2222
        %v2304 = vunpack.c.h.b16 %v2222
        %v2305 = vunpack.c.l.b16 %v2223
        %v2306 = vunpack.c.h.b16 %v2223
        %v2307 = vunpack.c.l.b16 %v2224
        %v2308 = vunpack.c.h.b16 %v2224
        %v2309 = vunpack.c.l.b16 %v2225
        %v2310 = vunpack.c.h.b16 %v2225
        %v2311 = vunpack.c.l.b16 %v2226
        %v2312 = vunpack.c.h.b16 %v2226
        %v2313 = vunpack.c.l.b16 %v2227
        %v2314 = vunpack.c.h.b16 %v2227
        %v2315 = vunpack.c.l.b16 %v2228
        %v2316 = vunpack.c.h.b16 %v2228
        %v2317 = vunpack.c.l.b16 %v2229
        %v2318 = vunpack.c.h.b16 %v2229
        %v2319 = vunpack.c.l.b16 %v2230
        %v2320 = vunpack.c.h.b16 %v2230
        %v2321 = vunpack.c.l.b16 %v2231
        %v2322 = vunpack.c.h.b16 %v2231
        %v2323 = vunpack.c.l.b16 %v2232
        %v2324 = vunpack.c.h.b16 %v2232
        %v2325 = vunpack.c.l.b16 %v2233
        %v2326 = vunpack.c.h.b16 %v2233
        %v2327 = vunpack.c.l.b16 %v2234
        %v2328 = vunpack.c.h.b16 %v2234
        %v2329 = vunpack.c.l.b16 %v2235
        %v2330 = vunpack.c.h.b16 %v2235
        %v2331 = vunpack.c.l.b16 %v2236
        %v2332 = vunpack.c.h.b16 %v2236
        %v2333 = vpack.c.b16 %v2271, %v2269
        %v2334 = vpack.c.b16 %v2272, %v2270
        %v2335 = vpack.c.b16 %v2275, %v2273
        %v2336 = vpack.c.b16 %v2276, %v2274
        %v2337 = vpack.c.b16 %v2279, %v2277
        %v2338 = vpack.c.b16 %v2280, %v2278
        %v2339 = vpack.c.b16 %v2283, %v2281
        %v2340 = vpack.c.b16 %v2284, %v2282
        %v2341 = vpack.c.b16 %v2287, %v2285
        %v2342 = vpack.c.b16 %v2288, %v2286
        %v2343 = vpack.c.b16 %v2291, %v2289
        %v2344 = vpack.c.b16 %v2292, %v2290
        %v2345 = vpack.c.b16 %v2295, %v2293
        %v2346 = vpack.c.b16 %v2296, %v2294
        %v2347 = vpack.c.b16 %v2299, %v2297
        %v2348 = vpack.c.b16 %v2300, %v2298
        %v2349 = vpack.c.b16 %v2303, %v2301
        %v2350 = vpack.c.b16 %v2304, %v2302
        %v2351 = vpack.c.b16 %v2307, %v2305
        %v2352 = vpack.c.b16 %v2308, %v2306
        %v2353 = vpack.c.b16 %v2311, %v2309
        %v2354 = vpack.c.b16 %v2312, %v2310
        %v2355 = vpack.c.b16 %v2315, %v2313
        %v2356 = vpack.c.b16 %v2316, %v2314
        %v2357 = vpack.c.b16 %v2319, %v2317
        %v2358 = vpack.c.b16 %v2320, %v2318
        %v2359 = vpack.c.b16 %v2323, %v2321
        %v2360 = vpack.c.b16 %v2324, %v2322
        %v2361 = vpack.c.b16 %v2327, %v2325
        %v2362 = vpack.c.b16 %v2328, %v2326
        %v2363 = vpack.c.b16 %v2331, %v2329
        %v2364 = vpack.c.b16 %v2332, %v2330
        %2397 = vmatprep.subr.bf16.mxu0 %v2334
        %2398 = vmatpush1.bf16.msra.mxu0 %v2333
        %2399 = vmatprep.subr.bf16.mxu0 %v2336
        %2400 = vmatpush1.bf16.msra.mxu0 %v2335
        %2401 = vmatprep.subr.bf16.mxu0 %v2338
        %2402 = vmatpush1.bf16.msra.mxu0 %v2337
        %2403 = vmatprep.subr.bf16.mxu0 %v2340
        %2404 = vmatpush1.bf16.msra.mxu0 %v2339
        %2405 = vmatprep.subr.bf16.mxu0 %v2342
        %2406 = vmatpush1.bf16.msra.mxu0 %v2341
        %2407 = vmatprep.subr.bf16.mxu0 %v2344
        %2408 = vmatpush1.bf16.msra.mxu0 %v2343
        %2409 = vmatprep.subr.bf16.mxu0 %v2346
        %2410 = vmatpush1.bf16.msra.mxu0 %v2345
        %2411 = vmatprep.subr.bf16.mxu0 %v2348
        %2412 = vmatpush1.bf16.msra.mxu0 %v2347
        %2413 = vmatprep.subr.bf16.mxu0 %v2350
        %2414 = vmatpush1.bf16.msra.mxu0 %v2349
        %2415 = vmatprep.subr.bf16.mxu0 %v2352
        %2416 = vmatpush1.bf16.msra.mxu0 %v2351
        %2417 = vmatprep.subr.bf16.mxu0 %v2354
        %2418 = vmatpush1.bf16.msra.mxu0 %v2353
        %2419 = vmatprep.subr.bf16.mxu0 %v2356
        %2420 = vmatpush1.bf16.msra.mxu0 %v2355
        %2421 = vmatprep.subr.bf16.mxu0 %v2358
        %2422 = vmatpush1.bf16.msra.mxu0 %v2357
        %2423 = vmatprep.subr.bf16.mxu0 %v2360
        %2424 = vmatpush1.bf16.msra.mxu0 %v2359
        %2425 = vmatprep.subr.bf16.mxu0 %v2362
        %2426 = vmatpush1.bf16.msra.mxu0 %v2361
        %2427 = vmatprep.subr.bf16.mxu0 %v2364
        %2428 = vmatpush1.bf16.msra.mxu0 %v2363
        %2429 = vmatprep.mubr.bf16.mxu0 %v2204
        %2430 = vmatmul.mubr.bf16.gmra.mrb[0].mxu0 %v2203
        %v2431 = vpop.f32.mrb[0].mxu0
        %v2432 = vadd.f32 0.0, %v2431
        %v2433 = vpop.f32.mrb[0].mxu0
        %v2434 = vadd.f32 0.0, %v2433
        %v2435 = vpop.f32.mrb[0].mxu0
        %v2436 = vpop.f32.mrb[0].mxu0
        %2437 = vdwg.mxu0
        %v2470 = vunpack.c.l.b16 %v2171
        %v2471 = vunpack.c.h.b16 %v2171
        %v2472 = vunpack.c.l.b16 %v2172
        %v2473 = vunpack.c.h.b16 %v2172
        %v2474 = vunpack.c.l.b16 %v2173
        %v2475 = vunpack.c.h.b16 %v2173
        %v2476 = vunpack.c.l.b16 %v2174
        %v2477 = vunpack.c.h.b16 %v2174
        %v2478 = vunpack.c.l.b16 %v2175
        %v2479 = vunpack.c.h.b16 %v2175
        %v2480 = vunpack.c.l.b16 %v2176
        %v2481 = vunpack.c.h.b16 %v2176
        %v2482 = vunpack.c.l.b16 %v2177
        %v2483 = vunpack.c.h.b16 %v2177
        %v2484 = vunpack.c.l.b16 %v2178
        %v2485 = vunpack.c.h.b16 %v2178
        %v2486 = vunpack.c.l.b16 %v2179
        %v2487 = vunpack.c.h.b16 %v2179
        %v2488 = vunpack.c.l.b16 %v2180
        %v2489 = vunpack.c.h.b16 %v2180
        %v2490 = vunpack.c.l.b16 %v2181
        %v2491 = vunpack.c.h.b16 %v2181
        %v2492 = vunpack.c.l.b16 %v2182
        %v2493 = vunpack.c.h.b16 %v2182
        %v2494 = vunpack.c.l.b16 %v2183
        %v2495 = vunpack.c.h.b16 %v2183
        %v2496 = vunpack.c.l.b16 %v2184
        %v2497 = vunpack.c.h.b16 %v2184
        %v2498 = vunpack.c.l.b16 %v2185
        %v2499 = vunpack.c.h.b16 %v2185
        %v2500 = vunpack.c.l.b16 %v2186
        %v2501 = vunpack.c.h.b16 %v2186
        %v2502 = vunpack.c.l.b16 %v2187
        %v2503 = vunpack.c.h.b16 %v2187
        %v2504 = vunpack.c.l.b16 %v2188
        %v2505 = vunpack.c.h.b16 %v2188
        %v2506 = vunpack.c.l.b16 %v2189
        %v2507 = vunpack.c.h.b16 %v2189
        %v2508 = vunpack.c.l.b16 %v2190
        %v2509 = vunpack.c.h.b16 %v2190
        %v2510 = vunpack.c.l.b16 %v2191
        %v2511 = vunpack.c.h.b16 %v2191
        %v2512 = vunpack.c.l.b16 %v2192
        %v2513 = vunpack.c.h.b16 %v2192
        %v2514 = vunpack.c.l.b16 %v2193
        %v2515 = vunpack.c.h.b16 %v2193
        %v2516 = vunpack.c.l.b16 %v2194
        %v2517 = vunpack.c.h.b16 %v2194
        %v2518 = vunpack.c.l.b16 %v2195
        %v2519 = vunpack.c.h.b16 %v2195
        %v2520 = vunpack.c.l.b16 %v2196
        %v2521 = vunpack.c.h.b16 %v2196
        %v2522 = vunpack.c.l.b16 %v2197
        %v2523 = vunpack.c.h.b16 %v2197
        %v2524 = vunpack.c.l.b16 %v2198
        %v2525 = vunpack.c.h.b16 %v2198
        %v2526 = vunpack.c.l.b16 %v2199
        %v2527 = vunpack.c.h.b16 %v2199
        %v2528 = vunpack.c.l.b16 %v2200
        %v2529 = vunpack.c.h.b16 %v2200
        %v2530 = vunpack.c.l.b16 %v2201
        %v2531 = vunpack.c.h.b16 %v2201
        %v2532 = vunpack.c.l.b16 %v2202
        %v2533 = vunpack.c.h.b16 %v2202
        %v2534 = vpack.c.b16 %v2472, %v2470
        %v2535 = vpack.c.b16 %v2473, %v2471
        %v2536 = vpack.c.b16 %v2476, %v2474
        %v2537 = vpack.c.b16 %v2477, %v2475
        %v2538 = vpack.c.b16 %v2480, %v2478
        %v2539 = vpack.c.b16 %v2481, %v2479
        %v2540 = vpack.c.b16 %v2484, %v2482
        %v2541 = vpack.c.b16 %v2485, %v2483
        %v2542 = vpack.c.b16 %v2488, %v2486
        %v2543 = vpack.c.b16 %v2489, %v2487
        %v2544 = vpack.c.b16 %v2492, %v2490
        %v2545 = vpack.c.b16 %v2493, %v2491
        %v2546 = vpack.c.b16 %v2496, %v2494
        %v2547 = vpack.c.b16 %v2497, %v2495
        %v2548 = vpack.c.b16 %v2500, %v2498
        %v2549 = vpack.c.b16 %v2501, %v2499
        %v2550 = vpack.c.b16 %v2504, %v2502
        %v2551 = vpack.c.b16 %v2505, %v2503
        %v2552 = vpack.c.b16 %v2508, %v2506
        %v2553 = vpack.c.b16 %v2509, %v2507
        %v2554 = vpack.c.b16 %v2512, %v2510
        %v2555 = vpack.c.b16 %v2513, %v2511
        %v2556 = vpack.c.b16 %v2516, %v2514
        %v2557 = vpack.c.b16 %v2517, %v2515
        %v2558 = vpack.c.b16 %v2520, %v2518
        %v2559 = vpack.c.b16 %v2521, %v2519
        %v2560 = vpack.c.b16 %v2524, %v2522
        %v2561 = vpack.c.b16 %v2525, %v2523
        %v2562 = vpack.c.b16 %v2528, %v2526
        %v2563 = vpack.c.b16 %v2529, %v2527
        %v2564 = vpack.c.b16 %v2532, %v2530
        %v2565 = vpack.c.b16 %v2533, %v2531
        %2598 = vmatprep.subr.bf16.mxu0 %v2535
        %2599 = vmatpush1.bf16.msra.mxu0 %v2534
        %2600 = vmatprep.subr.bf16.mxu0 %v2537
        %2601 = vmatpush1.bf16.msra.mxu0 %v2536
        %2602 = vmatprep.subr.bf16.mxu0 %v2539
        %2603 = vmatpush1.bf16.msra.mxu0 %v2538
        %2604 = vmatprep.subr.bf16.mxu0 %v2541
        %2605 = vmatpush1.bf16.msra.mxu0 %v2540
        %2606 = vmatprep.subr.bf16.mxu0 %v2543
        %2607 = vmatpush1.bf16.msra.mxu0 %v2542
        %2608 = vmatprep.subr.bf16.mxu0 %v2545
        %2609 = vmatpush1.bf16.msra.mxu0 %v2544
        %2610 = vmatprep.subr.bf16.mxu0 %v2547
        %2611 = vmatpush1.bf16.msra.mxu0 %v2546
        %2612 = vmatprep.subr.bf16.mxu0 %v2549
        %2613 = vmatpush1.bf16.msra.mxu0 %v2548
        %2614 = vmatprep.subr.bf16.mxu0 %v2551
        %2615 = vmatpush1.bf16.msra.mxu0 %v2550
        %2616 = vmatprep.subr.bf16.mxu0 %v2553
        %2617 = vmatpush1.bf16.msra.mxu0 %v2552
        %2618 = vmatprep.subr.bf16.mxu0 %v2555
        %2619 = vmatpush1.bf16.msra.mxu0 %v2554
        %2620 = vmatprep.subr.bf16.mxu0 %v2557
        %2621 = vmatpush1.bf16.msra.mxu0 %v2556
        %2622 = vmatprep.subr.bf16.mxu0 %v2559
        %2623 = vmatpush1.bf16.msra.mxu0 %v2558
        %2624 = vmatprep.subr.bf16.mxu0 %v2561
        %2625 = vmatpush1.bf16.msra.mxu0 %v2560
        %2626 = vmatprep.subr.bf16.mxu0 %v2563
        %2627 = vmatpush1.bf16.msra.mxu0 %v2562
        %2628 = vmatprep.subr.bf16.mxu0 %v2565
        %2629 = vmatpush1.bf16.msra.mxu0 %v2564
        %2630 = vmatprep.mubr.bf16.mxu0 %v2170
        %2631 = vmatmul.mubr.bf16.gmra.mrb[0].mxu0 %v2169
        %v2632 = vpop.f32.mrb[0].mxu0
        %v2633 = vadd.f32 %v2432, %v2632
        %v2634 = vpop.f32.mrb[0].mxu0
        %v2635 = vadd.f32 %v2434, %v2634
        %v2636 = vpop.f32.mrb[0].mxu0
        %v2637 = vpop.f32.mrb[0].mxu0
        %2638 = vdwg.mxu0
        %v2639 = vpack.c.bf16 %v2153, %v2153
        %v2640 = vpack.c.bf16 %v2154, %v2154
        %v2641 = vld [vmem:[%s3 + $0x200] sm:$0xff]
        %v2642 = vld [vmem:[%s3 + $0x208] sm:$0xff]
        %v2643 = vld [vmem:[%s3 + $0x210] sm:$0xff]
        %v2644 = vld [vmem:[%s3 + $0x218] sm:$0xff]
        %v2645 = vld [vmem:[%s3 + $0x220] sm:$0xff]
        %v2646 = vld [vmem:[%s3 + $0x228] sm:$0xff]
        %v2647 = vld [vmem:[%s3 + $0x230] sm:$0xff]
        %v2648 = vld [vmem:[%s3 + $0x238] sm:$0xff]
        %v2649 = vld [vmem:[%s3 + $0x240] sm:$0xff]
        %v2650 = vld [vmem:[%s3 + $0x248] sm:$0xff]
        %v2651 = vld [vmem:[%s3 + $0x250] sm:$0xff]
        %v2652 = vld [vmem:[%s3 + $0x258] sm:$0xff]
        %v2653 = vld [vmem:[%s3 + $0x260] sm:$0xff]
        %v2654 = vld [vmem:[%s3 + $0x268] sm:$0xff]
        %v2655 = vld [vmem:[%s3 + $0x270] sm:$0xff]
        %v2656 = vld [vmem:[%s3 + $0x278] sm:$0xff]
        %v2657 = vld [vmem:[%s3 + $0x280] sm:$0xff]
        %v2658 = vld [vmem:[%s3 + $0x288] sm:$0xff]
        %v2659 = vld [vmem:[%s3 + $0x290] sm:$0xff]
        %v2660 = vld [vmem:[%s3 + $0x298] sm:$0xff]
        %v2661 = vld [vmem:[%s3 + $0x2a0] sm:$0xff]
        %v2662 = vld [vmem:[%s3 + $0x2a8] sm:$0xff]
        %v2663 = vld [vmem:[%s3 + $0x2b0] sm:$0xff]
        %v2664 = vld [vmem:[%s3 + $0x2b8] sm:$0xff]
        %v2665 = vld [vmem:[%s3 + $0x2c0] sm:$0xff]
        %v2666 = vld [vmem:[%s3 + $0x2c8] sm:$0xff]
        %v2667 = vld [vmem:[%s3 + $0x2d0] sm:$0xff]
        %v2668 = vld [vmem:[%s3 + $0x2d8] sm:$0xff]
        %v2669 = vld [vmem:[%s3 + $0x2e0] sm:$0xff]
        %v2670 = vld [vmem:[%s3 + $0x2e8] sm:$0xff]
        %v2671 = vld [vmem:[%s3 + $0x2f0] sm:$0xff]
        %v2672 = vld [vmem:[%s3 + $0x2f8] sm:$0xff]
        %v2705 = vunpack.c.l.b16 %v2641
        %v2706 = vunpack.c.h.b16 %v2641
        %v2707 = vunpack.c.l.b16 %v2642
        %v2708 = vunpack.c.h.b16 %v2642
        %v2709 = vunpack.c.l.b16 %v2643
        %v2710 = vunpack.c.h.b16 %v2643
        %v2711 = vunpack.c.l.b16 %v2644
        %v2712 = vunpack.c.h.b16 %v2644
        %v2713 = vunpack.c.l.b16 %v2645
        %v2714 = vunpack.c.h.b16 %v2645
        %v2715 = vunpack.c.l.b16 %v2646
        %v2716 = vunpack.c.h.b16 %v2646
        %v2717 = vunpack.c.l.b16 %v2647
        %v2718 = vunpack.c.h.b16 %v2647
        %v2719 = vunpack.c.l.b16 %v2648
        %v2720 = vunpack.c.h.b16 %v2648
        %v2721 = vunpack.c.l.b16 %v2649
        %v2722 = vunpack.c.h.b16 %v2649
        %v2723 = vunpack.c.l.b16 %v2650
        %v2724 = vunpack.c.h.b16 %v2650
        %v2725 = vunpack.c.l.b16 %v2651
        %v2726 = vunpack.c.h.b16 %v2651
        %v2727 = vunpack.c.l.b16 %v2652
        %v2728 = vunpack.c.h.b16 %v2652
        %v2729 = vunpack.c.l.b16 %v2653
        %v2730 = vunpack.c.h.b16 %v2653
        %v2731 = vunpack.c.l.b16 %v2654
        %v2732 = vunpack.c.h.b16 %v2654
        %v2733 = vunpack.c.l.b16 %v2655
        %v2734 = vunpack.c.h.b16 %v2655
        %v2735 = vunpack.c.l.b16 %v2656
        %v2736 = vunpack.c.h.b16 %v2656
        %v2737 = vunpack.c.l.b16 %v2657
        %v2738 = vunpack.c.h.b16 %v2657
        %v2739 = vunpack.c.l.b16 %v2658
        %v2740 = vunpack.c.h.b16 %v2658
        %v2741 = vunpack.c.l.b16 %v2659
        %v2742 = vunpack.c.h.b16 %v2659
        %v2743 = vunpack.c.l.b16 %v2660
        %v2744 = vunpack.c.h.b16 %v2660
        %v2745 = vunpack.c.l.b16 %v2661
        %v2746 = vunpack.c.h.b16 %v2661
        %v2747 = vunpack.c.l.b16 %v2662
        %v2748 = vunpack.c.h.b16 %v2662
        %v2749 = vunpack.c.l.b16 %v2663
        %v2750 = vunpack.c.h.b16 %v2663
        %v2751 = vunpack.c.l.b16 %v2664
        %v2752 = vunpack.c.h.b16 %v2664
        %v2753 = vunpack.c.l.b16 %v2665
        %v2754 = vunpack.c.h.b16 %v2665
        %v2755 = vunpack.c.l.b16 %v2666
        %v2756 = vunpack.c.h.b16 %v2666
        %v2757 = vunpack.c.l.b16 %v2667
        %v2758 = vunpack.c.h.b16 %v2667
        %v2759 = vunpack.c.l.b16 %v2668
        %v2760 = vunpack.c.h.b16 %v2668
        %v2761 = vunpack.c.l.b16 %v2669
        %v2762 = vunpack.c.h.b16 %v2669
        %v2763 = vunpack.c.l.b16 %v2670
        %v2764 = vunpack.c.h.b16 %v2670
        %v2765 = vunpack.c.l.b16 %v2671
        %v2766 = vunpack.c.h.b16 %v2671
        %v2767 = vunpack.c.l.b16 %v2672
        %v2768 = vunpack.c.h.b16 %v2672
        %v2769 = vpack.c.b16 %v2707, %v2705
        %v2770 = vpack.c.b16 %v2708, %v2706
        %v2771 = vpack.c.b16 %v2711, %v2709
        %v2772 = vpack.c.b16 %v2712, %v2710
        %v2773 = vpack.c.b16 %v2715, %v2713
        %v2774 = vpack.c.b16 %v2716, %v2714
        %v2775 = vpack.c.b16 %v2719, %v2717
        %v2776 = vpack.c.b16 %v2720, %v2718
        %v2777 = vpack.c.b16 %v2723, %v2721
        %v2778 = vpack.c.b16 %v2724, %v2722
        %v2779 = vpack.c.b16 %v2727, %v2725
        %v2780 = vpack.c.b16 %v2728, %v2726
        %v2781 = vpack.c.b16 %v2731, %v2729
        %v2782 = vpack.c.b16 %v2732, %v2730
        %v2783 = vpack.c.b16 %v2735, %v2733
        %v2784 = vpack.c.b16 %v2736, %v2734
        %v2785 = vpack.c.b16 %v2739, %v2737
        %v2786 = vpack.c.b16 %v2740, %v2738
        %v2787 = vpack.c.b16 %v2743, %v2741
        %v2788 = vpack.c.b16 %v2744, %v2742
        %v2789 = vpack.c.b16 %v2747, %v2745
        %v2790 = vpack.c.b16 %v2748, %v2746
        %v2791 = vpack.c.b16 %v2751, %v2749
        %v2792 = vpack.c.b16 %v2752, %v2750
        %v2793 = vpack.c.b16 %v2755, %v2753
        %v2794 = vpack.c.b16 %v2756, %v2754
        %v2795 = vpack.c.b16 %v2759, %v2757
        %v2796 = vpack.c.b16 %v2760, %v2758
        %v2797 = vpack.c.b16 %v2763, %v2761
        %v2798 = vpack.c.b16 %v2764, %v2762
        %v2799 = vpack.c.b16 %v2767, %v2765
        %v2800 = vpack.c.b16 %v2768, %v2766
        %2833 = vmatprep.subr.bf16.mxu0 %v2770
        %2834 = vmatpush1.bf16.msra.mxu0 %v2769
        %2835 = vmatprep.subr.bf16.mxu0 %v2772
        %2836 = vmatpush1.bf16.msra.mxu0 %v2771
        %2837 = vmatprep.subr.bf16.mxu0 %v2774
        %2838 = vmatpush1.bf16.msra.mxu0 %v2773
        %2839 = vmatprep.subr.bf16.mxu0 %v2776
        %2840 = vmatpush1.bf16.msra.mxu0 %v2775
        %2841 = vmatprep.subr.bf16.mxu0 %v2778
        %2842 = vmatpush1.bf16.msra.mxu0 %v2777
        %2843 = vmatprep.subr.bf16.mxu0 %v2780
        %2844 = vmatpush1.bf16.msra.mxu0 %v2779
        %2845 = vmatprep.subr.bf16.mxu0 %v2782
        %2846 = vmatpush1.bf16.msra.mxu0 %v2781
        %2847 = vmatprep.subr.bf16.mxu0 %v2784
        %2848 = vmatpush1.bf16.msra.mxu0 %v2783
        %2849 = vmatprep.subr.bf16.mxu0 %v2786
        %2850 = vmatpush1.bf16.msra.mxu0 %v2785
        %2851 = vmatprep.subr.bf16.mxu0 %v2788
        %2852 = vmatpush1.bf16.msra.mxu0 %v2787
        %2853 = vmatprep.subr.bf16.mxu0 %v2790
        %2854 = vmatpush1.bf16.msra.mxu0 %v2789
        %2855 = vmatprep.subr.bf16.mxu0 %v2792
        %2856 = vmatpush1.bf16.msra.mxu0 %v2791
        %2857 = vmatprep.subr.bf16.mxu0 %v2794
        %2858 = vmatpush1.bf16.msra.mxu0 %v2793
        %2859 = vmatprep.subr.bf16.mxu0 %v2796
        %2860 = vmatpush1.bf16.msra.mxu0 %v2795
        %2861 = vmatprep.subr.bf16.mxu0 %v2798
        %2862 = vmatpush1.bf16.msra.mxu0 %v2797
        %2863 = vmatprep.subr.bf16.mxu0 %v2800
        %2864 = vmatpush1.bf16.msra.mxu0 %v2799
        %2865 = vmatprep.mubr.bf16.mxu0 %v2640
        %2866 = vmatmul.mubr.bf16.gmra.mrb[0].mxu0 %v2639
        %v2867 = vpop.f32.mrb[0].mxu0
        %v2868 = vadd.f32 0.0, %v2867
        %v2869 = vpop.f32.mrb[0].mxu0
        %v2870 = vadd.f32 0.0, %v2869
        %v2871 = vpop.f32.mrb[0].mxu0
        %v2872 = vpop.f32.mrb[0].mxu0
        %2873 = vdwg.mxu0
        %v2874 = vadd.f32 %v2633, %v2868
        %v2875 = vadd.f32 %v2635, %v2870
        %v2878 = vrot.slane %v2151, 4
        %v2879 = vrot.slane %v2152, 4
        %v2882 = vrot.slane %v2151, 5
        %v2883 = vrot.slane %v2152, 5
        %v2886 = vsel %vm306, %v2878, %v2882
        %v2887 = vsel %vm306, %v2879, %v2883
        %v2888 = vsel %vm946, %v2886, 0.0
        %v2889 = vsel %vm946, %v2887, 0.0
        %v2890 = vpack.c.bf16 %v2888, %v2888
        %v2891 = vpack.c.bf16 %v2889, %v2889
        %v2892 = vld [vmem:[%s3 + $0x300] sm:$0xff]
        %v2893 = vld [vmem:[%s3 + $0x308] sm:$0xff]
        %v2894 = vld [vmem:[%s3 + $0x310] sm:$0xff]
        %v2895 = vld [vmem:[%s3 + $0x318] sm:$0xff]
        %v2896 = vld [vmem:[%s3 + $0x320] sm:$0xff]
        %v2897 = vld [vmem:[%s3 + $0x328] sm:$0xff]
        %v2898 = vld [vmem:[%s3 + $0x330] sm:$0xff]
        %v2899 = vld [vmem:[%s3 + $0x338] sm:$0xff]
        %v2900 = vld [vmem:[%s3 + $0x340] sm:$0xff]
        %v2901 = vld [vmem:[%s3 + $0x348] sm:$0xff]
        %v2902 = vld [vmem:[%s3 + $0x350] sm:$0xff]
        %v2903 = vld [vmem:[%s3 + $0x358] sm:$0xff]
        %v2904 = vld [vmem:[%s3 + $0x360] sm:$0xff]
        %v2905 = vld [vmem:[%s3 + $0x368] sm:$0xff]
        %v2906 = vld [vmem:[%s3 + $0x370] sm:$0xff]
        %v2907 = vld [vmem:[%s3 + $0x378] sm:$0xff]
        %v2908 = vld [vmem:[%s3 + $0x380] sm:$0xff]
        %v2909 = vld [vmem:[%s3 + $0x388] sm:$0xff]
        %v2910 = vld [vmem:[%s3 + $0x390] sm:$0xff]
        %v2911 = vld [vmem:[%s3 + $0x398] sm:$0xff]
        %v2912 = vld [vmem:[%s3 + $0x3a0] sm:$0xff]
        %v2913 = vld [vmem:[%s3 + $0x3a8] sm:$0xff]
        %v2914 = vld [vmem:[%s3 + $0x3b0] sm:$0xff]
        %v2915 = vld [vmem:[%s3 + $0x3b8] sm:$0xff]
        %v2916 = vld [vmem:[%s3 + $0x3c0] sm:$0xff]
        %v2917 = vld [vmem:[%s3 + $0x3c8] sm:$0xff]
        %v2918 = vld [vmem:[%s3 + $0x3d0] sm:$0xff]
        %v2919 = vld [vmem:[%s3 + $0x3d8] sm:$0xff]
        %v2920 = vld [vmem:[%s3 + $0x3e0] sm:$0xff]
        %v2921 = vld [vmem:[%s3 + $0x3e8] sm:$0xff]
        %v2922 = vld [vmem:[%s3 + $0x3f0] sm:$0xff]
        %v2923 = vld [vmem:[%s3 + $0x3f8] sm:$0xff]
        %v2956 = vunpack.c.l.b16 %v2892
        %v2957 = vunpack.c.h.b16 %v2892
        %v2958 = vunpack.c.l.b16 %v2893
        %v2959 = vunpack.c.h.b16 %v2893
        %v2960 = vunpack.c.l.b16 %v2894
        %v2961 = vunpack.c.h.b16 %v2894
        %v2962 = vunpack.c.l.b16 %v2895
        %v2963 = vunpack.c.h.b16 %v2895
        %v2964 = vunpack.c.l.b16 %v2896
        %v2965 = vunpack.c.h.b16 %v2896
        %v2966 = vunpack.c.l.b16 %v2897
        %v2967 = vunpack.c.h.b16 %v2897
        %v2968 = vunpack.c.l.b16 %v2898
        %v2969 = vunpack.c.h.b16 %v2898
        %v2970 = vunpack.c.l.b16 %v2899
        %v2971 = vunpack.c.h.b16 %v2899
        %v2972 = vunpack.c.l.b16 %v2900
        %v2973 = vunpack.c.h.b16 %v2900
        %v2974 = vunpack.c.l.b16 %v2901
        %v2975 = vunpack.c.h.b16 %v2901
        %v2976 = vunpack.c.l.b16 %v2902
        %v2977 = vunpack.c.h.b16 %v2902
        %v2978 = vunpack.c.l.b16 %v2903
        %v2979 = vunpack.c.h.b16 %v2903
        %v2980 = vunpack.c.l.b16 %v2904
        %v2981 = vunpack.c.h.b16 %v2904
        %v2982 = vunpack.c.l.b16 %v2905
        %v2983 = vunpack.c.h.b16 %v2905
        %v2984 = vunpack.c.l.b16 %v2906
        %v2985 = vunpack.c.h.b16 %v2906
        %v2986 = vunpack.c.l.b16 %v2907
        %v2987 = vunpack.c.h.b16 %v2907
        %v2988 = vunpack.c.l.b16 %v2908
        %v2989 = vunpack.c.h.b16 %v2908
        %v2990 = vunpack.c.l.b16 %v2909
        %v2991 = vunpack.c.h.b16 %v2909
        %v2992 = vunpack.c.l.b16 %v2910
        %v2993 = vunpack.c.h.b16 %v2910
        %v2994 = vunpack.c.l.b16 %v2911
        %v2995 = vunpack.c.h.b16 %v2911
        %v2996 = vunpack.c.l.b16 %v2912
        %v2997 = vunpack.c.h.b16 %v2912
        %v2998 = vunpack.c.l.b16 %v2913
        %v2999 = vunpack.c.h.b16 %v2913
        %v3000 = vunpack.c.l.b16 %v2914
        %v3001 = vunpack.c.h.b16 %v2914
        %v3002 = vunpack.c.l.b16 %v2915
        %v3003 = vunpack.c.h.b16 %v2915
        %v3004 = vunpack.c.l.b16 %v2916
        %v3005 = vunpack.c.h.b16 %v2916
        %v3006 = vunpack.c.l.b16 %v2917
        %v3007 = vunpack.c.h.b16 %v2917
        %v3008 = vunpack.c.l.b16 %v2918
        %v3009 = vunpack.c.h.b16 %v2918
        %v3010 = vunpack.c.l.b16 %v2919
        %v3011 = vunpack.c.h.b16 %v2919
        %v3012 = vunpack.c.l.b16 %v2920
        %v3013 = vunpack.c.h.b16 %v2920
        %v3014 = vunpack.c.l.b16 %v2921
        %v3015 = vunpack.c.h.b16 %v2921
        %v3016 = vunpack.c.l.b16 %v2922
        %v3017 = vunpack.c.h.b16 %v2922
        %v3018 = vunpack.c.l.b16 %v2923
        %v3019 = vunpack.c.h.b16 %v2923
        %v3020 = vpack.c.b16 %v2958, %v2956
        %v3021 = vpack.c.b16 %v2959, %v2957
        %v3022 = vpack.c.b16 %v2962, %v2960
        %v3023 = vpack.c.b16 %v2963, %v2961
        %v3024 = vpack.c.b16 %v2966, %v2964
        %v3025 = vpack.c.b16 %v2967, %v2965
        %v3026 = vpack.c.b16 %v2970, %v2968
        %v3027 = vpack.c.b16 %v2971, %v2969
        %v3028 = vpack.c.b16 %v2974, %v2972
        %v3029 = vpack.c.b16 %v2975, %v2973
        %v3030 = vpack.c.b16 %v2978, %v2976
        %v3031 = vpack.c.b16 %v2979, %v2977
        %v3032 = vpack.c.b16 %v2982, %v2980
        %v3033 = vpack.c.b16 %v2983, %v2981
        %v3034 = vpack.c.b16 %v2986, %v2984
        %v3035 = vpack.c.b16 %v2987, %v2985
        %v3036 = vpack.c.b16 %v2990, %v2988
        %v3037 = vpack.c.b16 %v2991, %v2989
        %v3038 = vpack.c.b16 %v2994, %v2992
        %v3039 = vpack.c.b16 %v2995, %v2993
        %v3040 = vpack.c.b16 %v2998, %v2996
        %v3041 = vpack.c.b16 %v2999, %v2997
        %v3042 = vpack.c.b16 %v3002, %v3000
        %v3043 = vpack.c.b16 %v3003, %v3001
        %v3044 = vpack.c.b16 %v3006, %v3004
        %v3045 = vpack.c.b16 %v3007, %v3005
        %v3046 = vpack.c.b16 %v3010, %v3008
        %v3047 = vpack.c.b16 %v3011, %v3009
        %v3048 = vpack.c.b16 %v3014, %v3012
        %v3049 = vpack.c.b16 %v3015, %v3013
        %v3050 = vpack.c.b16 %v3018, %v3016
        %v3051 = vpack.c.b16 %v3019, %v3017
        %3084 = vmatprep.subr.bf16.mxu0 %v3021
        %3085 = vmatpush1.bf16.msra.mxu0 %v3020
        %3086 = vmatprep.subr.bf16.mxu0 %v3023
        %3087 = vmatpush1.bf16.msra.mxu0 %v3022
        %3088 = vmatprep.subr.bf16.mxu0 %v3025
        %3089 = vmatpush1.bf16.msra.mxu0 %v3024
        %3090 = vmatprep.subr.bf16.mxu0 %v3027
        %3091 = vmatpush1.bf16.msra.mxu0 %v3026
        %3092 = vmatprep.subr.bf16.mxu0 %v3029
        %3093 = vmatpush1.bf16.msra.mxu0 %v3028
        %3094 = vmatprep.subr.bf16.mxu0 %v3031
        %3095 = vmatpush1.bf16.msra.mxu0 %v3030
        %3096 = vmatprep.subr.bf16.mxu0 %v3033
        %3097 = vmatpush1.bf16.msra.mxu0 %v3032
        %3098 = vmatprep.subr.bf16.mxu0 %v3035
        %3099 = vmatpush1.bf16.msra.mxu0 %v3034
        %3100 = vmatprep.subr.bf16.mxu0 %v3037
        %3101 = vmatpush1.bf16.msra.mxu0 %v3036
        %3102 = vmatprep.subr.bf16.mxu0 %v3039
        %3103 = vmatpush1.bf16.msra.mxu0 %v3038
        %3104 = vmatprep.subr.bf16.mxu0 %v3041
        %3105 = vmatpush1.bf16.msra.mxu0 %v3040
        %3106 = vmatprep.subr.bf16.mxu0 %v3043
        %3107 = vmatpush1.bf16.msra.mxu0 %v3042
        %3108 = vmatprep.subr.bf16.mxu0 %v3045
        %3109 = vmatpush1.bf16.msra.mxu0 %v3044
        %3110 = vmatprep.subr.bf16.mxu0 %v3047
        %3111 = vmatpush1.bf16.msra.mxu0 %v3046
        %3112 = vmatprep.subr.bf16.mxu0 %v3049
        %3113 = vmatpush1.bf16.msra.mxu0 %v3048
        %3114 = vmatprep.subr.bf16.mxu0 %v3051
        %3115 = vmatpush1.bf16.msra.mxu0 %v3050
        %3116 = vmatprep.mubr.bf16.mxu0 %v2891
        %3117 = vmatmul.mubr.bf16.gmra.mrb[0].mxu0 %v2890
        %v3118 = vpop.f32.mrb[0].mxu0
        %v3119 = vadd.f32 0.0, %v3118
        %v3120 = vpop.f32.mrb[0].mxu0
        %v3121 = vadd.f32 0.0, %v3120
        %v3122 = vpop.f32.mrb[0].mxu0
        %v3123 = vpop.f32.mrb[0].mxu0
        %3124 = vdwg.mxu0
        %v3125 = vadd.f32 %v2874, %v3119
        %v3126 = vadd.f32 %v2875, %v3121
        %v3127 = vmax.f32 %v3125, 0.0
        %v3128 = vmax.f32 %v3126, 0.0
        %v3131 = vrot.slane %v3127, 3
        %v3132 = vrot.slane %v3128, 3
        %v3135 = vsel %vm303, 0.0, %v3131
        %v3136 = vsel %vm303, 0.0, %v3132
        %v3137 = vpack.c.bf16 %v3135, %v3135
        %v3138 = vpack.c.bf16 %v3136, %v3136
        %v3139 = vld [vmem:[%s4] sm:$0xff]
        %v3140 = vld [vmem:[%s4 + $0x8] sm:$0xff]
        %v3141 = vld [vmem:[%s4 + $0x10] sm:$0xff]
        %v3142 = vld [vmem:[%s4 + $0x18] sm:$0xff]
        %v3143 = vld [vmem:[%s4 + $0x20] sm:$0xff]
        %v3144 = vld [vmem:[%s4 + $0x28] sm:$0xff]
        %v3145 = vld [vmem:[%s4 + $0x30] sm:$0xff]
        %v3146 = vld [vmem:[%s4 + $0x38] sm:$0xff]
        %v3147 = vld [vmem:[%s4 + $0x40] sm:$0xff]
        %v3148 = vld [vmem:[%s4 + $0x48] sm:$0xff]
        %v3149 = vld [vmem:[%s4 + $0x50] sm:$0xff]
        %v3150 = vld [vmem:[%s4 + $0x58] sm:$0xff]
        %v3151 = vld [vmem:[%s4 + $0x60] sm:$0xff]
        %v3152 = vld [vmem:[%s4 + $0x68] sm:$0xff]
        %v3153 = vld [vmem:[%s4 + $0x70] sm:$0xff]
        %v3154 = vld [vmem:[%s4 + $0x78] sm:$0xff]
        %v3155 = vld [vmem:[%s4 + $0x80] sm:$0xff]
        %v3156 = vld [vmem:[%s4 + $0x88] sm:$0xff]
        %v3157 = vld [vmem:[%s4 + $0x90] sm:$0xff]
        %v3158 = vld [vmem:[%s4 + $0x98] sm:$0xff]
        %v3159 = vld [vmem:[%s4 + $0xa0] sm:$0xff]
        %v3160 = vld [vmem:[%s4 + $0xa8] sm:$0xff]
        %v3161 = vld [vmem:[%s4 + $0xb0] sm:$0xff]
        %v3162 = vld [vmem:[%s4 + $0xb8] sm:$0xff]
        %v3163 = vld [vmem:[%s4 + $0xc0] sm:$0xff]
        %v3164 = vld [vmem:[%s4 + $0xc8] sm:$0xff]
        %v3165 = vld [vmem:[%s4 + $0xd0] sm:$0xff]
        %v3166 = vld [vmem:[%s4 + $0xd8] sm:$0xff]
        %v3167 = vld [vmem:[%s4 + $0xe0] sm:$0xff]
        %v3168 = vld [vmem:[%s4 + $0xe8] sm:$0xff]
        %v3169 = vld [vmem:[%s4 + $0xf0] sm:$0xff]
        %v3170 = vld [vmem:[%s4 + $0xf8] sm:$0xff]
        %v3171 = vpack.c.bf16 %v3127, %v3127
        %v3172 = vpack.c.bf16 %v3128, %v3128
        %v3173 = vld [vmem:[%s4 + $0x100] sm:$0xff]
        %v3174 = vld [vmem:[%s4 + $0x108] sm:$0xff]
        %v3175 = vld [vmem:[%s4 + $0x110] sm:$0xff]
        %v3176 = vld [vmem:[%s4 + $0x118] sm:$0xff]
        %v3177 = vld [vmem:[%s4 + $0x120] sm:$0xff]
        %v3178 = vld [vmem:[%s4 + $0x128] sm:$0xff]
        %v3179 = vld [vmem:[%s4 + $0x130] sm:$0xff]
        %v3180 = vld [vmem:[%s4 + $0x138] sm:$0xff]
        %v3181 = vld [vmem:[%s4 + $0x140] sm:$0xff]
        %v3182 = vld [vmem:[%s4 + $0x148] sm:$0xff]
        %v3183 = vld [vmem:[%s4 + $0x150] sm:$0xff]
        %v3184 = vld [vmem:[%s4 + $0x158] sm:$0xff]
        %v3185 = vld [vmem:[%s4 + $0x160] sm:$0xff]
        %v3186 = vld [vmem:[%s4 + $0x168] sm:$0xff]
        %v3187 = vld [vmem:[%s4 + $0x170] sm:$0xff]
        %v3188 = vld [vmem:[%s4 + $0x178] sm:$0xff]
        %v3189 = vld [vmem:[%s4 + $0x180] sm:$0xff]
        %v3190 = vld [vmem:[%s4 + $0x188] sm:$0xff]
        %v3191 = vld [vmem:[%s4 + $0x190] sm:$0xff]
        %v3192 = vld [vmem:[%s4 + $0x198] sm:$0xff]
        %v3193 = vld [vmem:[%s4 + $0x1a0] sm:$0xff]
        %v3194 = vld [vmem:[%s4 + $0x1a8] sm:$0xff]
        %v3195 = vld [vmem:[%s4 + $0x1b0] sm:$0xff]
        %v3196 = vld [vmem:[%s4 + $0x1b8] sm:$0xff]
        %v3197 = vld [vmem:[%s4 + $0x1c0] sm:$0xff]
        %v3198 = vld [vmem:[%s4 + $0x1c8] sm:$0xff]
        %v3199 = vld [vmem:[%s4 + $0x1d0] sm:$0xff]
        %v3200 = vld [vmem:[%s4 + $0x1d8] sm:$0xff]
        %v3201 = vld [vmem:[%s4 + $0x1e0] sm:$0xff]
        %v3202 = vld [vmem:[%s4 + $0x1e8] sm:$0xff]
        %v3203 = vld [vmem:[%s4 + $0x1f0] sm:$0xff]
        %v3204 = vld [vmem:[%s4 + $0x1f8] sm:$0xff]
        %v3237 = vunpack.c.l.b16 %v3173
        %v3238 = vunpack.c.h.b16 %v3173
        %v3239 = vunpack.c.l.b16 %v3174
        %v3240 = vunpack.c.h.b16 %v3174
        %v3241 = vunpack.c.l.b16 %v3175
        %v3242 = vunpack.c.h.b16 %v3175
        %v3243 = vunpack.c.l.b16 %v3176
        %v3244 = vunpack.c.h.b16 %v3176
        %v3245 = vunpack.c.l.b16 %v3177
        %v3246 = vunpack.c.h.b16 %v3177
        %v3247 = vunpack.c.l.b16 %v3178
        %v3248 = vunpack.c.h.b16 %v3178
        %v3249 = vunpack.c.l.b16 %v3179
        %v3250 = vunpack.c.h.b16 %v3179
        %v3251 = vunpack.c.l.b16 %v3180
        %v3252 = vunpack.c.h.b16 %v3180
        %v3253 = vunpack.c.l.b16 %v3181
        %v3254 = vunpack.c.h.b16 %v3181
        %v3255 = vunpack.c.l.b16 %v3182
        %v3256 = vunpack.c.h.b16 %v3182
        %v3257 = vunpack.c.l.b16 %v3183
        %v3258 = vunpack.c.h.b16 %v3183
        %v3259 = vunpack.c.l.b16 %v3184
        %v3260 = vunpack.c.h.b16 %v3184
        %v3261 = vunpack.c.l.b16 %v3185
        %v3262 = vunpack.c.h.b16 %v3185
        %v3263 = vunpack.c.l.b16 %v3186
        %v3264 = vunpack.c.h.b16 %v3186
        %v3265 = vunpack.c.l.b16 %v3187
        %v3266 = vunpack.c.h.b16 %v3187
        %v3267 = vunpack.c.l.b16 %v3188
        %v3268 = vunpack.c.h.b16 %v3188
        %v3269 = vunpack.c.l.b16 %v3189
        %v3270 = vunpack.c.h.b16 %v3189
        %v3271 = vunpack.c.l.b16 %v3190
        %v3272 = vunpack.c.h.b16 %v3190
        %v3273 = vunpack.c.l.b16 %v3191
        %v3274 = vunpack.c.h.b16 %v3191
        %v3275 = vunpack.c.l.b16 %v3192
        %v3276 = vunpack.c.h.b16 %v3192
        %v3277 = vunpack.c.l.b16 %v3193
        %v3278 = vunpack.c.h.b16 %v3193
        %v3279 = vunpack.c.l.b16 %v3194
        %v3280 = vunpack.c.h.b16 %v3194
        %v3281 = vunpack.c.l.b16 %v3195
        %v3282 = vunpack.c.h.b16 %v3195
        %v3283 = vunpack.c.l.b16 %v3196
        %v3284 = vunpack.c.h.b16 %v3196
        %v3285 = vunpack.c.l.b16 %v3197
        %v3286 = vunpack.c.h.b16 %v3197
        %v3287 = vunpack.c.l.b16 %v3198
        %v3288 = vunpack.c.h.b16 %v3198
        %v3289 = vunpack.c.l.b16 %v3199
        %v3290 = vunpack.c.h.b16 %v3199
        %v3291 = vunpack.c.l.b16 %v3200
        %v3292 = vunpack.c.h.b16 %v3200
        %v3293 = vunpack.c.l.b16 %v3201
        %v3294 = vunpack.c.h.b16 %v3201
        %v3295 = vunpack.c.l.b16 %v3202
        %v3296 = vunpack.c.h.b16 %v3202
        %v3297 = vunpack.c.l.b16 %v3203
        %v3298 = vunpack.c.h.b16 %v3203
        %v3299 = vunpack.c.l.b16 %v3204
        %v3300 = vunpack.c.h.b16 %v3204
        %v3301 = vpack.c.b16 %v3239, %v3237
        %v3302 = vpack.c.b16 %v3240, %v3238
        %v3303 = vpack.c.b16 %v3243, %v3241
        %v3304 = vpack.c.b16 %v3244, %v3242
        %v3305 = vpack.c.b16 %v3247, %v3245
        %v3306 = vpack.c.b16 %v3248, %v3246
        %v3307 = vpack.c.b16 %v3251, %v3249
        %v3308 = vpack.c.b16 %v3252, %v3250
        %v3309 = vpack.c.b16 %v3255, %v3253
        %v3310 = vpack.c.b16 %v3256, %v3254
        %v3311 = vpack.c.b16 %v3259, %v3257
        %v3312 = vpack.c.b16 %v3260, %v3258
        %v3313 = vpack.c.b16 %v3263, %v3261
        %v3314 = vpack.c.b16 %v3264, %v3262
        %v3315 = vpack.c.b16 %v3267, %v3265
        %v3316 = vpack.c.b16 %v3268, %v3266
        %v3317 = vpack.c.b16 %v3271, %v3269
        %v3318 = vpack.c.b16 %v3272, %v3270
        %v3319 = vpack.c.b16 %v3275, %v3273
        %v3320 = vpack.c.b16 %v3276, %v3274
        %v3321 = vpack.c.b16 %v3279, %v3277
        %v3322 = vpack.c.b16 %v3280, %v3278
        %v3323 = vpack.c.b16 %v3283, %v3281
        %v3324 = vpack.c.b16 %v3284, %v3282
        %v3325 = vpack.c.b16 %v3287, %v3285
        %v3326 = vpack.c.b16 %v3288, %v3286
        %v3327 = vpack.c.b16 %v3291, %v3289
        %v3328 = vpack.c.b16 %v3292, %v3290
        %v3329 = vpack.c.b16 %v3295, %v3293
        %v3330 = vpack.c.b16 %v3296, %v3294
        %v3331 = vpack.c.b16 %v3299, %v3297
        %v3332 = vpack.c.b16 %v3300, %v3298
        %3365 = vmatprep.subr.bf16.mxu0 %v3302
        %3366 = vmatpush1.bf16.msra.mxu0 %v3301
        %3367 = vmatprep.subr.bf16.mxu0 %v3304
        %3368 = vmatpush1.bf16.msra.mxu0 %v3303
        %3369 = vmatprep.subr.bf16.mxu0 %v3306
        %3370 = vmatpush1.bf16.msra.mxu0 %v3305
        %3371 = vmatprep.subr.bf16.mxu0 %v3308
        %3372 = vmatpush1.bf16.msra.mxu0 %v3307
        %3373 = vmatprep.subr.bf16.mxu0 %v3310
        %3374 = vmatpush1.bf16.msra.mxu0 %v3309
        %3375 = vmatprep.subr.bf16.mxu0 %v3312
        %3376 = vmatpush1.bf16.msra.mxu0 %v3311
        %3377 = vmatprep.subr.bf16.mxu0 %v3314
        %3378 = vmatpush1.bf16.msra.mxu0 %v3313
        %3379 = vmatprep.subr.bf16.mxu0 %v3316
        %3380 = vmatpush1.bf16.msra.mxu0 %v3315
        %3381 = vmatprep.subr.bf16.mxu0 %v3318
        %3382 = vmatpush1.bf16.msra.mxu0 %v3317
        %3383 = vmatprep.subr.bf16.mxu0 %v3320
        %3384 = vmatpush1.bf16.msra.mxu0 %v3319
        %3385 = vmatprep.subr.bf16.mxu0 %v3322
        %3386 = vmatpush1.bf16.msra.mxu0 %v3321
        %3387 = vmatprep.subr.bf16.mxu0 %v3324
        %3388 = vmatpush1.bf16.msra.mxu0 %v3323
        %3389 = vmatprep.subr.bf16.mxu0 %v3326
        %3390 = vmatpush1.bf16.msra.mxu0 %v3325
        %3391 = vmatprep.subr.bf16.mxu0 %v3328
        %3392 = vmatpush1.bf16.msra.mxu0 %v3327
        %3393 = vmatprep.subr.bf16.mxu0 %v3330
        %3394 = vmatpush1.bf16.msra.mxu0 %v3329
        %3395 = vmatprep.subr.bf16.mxu0 %v3332
        %3396 = vmatpush1.bf16.msra.mxu0 %v3331
        %3397 = vmatprep.mubr.bf16.mxu0 %v3172
        %3398 = vmatmul.mubr.bf16.gmra.mrb[0].mxu0 %v3171
        %v3399 = vpop.f32.mrb[0].mxu0
        %v3400 = vadd.f32 0.0, %v3399
        %v3401 = vpop.f32.mrb[0].mxu0
        %v3402 = vadd.f32 0.0, %v3401
        %v3403 = vpop.f32.mrb[0].mxu0
        %v3404 = vpop.f32.mrb[0].mxu0
        %3405 = vdwg.mxu0
        %v3438 = vunpack.c.l.b16 %v3139
        %v3439 = vunpack.c.h.b16 %v3139
        %v3440 = vunpack.c.l.b16 %v3140
        %v3441 = vunpack.c.h.b16 %v3140
        %v3442 = vunpack.c.l.b16 %v3141
        %v3443 = vunpack.c.h.b16 %v3141
        %v3444 = vunpack.c.l.b16 %v3142
        %v3445 = vunpack.c.h.b16 %v3142
        %v3446 = vunpack.c.l.b16 %v3143
        %v3447 = vunpack.c.h.b16 %v3143
        %v3448 = vunpack.c.l.b16 %v3144
        %v3449 = vunpack.c.h.b16 %v3144
        %v3450 = vunpack.c.l.b16 %v3145
        %v3451 = vunpack.c.h.b16 %v3145
        %v3452 = vunpack.c.l.b16 %v3146
        %v3453 = vunpack.c.h.b16 %v3146
        %v3454 = vunpack.c.l.b16 %v3147
        %v3455 = vunpack.c.h.b16 %v3147
        %v3456 = vunpack.c.l.b16 %v3148
        %v3457 = vunpack.c.h.b16 %v3148
        %v3458 = vunpack.c.l.b16 %v3149
        %v3459 = vunpack.c.h.b16 %v3149
        %v3460 = vunpack.c.l.b16 %v3150
        %v3461 = vunpack.c.h.b16 %v3150
        %v3462 = vunpack.c.l.b16 %v3151
        %v3463 = vunpack.c.h.b16 %v3151
        %v3464 = vunpack.c.l.b16 %v3152
        %v3465 = vunpack.c.h.b16 %v3152
        %v3466 = vunpack.c.l.b16 %v3153
        %v3467 = vunpack.c.h.b16 %v3153
        %v3468 = vunpack.c.l.b16 %v3154
        %v3469 = vunpack.c.h.b16 %v3154
        %v3470 = vunpack.c.l.b16 %v3155
        %v3471 = vunpack.c.h.b16 %v3155
        %v3472 = vunpack.c.l.b16 %v3156
        %v3473 = vunpack.c.h.b16 %v3156
        %v3474 = vunpack.c.l.b16 %v3157
        %v3475 = vunpack.c.h.b16 %v3157
        %v3476 = vunpack.c.l.b16 %v3158
        %v3477 = vunpack.c.h.b16 %v3158
        %v3478 = vunpack.c.l.b16 %v3159
        %v3479 = vunpack.c.h.b16 %v3159
        %v3480 = vunpack.c.l.b16 %v3160
        %v3481 = vunpack.c.h.b16 %v3160
        %v3482 = vunpack.c.l.b16 %v3161
        %v3483 = vunpack.c.h.b16 %v3161
        %v3484 = vunpack.c.l.b16 %v3162
        %v3485 = vunpack.c.h.b16 %v3162
        %v3486 = vunpack.c.l.b16 %v3163
        %v3487 = vunpack.c.h.b16 %v3163
        %v3488 = vunpack.c.l.b16 %v3164
        %v3489 = vunpack.c.h.b16 %v3164
        %v3490 = vunpack.c.l.b16 %v3165
        %v3491 = vunpack.c.h.b16 %v3165
        %v3492 = vunpack.c.l.b16 %v3166
        %v3493 = vunpack.c.h.b16 %v3166
        %v3494 = vunpack.c.l.b16 %v3167
        %v3495 = vunpack.c.h.b16 %v3167
        %v3496 = vunpack.c.l.b16 %v3168
        %v3497 = vunpack.c.h.b16 %v3168
        %v3498 = vunpack.c.l.b16 %v3169
        %v3499 = vunpack.c.h.b16 %v3169
        %v3500 = vunpack.c.l.b16 %v3170
        %v3501 = vunpack.c.h.b16 %v3170
        %v3502 = vpack.c.b16 %v3440, %v3438
        %v3503 = vpack.c.b16 %v3441, %v3439
        %v3504 = vpack.c.b16 %v3444, %v3442
        %v3505 = vpack.c.b16 %v3445, %v3443
        %v3506 = vpack.c.b16 %v3448, %v3446
        %v3507 = vpack.c.b16 %v3449, %v3447
        %v3508 = vpack.c.b16 %v3452, %v3450
        %v3509 = vpack.c.b16 %v3453, %v3451
        %v3510 = vpack.c.b16 %v3456, %v3454
        %v3511 = vpack.c.b16 %v3457, %v3455
        %v3512 = vpack.c.b16 %v3460, %v3458
        %v3513 = vpack.c.b16 %v3461, %v3459
        %v3514 = vpack.c.b16 %v3464, %v3462
        %v3515 = vpack.c.b16 %v3465, %v3463
        %v3516 = vpack.c.b16 %v3468, %v3466
        %v3517 = vpack.c.b16 %v3469, %v3467
        %v3518 = vpack.c.b16 %v3472, %v3470
        %v3519 = vpack.c.b16 %v3473, %v3471
        %v3520 = vpack.c.b16 %v3476, %v3474
        %v3521 = vpack.c.b16 %v3477, %v3475
        %v3522 = vpack.c.b16 %v3480, %v3478
        %v3523 = vpack.c.b16 %v3481, %v3479
        %v3524 = vpack.c.b16 %v3484, %v3482
        %v3525 = vpack.c.b16 %v3485, %v3483
        %v3526 = vpack.c.b16 %v3488, %v3486
        %v3527 = vpack.c.b16 %v3489, %v3487
        %v3528 = vpack.c.b16 %v3492, %v3490
        %v3529 = vpack.c.b16 %v3493, %v3491
        %v3530 = vpack.c.b16 %v3496, %v3494
        %v3531 = vpack.c.b16 %v3497, %v3495
        %v3532 = vpack.c.b16 %v3500, %v3498
        %v3533 = vpack.c.b16 %v3501, %v3499
        %3566 = vmatprep.subr.bf16.mxu0 %v3503
        %3567 = vmatpush1.bf16.msra.mxu0 %v3502
        %3568 = vmatprep.subr.bf16.mxu0 %v3505
        %3569 = vmatpush1.bf16.msra.mxu0 %v3504
        %3570 = vmatprep.subr.bf16.mxu0 %v3507
        %3571 = vmatpush1.bf16.msra.mxu0 %v3506
        %3572 = vmatprep.subr.bf16.mxu0 %v3509
        %3573 = vmatpush1.bf16.msra.mxu0 %v3508
        %3574 = vmatprep.subr.bf16.mxu0 %v3511
        %3575 = vmatpush1.bf16.msra.mxu0 %v3510
        %3576 = vmatprep.subr.bf16.mxu0 %v3513
        %3577 = vmatpush1.bf16.msra.mxu0 %v3512
        %3578 = vmatprep.subr.bf16.mxu0 %v3515
        %3579 = vmatpush1.bf16.msra.mxu0 %v3514
        %3580 = vmatprep.subr.bf16.mxu0 %v3517
        %3581 = vmatpush1.bf16.msra.mxu0 %v3516
        %3582 = vmatprep.subr.bf16.mxu0 %v3519
        %3583 = vmatpush1.bf16.msra.mxu0 %v3518
        %3584 = vmatprep.subr.bf16.mxu0 %v3521
        %3585 = vmatpush1.bf16.msra.mxu0 %v3520
        %3586 = vmatprep.subr.bf16.mxu0 %v3523
        %3587 = vmatpush1.bf16.msra.mxu0 %v3522
        %3588 = vmatprep.subr.bf16.mxu0 %v3525
        %3589 = vmatpush1.bf16.msra.mxu0 %v3524
        %3590 = vmatprep.subr.bf16.mxu0 %v3527
        %3591 = vmatpush1.bf16.msra.mxu0 %v3526
        %3592 = vmatprep.subr.bf16.mxu0 %v3529
        %3593 = vmatpush1.bf16.msra.mxu0 %v3528
        %3594 = vmatprep.subr.bf16.mxu0 %v3531
        %3595 = vmatpush1.bf16.msra.mxu0 %v3530
        %3596 = vmatprep.subr.bf16.mxu0 %v3533
        %3597 = vmatpush1.bf16.msra.mxu0 %v3532
        %3598 = vmatprep.mubr.bf16.mxu0 %v3138
        %3599 = vmatmul.mubr.bf16.gmra.mrb[0].mxu0 %v3137
        %v3600 = vpop.f32.mrb[0].mxu0
        %v3601 = vadd.f32 %v3400, %v3600
        %v3602 = vpop.f32.mrb[0].mxu0
        %v3603 = vadd.f32 %v3402, %v3602
        %v3604 = vpop.f32.mrb[0].mxu0
        %v3605 = vpop.f32.mrb[0].mxu0
        %3606 = vdwg.mxu0
        %v3607 = vld [vmem:[%s4 + $0x200] sm:$0xff]
        %v3608 = vld [vmem:[%s4 + $0x208] sm:$0xff]
        %v3609 = vld [vmem:[%s4 + $0x210] sm:$0xff]
        %v3610 = vld [vmem:[%s4 + $0x218] sm:$0xff]
        %v3611 = vld [vmem:[%s4 + $0x220] sm:$0xff]
        %v3612 = vld [vmem:[%s4 + $0x228] sm:$0xff]
        %v3613 = vld [vmem:[%s4 + $0x230] sm:$0xff]
        %v3614 = vld [vmem:[%s4 + $0x238] sm:$0xff]
        %v3615 = vld [vmem:[%s4 + $0x240] sm:$0xff]
        %v3616 = vld [vmem:[%s4 + $0x248] sm:$0xff]
        %v3617 = vld [vmem:[%s4 + $0x250] sm:$0xff]
        %v3618 = vld [vmem:[%s4 + $0x258] sm:$0xff]
        %v3619 = vld [vmem:[%s4 + $0x260] sm:$0xff]
        %v3620 = vld [vmem:[%s4 + $0x268] sm:$0xff]
        %v3621 = vld [vmem:[%s4 + $0x270] sm:$0xff]
        %v3622 = vld [vmem:[%s4 + $0x278] sm:$0xff]
        %v3623 = vld [vmem:[%s4 + $0x280] sm:$0xff]
        %v3624 = vld [vmem:[%s4 + $0x288] sm:$0xff]
        %v3625 = vld [vmem:[%s4 + $0x290] sm:$0xff]
        %v3626 = vld [vmem:[%s4 + $0x298] sm:$0xff]
        %v3627 = vld [vmem:[%s4 + $0x2a0] sm:$0xff]
        %v3628 = vld [vmem:[%s4 + $0x2a8] sm:$0xff]
        %v3629 = vld [vmem:[%s4 + $0x2b0] sm:$0xff]
        %v3630 = vld [vmem:[%s4 + $0x2b8] sm:$0xff]
        %v3631 = vld [vmem:[%s4 + $0x2c0] sm:$0xff]
        %v3632 = vld [vmem:[%s4 + $0x2c8] sm:$0xff]
        %v3633 = vld [vmem:[%s4 + $0x2d0] sm:$0xff]
        %v3634 = vld [vmem:[%s4 + $0x2d8] sm:$0xff]
        %v3635 = vld [vmem:[%s4 + $0x2e0] sm:$0xff]
        %v3636 = vld [vmem:[%s4 + $0x2e8] sm:$0xff]
        %v3637 = vld [vmem:[%s4 + $0x2f0] sm:$0xff]
        %v3638 = vld [vmem:[%s4 + $0x2f8] sm:$0xff]
        %v3641 = vrot.slane %v3171, 2
        %v3642 = vrot.slane %v3172, 2
        %v3677 = vunpack.c.l.b16 %v3607
        %v3678 = vunpack.c.h.b16 %v3607
        %v3679 = vunpack.c.l.b16 %v3608
        %v3680 = vunpack.c.h.b16 %v3608
        %v3681 = vunpack.c.l.b16 %v3609
        %v3682 = vunpack.c.h.b16 %v3609
        %v3683 = vunpack.c.l.b16 %v3610
        %v3684 = vunpack.c.h.b16 %v3610
        %v3685 = vunpack.c.l.b16 %v3611
        %v3686 = vunpack.c.h.b16 %v3611
        %v3687 = vunpack.c.l.b16 %v3612
        %v3688 = vunpack.c.h.b16 %v3612
        %v3689 = vunpack.c.l.b16 %v3613
        %v3690 = vunpack.c.h.b16 %v3613
        %v3691 = vunpack.c.l.b16 %v3614
        %v3692 = vunpack.c.h.b16 %v3614
        %v3693 = vunpack.c.l.b16 %v3615
        %v3694 = vunpack.c.h.b16 %v3615
        %v3695 = vunpack.c.l.b16 %v3616
        %v3696 = vunpack.c.h.b16 %v3616
        %v3697 = vunpack.c.l.b16 %v3617
        %v3698 = vunpack.c.h.b16 %v3617
        %v3699 = vunpack.c.l.b16 %v3618
        %v3700 = vunpack.c.h.b16 %v3618
        %v3701 = vunpack.c.l.b16 %v3619
        %v3702 = vunpack.c.h.b16 %v3619
        %v3703 = vunpack.c.l.b16 %v3620
        %v3704 = vunpack.c.h.b16 %v3620
        %v3705 = vunpack.c.l.b16 %v3621
        %v3706 = vunpack.c.h.b16 %v3621
        %v3707 = vunpack.c.l.b16 %v3622
        %v3708 = vunpack.c.h.b16 %v3622
        %v3709 = vunpack.c.l.b16 %v3623
        %v3710 = vunpack.c.h.b16 %v3623
        %v3711 = vunpack.c.l.b16 %v3624
        %v3712 = vunpack.c.h.b16 %v3624
        %v3713 = vunpack.c.l.b16 %v3625
        %v3714 = vunpack.c.h.b16 %v3625
        %v3715 = vunpack.c.l.b16 %v3626
        %v3716 = vunpack.c.h.b16 %v3626
        %v3717 = vunpack.c.l.b16 %v3627
        %v3718 = vunpack.c.h.b16 %v3627
        %v3719 = vunpack.c.l.b16 %v3628
        %v3720 = vunpack.c.h.b16 %v3628
        %v3721 = vunpack.c.l.b16 %v3629
        %v3722 = vunpack.c.h.b16 %v3629
        %v3723 = vunpack.c.l.b16 %v3630
        %v3724 = vunpack.c.h.b16 %v3630
        %v3725 = vunpack.c.l.b16 %v3631
        %v3726 = vunpack.c.h.b16 %v3631
        %v3727 = vunpack.c.l.b16 %v3632
        %v3728 = vunpack.c.h.b16 %v3632
        %v3729 = vunpack.c.l.b16 %v3633
        %v3730 = vunpack.c.h.b16 %v3633
        %v3731 = vunpack.c.l.b16 %v3634
        %v3732 = vunpack.c.h.b16 %v3634
        %v3733 = vunpack.c.l.b16 %v3635
        %v3734 = vunpack.c.h.b16 %v3635
        %v3735 = vunpack.c.l.b16 %v3636
        %v3736 = vunpack.c.h.b16 %v3636
        %v3737 = vunpack.c.l.b16 %v3637
        %v3738 = vunpack.c.h.b16 %v3637
        %v3739 = vunpack.c.l.b16 %v3638
        %v3740 = vunpack.c.h.b16 %v3638
        %v3741 = vpack.c.b16 %v3679, %v3677
        %v3742 = vpack.c.b16 %v3680, %v3678
        %v3743 = vpack.c.b16 %v3683, %v3681
        %v3744 = vpack.c.b16 %v3684, %v3682
        %v3745 = vpack.c.b16 %v3687, %v3685
        %v3746 = vpack.c.b16 %v3688, %v3686
        %v3747 = vpack.c.b16 %v3691, %v3689
        %v3748 = vpack.c.b16 %v3692, %v3690
        %v3749 = vpack.c.b16 %v3695, %v3693
        %v3750 = vpack.c.b16 %v3696, %v3694
        %v3751 = vpack.c.b16 %v3699, %v3697
        %v3752 = vpack.c.b16 %v3700, %v3698
        %v3753 = vpack.c.b16 %v3703, %v3701
        %v3754 = vpack.c.b16 %v3704, %v3702
        %v3755 = vpack.c.b16 %v3707, %v3705
        %v3756 = vpack.c.b16 %v3708, %v3706
        %v3757 = vpack.c.b16 %v3711, %v3709
        %v3758 = vpack.c.b16 %v3712, %v3710
        %v3759 = vpack.c.b16 %v3715, %v3713
        %v3760 = vpack.c.b16 %v3716, %v3714
        %v3761 = vpack.c.b16 %v3719, %v3717
        %v3762 = vpack.c.b16 %v3720, %v3718
        %v3763 = vpack.c.b16 %v3723, %v3721
        %v3764 = vpack.c.b16 %v3724, %v3722
        %v3765 = vpack.c.b16 %v3727, %v3725
        %v3766 = vpack.c.b16 %v3728, %v3726
        %v3767 = vpack.c.b16 %v3731, %v3729
        %v3768 = vpack.c.b16 %v3732, %v3730
        %v3769 = vpack.c.b16 %v3735, %v3733
        %v3770 = vpack.c.b16 %v3736, %v3734
        %v3771 = vpack.c.b16 %v3739, %v3737
        %v3772 = vpack.c.b16 %v3740, %v3738
        %3805 = vmatprep.subr.bf16.mxu0 %v3742
        %3806 = vmatpush1.bf16.msra.mxu0 %v3741
        %3807 = vmatprep.subr.bf16.mxu0 %v3744
        %3808 = vmatpush1.bf16.msra.mxu0 %v3743
        %3809 = vmatprep.subr.bf16.mxu0 %v3746
        %3810 = vmatpush1.bf16.msra.mxu0 %v3745
        %3811 = vmatprep.subr.bf16.mxu0 %v3748
        %3812 = vmatpush1.bf16.msra.mxu0 %v3747
        %3813 = vmatprep.subr.bf16.mxu0 %v3750
        %3814 = vmatpush1.bf16.msra.mxu0 %v3749
        %3815 = vmatprep.subr.bf16.mxu0 %v3752
        %3816 = vmatpush1.bf16.msra.mxu0 %v3751
        %3817 = vmatprep.subr.bf16.mxu0 %v3754
        %3818 = vmatpush1.bf16.msra.mxu0 %v3753
        %3819 = vmatprep.subr.bf16.mxu0 %v3756
        %3820 = vmatpush1.bf16.msra.mxu0 %v3755
        %3821 = vmatprep.subr.bf16.mxu0 %v3758
        %3822 = vmatpush1.bf16.msra.mxu0 %v3757
        %3823 = vmatprep.subr.bf16.mxu0 %v3760
        %3824 = vmatpush1.bf16.msra.mxu0 %v3759
        %3825 = vmatprep.subr.bf16.mxu0 %v3762
        %3826 = vmatpush1.bf16.msra.mxu0 %v3761
        %3827 = vmatprep.subr.bf16.mxu0 %v3764
        %3828 = vmatpush1.bf16.msra.mxu0 %v3763
        %3829 = vmatprep.subr.bf16.mxu0 %v3766
        %3830 = vmatpush1.bf16.msra.mxu0 %v3765
        %3831 = vmatprep.subr.bf16.mxu0 %v3768
        %3832 = vmatpush1.bf16.msra.mxu0 %v3767
        %3833 = vmatprep.subr.bf16.mxu0 %v3770
        %3834 = vmatpush1.bf16.msra.mxu0 %v3769
        %3835 = vmatprep.subr.bf16.mxu0 %v3772
        %3836 = vmatpush1.bf16.msra.mxu0 %v3771
        %3837 = vmatprep.mubr.bf16.mxu0 %v3642
        %3838 = vmatmul.mubr.bf16.gmra.mrb[0].mxu0 %v3641
        %v3839 = vpop.f32.mrb[0].mxu0
        %v3840 = vadd.f32 0.0, %v3839
        %v3841 = vpop.f32.mrb[0].mxu0
        %v3842 = vadd.f32 0.0, %v3841
        %v3843 = vpop.f32.mrb[0].mxu0
        %v3844 = vpop.f32.mrb[0].mxu0
        %3845 = vdwg.mxu0
        %v3846 = vadd.f32 %v3601, %v3840
        %v3847 = vadd.f32 %v3603, %v3842
        %v3848 = vrot.slane %v3127, 1
        %v3849 = vrot.slane %v3128, 1
        %vm3852 = vcmask 1042432
        %v3853 = vsel %vm3852, %v3848, 0.0
        %v3854 = vsel %vm3852, %v3849, 0.0
        %v3855 = vpack.c.bf16 %v3853, %v3853
        %v3856 = vpack.c.bf16 %v3854, %v3854
        %v3857 = vld [vmem:[%s4 + $0x300] sm:$0xff]
        %v3858 = vld [vmem:[%s4 + $0x308] sm:$0xff]
        %v3859 = vld [vmem:[%s4 + $0x310] sm:$0xff]
        %v3860 = vld [vmem:[%s4 + $0x318] sm:$0xff]
        %v3861 = vld [vmem:[%s4 + $0x320] sm:$0xff]
        %v3862 = vld [vmem:[%s4 + $0x328] sm:$0xff]
        %v3863 = vld [vmem:[%s4 + $0x330] sm:$0xff]
        %v3864 = vld [vmem:[%s4 + $0x338] sm:$0xff]
        %v3865 = vld [vmem:[%s4 + $0x340] sm:$0xff]
        %v3866 = vld [vmem:[%s4 + $0x348] sm:$0xff]
        %v3867 = vld [vmem:[%s4 + $0x350] sm:$0xff]
        %v3868 = vld [vmem:[%s4 + $0x358] sm:$0xff]
        %v3869 = vld [vmem:[%s4 + $0x360] sm:$0xff]
        %v3870 = vld [vmem:[%s4 + $0x368] sm:$0xff]
        %v3871 = vld [vmem:[%s4 + $0x370] sm:$0xff]
        %v3872 = vld [vmem:[%s4 + $0x378] sm:$0xff]
        %v3873 = vld [vmem:[%s4 + $0x380] sm:$0xff]
        %v3874 = vld [vmem:[%s4 + $0x388] sm:$0xff]
        %v3875 = vld [vmem:[%s4 + $0x390] sm:$0xff]
        %v3876 = vld [vmem:[%s4 + $0x398] sm:$0xff]
        %v3877 = vld [vmem:[%s4 + $0x3a0] sm:$0xff]
        %v3878 = vld [vmem:[%s4 + $0x3a8] sm:$0xff]
        %v3879 = vld [vmem:[%s4 + $0x3b0] sm:$0xff]
        %v3880 = vld [vmem:[%s4 + $0x3b8] sm:$0xff]
        %v3881 = vld [vmem:[%s4 + $0x3c0] sm:$0xff]
        %v3882 = vld [vmem:[%s4 + $0x3c8] sm:$0xff]
        %v3883 = vld [vmem:[%s4 + $0x3d0] sm:$0xff]
        %v3884 = vld [vmem:[%s4 + $0x3d8] sm:$0xff]
        %v3885 = vld [vmem:[%s4 + $0x3e0] sm:$0xff]
        %v3886 = vld [vmem:[%s4 + $0x3e8] sm:$0xff]
        %v3887 = vld [vmem:[%s4 + $0x3f0] sm:$0xff]
        %v3888 = vld [vmem:[%s4 + $0x3f8] sm:$0xff]
        %v3921 = vunpack.c.l.b16 %v3857
        %v3922 = vunpack.c.h.b16 %v3857
        %v3923 = vunpack.c.l.b16 %v3858
        %v3924 = vunpack.c.h.b16 %v3858
        %v3925 = vunpack.c.l.b16 %v3859
        %v3926 = vunpack.c.h.b16 %v3859
        %v3927 = vunpack.c.l.b16 %v3860
        %v3928 = vunpack.c.h.b16 %v3860
        %v3929 = vunpack.c.l.b16 %v3861
        %v3930 = vunpack.c.h.b16 %v3861
        %v3931 = vunpack.c.l.b16 %v3862
        %v3932 = vunpack.c.h.b16 %v3862
        %v3933 = vunpack.c.l.b16 %v3863
        %v3934 = vunpack.c.h.b16 %v3863
        %v3935 = vunpack.c.l.b16 %v3864
        %v3936 = vunpack.c.h.b16 %v3864
        %v3937 = vunpack.c.l.b16 %v3865
        %v3938 = vunpack.c.h.b16 %v3865
        %v3939 = vunpack.c.l.b16 %v3866
        %v3940 = vunpack.c.h.b16 %v3866
        %v3941 = vunpack.c.l.b16 %v3867
        %v3942 = vunpack.c.h.b16 %v3867
        %v3943 = vunpack.c.l.b16 %v3868
        %v3944 = vunpack.c.h.b16 %v3868
        %v3945 = vunpack.c.l.b16 %v3869
        %v3946 = vunpack.c.h.b16 %v3869
        %v3947 = vunpack.c.l.b16 %v3870
        %v3948 = vunpack.c.h.b16 %v3870
        %v3949 = vunpack.c.l.b16 %v3871
        %v3950 = vunpack.c.h.b16 %v3871
        %v3951 = vunpack.c.l.b16 %v3872
        %v3952 = vunpack.c.h.b16 %v3872
        %v3953 = vunpack.c.l.b16 %v3873
        %v3954 = vunpack.c.h.b16 %v3873
        %v3955 = vunpack.c.l.b16 %v3874
        %v3956 = vunpack.c.h.b16 %v3874
        %v3957 = vunpack.c.l.b16 %v3875
        %v3958 = vunpack.c.h.b16 %v3875
        %v3959 = vunpack.c.l.b16 %v3876
        %v3960 = vunpack.c.h.b16 %v3876
        %v3961 = vunpack.c.l.b16 %v3877
        %v3962 = vunpack.c.h.b16 %v3877
        %v3963 = vunpack.c.l.b16 %v3878
        %v3964 = vunpack.c.h.b16 %v3878
        %v3965 = vunpack.c.l.b16 %v3879
        %v3966 = vunpack.c.h.b16 %v3879
        %v3967 = vunpack.c.l.b16 %v3880
        %v3968 = vunpack.c.h.b16 %v3880
        %v3969 = vunpack.c.l.b16 %v3881
        %v3970 = vunpack.c.h.b16 %v3881
        %v3971 = vunpack.c.l.b16 %v3882
        %v3972 = vunpack.c.h.b16 %v3882
        %v3973 = vunpack.c.l.b16 %v3883
        %v3974 = vunpack.c.h.b16 %v3883
        %v3975 = vunpack.c.l.b16 %v3884
        %v3976 = vunpack.c.h.b16 %v3884
        %v3977 = vunpack.c.l.b16 %v3885
        %v3978 = vunpack.c.h.b16 %v3885
        %v3979 = vunpack.c.l.b16 %v3886
        %v3980 = vunpack.c.h.b16 %v3886
        %v3981 = vunpack.c.l.b16 %v3887
        %v3982 = vunpack.c.h.b16 %v3887
        %v3983 = vunpack.c.l.b16 %v3888
        %v3984 = vunpack.c.h.b16 %v3888
        %v3985 = vpack.c.b16 %v3923, %v3921
        %v3986 = vpack.c.b16 %v3924, %v3922
        %v3987 = vpack.c.b16 %v3927, %v3925
        %v3988 = vpack.c.b16 %v3928, %v3926
        %v3989 = vpack.c.b16 %v3931, %v3929
        %v3990 = vpack.c.b16 %v3932, %v3930
        %v3991 = vpack.c.b16 %v3935, %v3933
        %v3992 = vpack.c.b16 %v3936, %v3934
        %v3993 = vpack.c.b16 %v3939, %v3937
        %v3994 = vpack.c.b16 %v3940, %v3938
        %v3995 = vpack.c.b16 %v3943, %v3941
        %v3996 = vpack.c.b16 %v3944, %v3942
        %v3997 = vpack.c.b16 %v3947, %v3945
        %v3998 = vpack.c.b16 %v3948, %v3946
        %v3999 = vpack.c.b16 %v3951, %v3949
        %v4000 = vpack.c.b16 %v3952, %v3950
        %v4001 = vpack.c.b16 %v3955, %v3953
        %v4002 = vpack.c.b16 %v3956, %v3954
        %v4003 = vpack.c.b16 %v3959, %v3957
        %v4004 = vpack.c.b16 %v3960, %v3958
        %v4005 = vpack.c.b16 %v3963, %v3961
        %v4006 = vpack.c.b16 %v3964, %v3962
        %v4007 = vpack.c.b16 %v3967, %v3965
        %v4008 = vpack.c.b16 %v3968, %v3966
        %v4009 = vpack.c.b16 %v3971, %v3969
        %v4010 = vpack.c.b16 %v3972, %v3970
        %v4011 = vpack.c.b16 %v3975, %v3973
        %v4012 = vpack.c.b16 %v3976, %v3974
        %v4013 = vpack.c.b16 %v3979, %v3977
        %v4014 = vpack.c.b16 %v3980, %v3978
        %v4015 = vpack.c.b16 %v3983, %v3981
        %v4016 = vpack.c.b16 %v3984, %v3982
        %4049 = vmatprep.subr.bf16.mxu0 %v3986
        %4050 = vmatpush1.bf16.msra.mxu0 %v3985
        %4051 = vmatprep.subr.bf16.mxu0 %v3988
        %4052 = vmatpush1.bf16.msra.mxu0 %v3987
        %4053 = vmatprep.subr.bf16.mxu0 %v3990
        %4054 = vmatpush1.bf16.msra.mxu0 %v3989
        %4055 = vmatprep.subr.bf16.mxu0 %v3992
        %4056 = vmatpush1.bf16.msra.mxu0 %v3991
        %4057 = vmatprep.subr.bf16.mxu0 %v3994
        %4058 = vmatpush1.bf16.msra.mxu0 %v3993
        %4059 = vmatprep.subr.bf16.mxu0 %v3996
        %4060 = vmatpush1.bf16.msra.mxu0 %v3995
        %4061 = vmatprep.subr.bf16.mxu0 %v3998
        %4062 = vmatpush1.bf16.msra.mxu0 %v3997
        %4063 = vmatprep.subr.bf16.mxu0 %v4000
        %4064 = vmatpush1.bf16.msra.mxu0 %v3999
        %4065 = vmatprep.subr.bf16.mxu0 %v4002
        %4066 = vmatpush1.bf16.msra.mxu0 %v4001
        %4067 = vmatprep.subr.bf16.mxu0 %v4004
        %4068 = vmatpush1.bf16.msra.mxu0 %v4003
        %4069 = vmatprep.subr.bf16.mxu0 %v4006
        %4070 = vmatpush1.bf16.msra.mxu0 %v4005
        %4071 = vmatprep.subr.bf16.mxu0 %v4008
        %4072 = vmatpush1.bf16.msra.mxu0 %v4007
        %4073 = vmatprep.subr.bf16.mxu0 %v4010
        %4074 = vmatpush1.bf16.msra.mxu0 %v4009
        %4075 = vmatprep.subr.bf16.mxu0 %v4012
        %4076 = vmatpush1.bf16.msra.mxu0 %v4011
        %4077 = vmatprep.subr.bf16.mxu0 %v4014
        %4078 = vmatpush1.bf16.msra.mxu0 %v4013
        %4079 = vmatprep.subr.bf16.mxu0 %v4016
        %4080 = vmatpush1.bf16.msra.mxu0 %v4015
        %4081 = vmatprep.mubr.bf16.mxu0 %v3856
        %4082 = vmatmul.mubr.bf16.gmra.mrb[0].mxu0 %v3855
        %v4083 = vpop.f32.mrb[0].mxu0
        %v4084 = vadd.f32 0.0, %v4083
        %v4085 = vpop.f32.mrb[0].mxu0
        %v4086 = vadd.f32 0.0, %v4085
        %v4087 = vpop.f32.mrb[0].mxu0
        %v4088 = vpop.f32.mrb[0].mxu0
        %4089 = vdwg.mxu0
        %v4090 = vadd.f32 %v3846, %v4084
        %v4091 = vadd.f32 %v3847, %v4086
        %v4092 = vmax.f32 %v4090, 0.0
        %v4093 = vmax.f32 %v4091, 0.0
        %v4094 = vpack.c.bf16 %v4092, %v4092
        %v4095 = vpack.c.bf16 %v4093, %v4093
        %v4096 = vld [vmem:[%s5] sm:$0xf]
        %v4097 = vld [vmem:[%s5 + $0x4] sm:$0xf]
        %v4098 = vld [vmem:[%s5 + $0x8] sm:$0xf]
        %v4099 = vld [vmem:[%s5 + $0xc] sm:$0xf]
        %v4100 = vld [vmem:[%s5 + $0x10] sm:$0xf]
        %v4101 = vld [vmem:[%s5 + $0x14] sm:$0xf]
        %v4102 = vld [vmem:[%s5 + $0x18] sm:$0xf]
        %v4103 = vld [vmem:[%s5 + $0x1c] sm:$0xf]
        %v4104 = vld [vmem:[%s5 + $0x20] sm:$0xf]
        %v4105 = vld [vmem:[%s5 + $0x24] sm:$0xf]
        %v4106 = vld [vmem:[%s5 + $0x28] sm:$0xf]
        %v4107 = vld [vmem:[%s5 + $0x2c] sm:$0xf]
        %v4108 = vld [vmem:[%s5 + $0x30] sm:$0xf]
        %v4109 = vld [vmem:[%s5 + $0x34] sm:$0xf]
        %v4110 = vld [vmem:[%s5 + $0x38] sm:$0xf]
        %v4111 = vld [vmem:[%s5 + $0x3c] sm:$0xf]
        %v4112 = vld [vmem:[%s5 + $0x40] sm:$0xf]
        %v4113 = vld [vmem:[%s5 + $0x44] sm:$0xf]
        %v4114 = vld [vmem:[%s5 + $0x48] sm:$0xf]
        %v4115 = vld [vmem:[%s5 + $0x4c] sm:$0xf]
        %v4116 = vld [vmem:[%s5 + $0x50] sm:$0xf]
        %v4117 = vld [vmem:[%s5 + $0x54] sm:$0xf]
        %v4118 = vld [vmem:[%s5 + $0x58] sm:$0xf]
        %v4119 = vld [vmem:[%s5 + $0x5c] sm:$0xf]
        %v4120 = vld [vmem:[%s5 + $0x60] sm:$0xf]
        %v4121 = vld [vmem:[%s5 + $0x64] sm:$0xf]
        %v4122 = vld [vmem:[%s5 + $0x68] sm:$0xf]
        %v4123 = vld [vmem:[%s5 + $0x6c] sm:$0xf]
        %v4124 = vld [vmem:[%s5 + $0x70] sm:$0xf]
        %v4125 = vld [vmem:[%s5 + $0x74] sm:$0xf]
        %v4126 = vld [vmem:[%s5 + $0x78] sm:$0xf]
        %v4127 = vld [vmem:[%s5 + $0x7c] sm:$0xf]
        %v4128 = vld [vmem:[%s5 + $0x80] sm:$0xf]
        %v4129 = vld [vmem:[%s5 + $0x84] sm:$0xf]
        %v4130 = vld [vmem:[%s5 + $0x88] sm:$0xf]
        %v4131 = vld [vmem:[%s5 + $0x8c] sm:$0xf]
        %v4132 = vld [vmem:[%s5 + $0x90] sm:$0xf]
        %v4133 = vld [vmem:[%s5 + $0x94] sm:$0xf]
        %v4134 = vld [vmem:[%s5 + $0x98] sm:$0xf]
        %v4135 = vld [vmem:[%s5 + $0x9c] sm:$0xf]
        %v4136 = vld [vmem:[%s5 + $0xa0] sm:$0xf]
        %v4137 = vld [vmem:[%s5 + $0xa4] sm:$0xf]
        %v4138 = vld [vmem:[%s5 + $0xa8] sm:$0xf]
        %v4139 = vld [vmem:[%s5 + $0xac] sm:$0xf]
        %v4140 = vld [vmem:[%s5 + $0xb0] sm:$0xf]
        %v4141 = vld [vmem:[%s5 + $0xb4] sm:$0xf]
        %v4142 = vld [vmem:[%s5 + $0xb8] sm:$0xf]
        %v4143 = vld [vmem:[%s5 + $0xbc] sm:$0xf]
        %v4144 = vld [vmem:[%s5 + $0xc0] sm:$0xf]
        %v4145 = vld [vmem:[%s5 + $0xc4] sm:$0xf]
        %v4146 = vld [vmem:[%s5 + $0xc8] sm:$0xf]
        %v4147 = vld [vmem:[%s5 + $0xcc] sm:$0xf]
        %v4148 = vld [vmem:[%s5 + $0xd0] sm:$0xf]
        %v4149 = vld [vmem:[%s5 + $0xd4] sm:$0xf]
        %v4150 = vld [vmem:[%s5 + $0xd8] sm:$0xf]
        %v4151 = vld [vmem:[%s5 + $0xdc] sm:$0xf]
        %v4152 = vld [vmem:[%s5 + $0xe0] sm:$0xf]
        %v4153 = vld [vmem:[%s5 + $0xe4] sm:$0xf]
        %v4154 = vld [vmem:[%s5 + $0xe8] sm:$0xf]
        %v4155 = vld [vmem:[%s5 + $0xec] sm:$0xf]
        %v4156 = vld [vmem:[%s5 + $0xf0] sm:$0xf]
        %v4157 = vld [vmem:[%s5 + $0xf4] sm:$0xf]
        %v4158 = vld [vmem:[%s5 + $0xf8] sm:$0xf]
        %v4159 = vld [vmem:[%s5 + $0xfc] sm:$0xf]
        %v4161 = vshrl.u32 %v4094, 16
        %v4164 = vshrl.u32 %v4095, 16
        %v4200 = vunpack.c.l.b16 %v4128
        %v4201 = vunpack.c.l.b16 %v4129
        %v4202 = vunpack.c.l.b16 %v4130
        %v4203 = vunpack.c.l.b16 %v4131
        %v4204 = vunpack.c.l.b16 %v4132
        %v4205 = vunpack.c.l.b16 %v4133
        %v4206 = vunpack.c.l.b16 %v4134
        %v4207 = vunpack.c.l.b16 %v4135
        %v4208 = vunpack.c.l.b16 %v4136
        %v4209 = vunpack.c.l.b16 %v4137
        %v4210 = vunpack.c.l.b16 %v4138
        %v4211 = vunpack.c.l.b16 %v4139
        %v4212 = vunpack.c.l.b16 %v4140
        %v4213 = vunpack.c.l.b16 %v4141
        %v4214 = vunpack.c.l.b16 %v4142
        %v4215 = vunpack.c.l.b16 %v4143
        %v4216 = vunpack.c.l.b16 %v4144
        %v4217 = vunpack.c.l.b16 %v4145
        %v4218 = vunpack.c.l.b16 %v4146
        %v4219 = vunpack.c.l.b16 %v4147
        %v4220 = vunpack.c.l.b16 %v4148
        %v4221 = vunpack.c.l.b16 %v4149
        %v4222 = vunpack.c.l.b16 %v4150
        %v4223 = vunpack.c.l.b16 %v4151
        %v4224 = vunpack.c.l.b16 %v4152
        %v4225 = vunpack.c.l.b16 %v4153
        %v4226 = vunpack.c.l.b16 %v4154
        %v4227 = vunpack.c.l.b16 %v4155
        %v4228 = vunpack.c.l.b16 %v4156
        %v4229 = vunpack.c.l.b16 %v4157
        %v4230 = vunpack.c.l.b16 %v4158
        %v4231 = vunpack.c.l.b16 %v4159
        %v4232 = vpack.c.b16 %v4201, %v4200
        %v4233 = vpack.c.b16 %v4203, %v4202
        %v4234 = vpack.c.b16 %v4205, %v4204
        %v4235 = vpack.c.b16 %v4207, %v4206
        %v4236 = vpack.c.b16 %v4209, %v4208
        %v4237 = vpack.c.b16 %v4211, %v4210
        %v4238 = vpack.c.b16 %v4213, %v4212
        %v4239 = vpack.c.b16 %v4215, %v4214
        %v4240 = vpack.c.b16 %v4217, %v4216
        %v4241 = vpack.c.b16 %v4219, %v4218
        %v4242 = vpack.c.b16 %v4221, %v4220
        %v4243 = vpack.c.b16 %v4223, %v4222
        %v4244 = vpack.c.b16 %v4225, %v4224
        %v4245 = vpack.c.b16 %v4227, %v4226
        %v4246 = vpack.c.b16 %v4229, %v4228
        %v4247 = vpack.c.b16 %v4231, %v4230
        %4264 = vmatprep.subr.bf16.mxu0 0
        %4265 = vmatpush1.bf16.msra.mxu0 %v4232
        %4266 = vmatprep.subr.bf16.mxu0 0
        %4267 = vmatpush1.bf16.msra.mxu0 %v4233
        %4268 = vmatprep.subr.bf16.mxu0 0
        %4269 = vmatpush1.bf16.msra.mxu0 %v4234
        %4270 = vmatprep.subr.bf16.mxu0 0
        %4271 = vmatpush1.bf16.msra.mxu0 %v4235
        %4272 = vmatprep.subr.bf16.mxu0 0
        %4273 = vmatpush1.bf16.msra.mxu0 %v4236
        %4274 = vmatprep.subr.bf16.mxu0 0
        %4275 = vmatpush1.bf16.msra.mxu0 %v4237
        %4276 = vmatprep.subr.bf16.mxu0 0
        %4277 = vmatpush1.bf16.msra.mxu0 %v4238
        %4278 = vmatprep.subr.bf16.mxu0 0
        %4279 = vmatpush1.bf16.msra.mxu0 %v4239
        %4280 = vmatprep.subr.bf16.mxu0 0
        %4281 = vmatpush1.bf16.msra.mxu0 %v4240
        %4282 = vmatprep.subr.bf16.mxu0 0
        %4283 = vmatpush1.bf16.msra.mxu0 %v4241
        %4284 = vmatprep.subr.bf16.mxu0 0
        %4285 = vmatpush1.bf16.msra.mxu0 %v4242
        %4286 = vmatprep.subr.bf16.mxu0 0
        %4287 = vmatpush1.bf16.msra.mxu0 %v4243
        %4288 = vmatprep.subr.bf16.mxu0 0
        %4289 = vmatpush1.bf16.msra.mxu0 %v4244
        %4290 = vmatprep.subr.bf16.mxu0 0
        %4291 = vmatpush1.bf16.msra.mxu0 %v4245
        %4292 = vmatprep.subr.bf16.mxu0 0
        %4293 = vmatpush1.bf16.msra.mxu0 %v4246
        %4294 = vmatprep.subr.bf16.mxu0 0
        %4295 = vmatpush1.bf16.msra.mxu0 %v4247
        %4296 = vmatprep.mubr.bf16.mxu0 %v4164
        %4297 = vmatmul.mubr.bf16.gmra.mrb[0].mxu0 %v4161
        %v4298 = vpop.f32.mrb[0].mxu0
        %v4299 = vadd.f32 0.0, %v4298
        %v4300 = vpop.f32.mrb[0].mxu0
        %v4301 = vpop.f32.mrb[0].mxu0
        %v4302 = vpop.f32.mrb[0].mxu0
        %4303 = vdwg.mxu0
        %v4336 = vunpack.c.l.b16 %v4096
        %v4337 = vunpack.c.l.b16 %v4097
        %v4338 = vunpack.c.l.b16 %v4098
        %v4339 = vunpack.c.l.b16 %v4099
        %v4340 = vunpack.c.l.b16 %v4100
        %v4341 = vunpack.c.l.b16 %v4101
        %v4342 = vunpack.c.l.b16 %v4102
        %v4343 = vunpack.c.l.b16 %v4103
        %v4344 = vunpack.c.l.b16 %v4104
        %v4345 = vunpack.c.l.b16 %v4105
        %v4346 = vunpack.c.l.b16 %v4106
        %v4347 = vunpack.c.l.b16 %v4107
        %v4348 = vunpack.c.l.b16 %v4108
        %v4349 = vunpack.c.l.b16 %v4109
        %v4350 = vunpack.c.l.b16 %v4110
        %v4351 = vunpack.c.l.b16 %v4111
        %v4352 = vunpack.c.l.b16 %v4112
        %v4353 = vunpack.c.l.b16 %v4113
        %v4354 = vunpack.c.l.b16 %v4114
        %v4355 = vunpack.c.l.b16 %v4115
        %v4356 = vunpack.c.l.b16 %v4116
        %v4357 = vunpack.c.l.b16 %v4117
        %v4358 = vunpack.c.l.b16 %v4118
        %v4359 = vunpack.c.l.b16 %v4119
        %v4360 = vunpack.c.l.b16 %v4120
        %v4361 = vunpack.c.l.b16 %v4121
        %v4362 = vunpack.c.l.b16 %v4122
        %v4363 = vunpack.c.l.b16 %v4123
        %v4364 = vunpack.c.l.b16 %v4124
        %v4365 = vunpack.c.l.b16 %v4125
        %v4366 = vunpack.c.l.b16 %v4126
        %v4367 = vunpack.c.l.b16 %v4127
        %v4368 = vpack.c.b16 %v4337, %v4336
        %v4369 = vpack.c.b16 %v4339, %v4338
        %v4370 = vpack.c.b16 %v4341, %v4340
        %v4371 = vpack.c.b16 %v4343, %v4342
        %v4372 = vpack.c.b16 %v4345, %v4344
        %v4373 = vpack.c.b16 %v4347, %v4346
        %v4374 = vpack.c.b16 %v4349, %v4348
        %v4375 = vpack.c.b16 %v4351, %v4350
        %v4376 = vpack.c.b16 %v4353, %v4352
        %v4377 = vpack.c.b16 %v4355, %v4354
        %v4378 = vpack.c.b16 %v4357, %v4356
        %v4379 = vpack.c.b16 %v4359, %v4358
        %v4380 = vpack.c.b16 %v4361, %v4360
        %v4381 = vpack.c.b16 %v4363, %v4362
        %v4382 = vpack.c.b16 %v4365, %v4364
        %v4383 = vpack.c.b16 %v4367, %v4366
        %4400 = vmatprep.subr.bf16.mxu0 0
        %4401 = vmatpush1.bf16.msra.mxu0 %v4368
        %4402 = vmatprep.subr.bf16.mxu0 0
        %4403 = vmatpush1.bf16.msra.mxu0 %v4369
        %4404 = vmatprep.subr.bf16.mxu0 0
        %4405 = vmatpush1.bf16.msra.mxu0 %v4370
        %4406 = vmatprep.subr.bf16.mxu0 0
        %4407 = vmatpush1.bf16.msra.mxu0 %v4371
        %4408 = vmatprep.subr.bf16.mxu0 0
        %4409 = vmatpush1.bf16.msra.mxu0 %v4372
        %4410 = vmatprep.subr.bf16.mxu0 0
        %4411 = vmatpush1.bf16.msra.mxu0 %v4373
        %4412 = vmatprep.subr.bf16.mxu0 0
        %4413 = vmatpush1.bf16.msra.mxu0 %v4374
        %4414 = vmatprep.subr.bf16.mxu0 0
        %4415 = vmatpush1.bf16.msra.mxu0 %v4375
        %4416 = vmatprep.subr.bf16.mxu0 0
        %4417 = vmatpush1.bf16.msra.mxu0 %v4376
        %4418 = vmatprep.subr.bf16.mxu0 0
        %4419 = vmatpush1.bf16.msra.mxu0 %v4377
        %4420 = vmatprep.subr.bf16.mxu0 0
        %4421 = vmatpush1.bf16.msra.mxu0 %v4378
        %4422 = vmatprep.subr.bf16.mxu0 0
        %4423 = vmatpush1.bf16.msra.mxu0 %v4379
        %4424 = vmatprep.subr.bf16.mxu0 0
        %4425 = vmatpush1.bf16.msra.mxu0 %v4380
        %4426 = vmatprep.subr.bf16.mxu0 0
        %4427 = vmatpush1.bf16.msra.mxu0 %v4381
        %4428 = vmatprep.subr.bf16.mxu0 0
        %4429 = vmatpush1.bf16.msra.mxu0 %v4382
        %4430 = vmatprep.subr.bf16.mxu0 0
        %4431 = vmatpush1.bf16.msra.mxu0 %v4383
        %4432 = vmatprep.mubr.bf16.mxu0 %v4095
        %4433 = vmatmul.mubr.bf16.gmra.mrb[0].mxu0 %v4094
        %v4434 = vpop.f32.mrb[0].mxu0
        %v4435 = vadd.f32 %v4299, %v4434
        %v4436 = vpop.f32.mrb[0].mxu0
        %v4437 = vpop.f32.mrb[0].mxu0
        %v4438 = vpop.f32.mrb[0].mxu0
        %4439 = vdwg.mxu0
        %v4440 = vld [vmem:[%s5 + $0x100] sm:$0xf]
        %v4441 = vld [vmem:[%s5 + $0x104] sm:$0xf]
        %v4442 = vld [vmem:[%s5 + $0x108] sm:$0xf]
        %v4443 = vld [vmem:[%s5 + $0x10c] sm:$0xf]
        %v4444 = vld [vmem:[%s5 + $0x110] sm:$0xf]
        %v4445 = vld [vmem:[%s5 + $0x114] sm:$0xf]
        %v4446 = vld [vmem:[%s5 + $0x118] sm:$0xf]
        %v4447 = vld [vmem:[%s5 + $0x11c] sm:$0xf]
        %v4448 = vld [vmem:[%s5 + $0x120] sm:$0xf]
        %v4449 = vld [vmem:[%s5 + $0x124] sm:$0xf]
        %v4450 = vld [vmem:[%s5 + $0x128] sm:$0xf]
        %v4451 = vld [vmem:[%s5 + $0x12c] sm:$0xf]
        %v4452 = vld [vmem:[%s5 + $0x130] sm:$0xf]
        %v4453 = vld [vmem:[%s5 + $0x134] sm:$0xf]
        %v4454 = vld [vmem:[%s5 + $0x138] sm:$0xf]
        %v4455 = vld [vmem:[%s5 + $0x13c] sm:$0xf]
        %v4456 = vld [vmem:[%s5 + $0x140] sm:$0xf]
        %v4457 = vld [vmem:[%s5 + $0x144] sm:$0xf]
        %v4458 = vld [vmem:[%s5 + $0x148] sm:$0xf]
        %v4459 = vld [vmem:[%s5 + $0x14c] sm:$0xf]
        %v4460 = vld [vmem:[%s5 + $0x150] sm:$0xf]
        %v4461 = vld [vmem:[%s5 + $0x154] sm:$0xf]
        %v4462 = vld [vmem:[%s5 + $0x158] sm:$0xf]
        %v4463 = vld [vmem:[%s5 + $0x15c] sm:$0xf]
        %v4464 = vld [vmem:[%s5 + $0x160] sm:$0xf]
        %v4465 = vld [vmem:[%s5 + $0x164] sm:$0xf]
        %v4466 = vld [vmem:[%s5 + $0x168] sm:$0xf]
        %v4467 = vld [vmem:[%s5 + $0x16c] sm:$0xf]
        %v4468 = vld [vmem:[%s5 + $0x170] sm:$0xf]
        %v4469 = vld [vmem:[%s5 + $0x174] sm:$0xf]
        %v4470 = vld [vmem:[%s5 + $0x178] sm:$0xf]
        %v4471 = vld [vmem:[%s5 + $0x17c] sm:$0xf]
        %v4474 = vrot.slane %v4094, 1
        %v4475 = vrot.slane %v4095, 1
        %v4510 = vunpack.c.l.b16 %v4440
        %v4511 = vunpack.c.l.b16 %v4441
        %v4512 = vunpack.c.l.b16 %v4442
        %v4513 = vunpack.c.l.b16 %v4443
        %v4514 = vunpack.c.l.b16 %v4444
        %v4515 = vunpack.c.l.b16 %v4445
        %v4516 = vunpack.c.l.b16 %v4446
        %v4517 = vunpack.c.l.b16 %v4447
        %v4518 = vunpack.c.l.b16 %v4448
        %v4519 = vunpack.c.l.b16 %v4449
        %v4520 = vunpack.c.l.b16 %v4450
        %v4521 = vunpack.c.l.b16 %v4451
        %v4522 = vunpack.c.l.b16 %v4452
        %v4523 = vunpack.c.l.b16 %v4453
        %v4524 = vunpack.c.l.b16 %v4454
        %v4525 = vunpack.c.l.b16 %v4455
        %v4526 = vunpack.c.l.b16 %v4456
        %v4527 = vunpack.c.l.b16 %v4457
        %v4528 = vunpack.c.l.b16 %v4458
        %v4529 = vunpack.c.l.b16 %v4459
        %v4530 = vunpack.c.l.b16 %v4460
        %v4531 = vunpack.c.l.b16 %v4461
        %v4532 = vunpack.c.l.b16 %v4462
        %v4533 = vunpack.c.l.b16 %v4463
        %v4534 = vunpack.c.l.b16 %v4464
        %v4535 = vunpack.c.l.b16 %v4465
        %v4536 = vunpack.c.l.b16 %v4466
        %v4537 = vunpack.c.l.b16 %v4467
        %v4538 = vunpack.c.l.b16 %v4468
        %v4539 = vunpack.c.l.b16 %v4469
        %v4540 = vunpack.c.l.b16 %v4470
        %v4541 = vunpack.c.l.b16 %v4471
        %v4542 = vpack.c.b16 %v4511, %v4510
        %v4543 = vpack.c.b16 %v4513, %v4512
        %v4544 = vpack.c.b16 %v4515, %v4514
        %v4545 = vpack.c.b16 %v4517, %v4516
        %v4546 = vpack.c.b16 %v4519, %v4518
        %v4547 = vpack.c.b16 %v4521, %v4520
        %v4548 = vpack.c.b16 %v4523, %v4522
        %v4549 = vpack.c.b16 %v4525, %v4524
        %v4550 = vpack.c.b16 %v4527, %v4526
        %v4551 = vpack.c.b16 %v4529, %v4528
        %v4552 = vpack.c.b16 %v4531, %v4530
        %v4553 = vpack.c.b16 %v4533, %v4532
        %v4554 = vpack.c.b16 %v4535, %v4534
        %v4555 = vpack.c.b16 %v4537, %v4536
        %v4556 = vpack.c.b16 %v4539, %v4538
        %v4557 = vpack.c.b16 %v4541, %v4540
        %4574 = vmatprep.subr.bf16.mxu0 0
        %4575 = vmatpush1.bf16.msra.mxu0 %v4542
        %4576 = vmatprep.subr.bf16.mxu0 0
        %4577 = vmatpush1.bf16.msra.mxu0 %v4543
        %4578 = vmatprep.subr.bf16.mxu0 0
        %4579 = vmatpush1.bf16.msra.mxu0 %v4544
        %4580 = vmatprep.subr.bf16.mxu0 0
        %4581 = vmatpush1.bf16.msra.mxu0 %v4545
        %4582 = vmatprep.subr.bf16.mxu0 0
        %4583 = vmatpush1.bf16.msra.mxu0 %v4546
        %4584 = vmatprep.subr.bf16.mxu0 0
        %4585 = vmatpush1.bf16.msra.mxu0 %v4547
        %4586 = vmatprep.subr.bf16.mxu0 0
        %4587 = vmatpush1.bf16.msra.mxu0 %v4548
        %4588 = vmatprep.subr.bf16.mxu0 0
        %4589 = vmatpush1.bf16.msra.mxu0 %v4549
        %4590 = vmatprep.subr.bf16.mxu0 0
        %4591 = vmatpush1.bf16.msra.mxu0 %v4550
        %4592 = vmatprep.subr.bf16.mxu0 0
        %4593 = vmatpush1.bf16.msra.mxu0 %v4551
        %4594 = vmatprep.subr.bf16.mxu0 0
        %4595 = vmatpush1.bf16.msra.mxu0 %v4552
        %4596 = vmatprep.subr.bf16.mxu0 0
        %4597 = vmatpush1.bf16.msra.mxu0 %v4553
        %4598 = vmatprep.subr.bf16.mxu0 0
        %4599 = vmatpush1.bf16.msra.mxu0 %v4554
        %4600 = vmatprep.subr.bf16.mxu0 0
        %4601 = vmatpush1.bf16.msra.mxu0 %v4555
        %4602 = vmatprep.subr.bf16.mxu0 0
        %4603 = vmatpush1.bf16.msra.mxu0 %v4556
        %4604 = vmatprep.subr.bf16.mxu0 0
        %4605 = vmatpush1.bf16.msra.mxu0 %v4557
        %4606 = vmatprep.mubr.bf16.mxu0 %v4475
        %4607 = vmatmul.mubr.bf16.gmra.mrb[0].mxu0 %v4474
        %v4608 = vpop.f32.mrb[0].mxu0
        %v4609 = vadd.f32 0.0, %v4608
        %v4610 = vpop.f32.mrb[0].mxu0
        %v4611 = vpop.f32.mrb[0].mxu0
        %v4612 = vpop.f32.mrb[0].mxu0
        %4613 = vdwg.mxu0
        %v4614 = vadd.f32 %v4435, %v4609
        %v4615 = vld [vmem:[%s5 + $0x180] sm:$0xf]
        %v4616 = vld [vmem:[%s5 + $0x184] sm:$0xf]
        %v4617 = vld [vmem:[%s5 + $0x188] sm:$0xf]
        %v4618 = vld [vmem:[%s5 + $0x18c] sm:$0xf]
        %v4619 = vld [vmem:[%s5 + $0x190] sm:$0xf]
        %v4620 = vld [vmem:[%s5 + $0x194] sm:$0xf]
        %v4621 = vld [vmem:[%s5 + $0x198] sm:$0xf]
        %v4622 = vld [vmem:[%s5 + $0x19c] sm:$0xf]
        %v4623 = vld [vmem:[%s5 + $0x1a0] sm:$0xf]
        %v4624 = vld [vmem:[%s5 + $0x1a4] sm:$0xf]
        %v4625 = vld [vmem:[%s5 + $0x1a8] sm:$0xf]
        %v4626 = vld [vmem:[%s5 + $0x1ac] sm:$0xf]
        %v4627 = vld [vmem:[%s5 + $0x1b0] sm:$0xf]
        %v4628 = vld [vmem:[%s5 + $0x1b4] sm:$0xf]
        %v4629 = vld [vmem:[%s5 + $0x1b8] sm:$0xf]
        %v4630 = vld [vmem:[%s5 + $0x1bc] sm:$0xf]
        %v4631 = vld [vmem:[%s5 + $0x1c0] sm:$0xf]
        %v4632 = vld [vmem:[%s5 + $0x1c4] sm:$0xf]
        %v4633 = vld [vmem:[%s5 + $0x1c8] sm:$0xf]
        %v4634 = vld [vmem:[%s5 + $0x1cc] sm:$0xf]
        %v4635 = vld [vmem:[%s5 + $0x1d0] sm:$0xf]
        %v4636 = vld [vmem:[%s5 + $0x1d4] sm:$0xf]
        %v4637 = vld [vmem:[%s5 + $0x1d8] sm:$0xf]
        %v4638 = vld [vmem:[%s5 + $0x1dc] sm:$0xf]
        %v4639 = vld [vmem:[%s5 + $0x1e0] sm:$0xf]
        %v4640 = vld [vmem:[%s5 + $0x1e4] sm:$0xf]
        %v4641 = vld [vmem:[%s5 + $0x1e8] sm:$0xf]
        %v4642 = vld [vmem:[%s5 + $0x1ec] sm:$0xf]
        %v4643 = vld [vmem:[%s5 + $0x1f0] sm:$0xf]
        %v4644 = vld [vmem:[%s5 + $0x1f4] sm:$0xf]
        %v4645 = vld [vmem:[%s5 + $0x1f8] sm:$0xf]
        %v4646 = vld [vmem:[%s5 + $0x1fc] sm:$0xf]
        %v4647 = vrot.slane %v4161, 1
        %v4648 = vrot.slane %v4164, 1
        %v4683 = vunpack.c.l.b16 %v4615
        %v4684 = vunpack.c.l.b16 %v4616
        %v4685 = vunpack.c.l.b16 %v4617
        %v4686 = vunpack.c.l.b16 %v4618
        %v4687 = vunpack.c.l.b16 %v4619
        %v4688 = vunpack.c.l.b16 %v4620
        %v4689 = vunpack.c.l.b16 %v4621
        %v4690 = vunpack.c.l.b16 %v4622
        %v4691 = vunpack.c.l.b16 %v4623
        %v4692 = vunpack.c.l.b16 %v4624
        %v4693 = vunpack.c.l.b16 %v4625
        %v4694 = vunpack.c.l.b16 %v4626
        %v4695 = vunpack.c.l.b16 %v4627
        %v4696 = vunpack.c.l.b16 %v4628
        %v4697 = vunpack.c.l.b16 %v4629
        %v4698 = vunpack.c.l.b16 %v4630
        %v4699 = vunpack.c.l.b16 %v4631
        %v4700 = vunpack.c.l.b16 %v4632
        %v4701 = vunpack.c.l.b16 %v4633
        %v4702 = vunpack.c.l.b16 %v4634
        %v4703 = vunpack.c.l.b16 %v4635
        %v4704 = vunpack.c.l.b16 %v4636
        %v4705 = vunpack.c.l.b16 %v4637
        %v4706 = vunpack.c.l.b16 %v4638
        %v4707 = vunpack.c.l.b16 %v4639
        %v4708 = vunpack.c.l.b16 %v4640
        %v4709 = vunpack.c.l.b16 %v4641
        %v4710 = vunpack.c.l.b16 %v4642
        %v4711 = vunpack.c.l.b16 %v4643
        %v4712 = vunpack.c.l.b16 %v4644
        %v4713 = vunpack.c.l.b16 %v4645
        %v4714 = vunpack.c.l.b16 %v4646
        %v4715 = vpack.c.b16 %v4684, %v4683
        %v4716 = vpack.c.b16 %v4686, %v4685
        %v4717 = vpack.c.b16 %v4688, %v4687
        %v4718 = vpack.c.b16 %v4690, %v4689
        %v4719 = vpack.c.b16 %v4692, %v4691
        %v4720 = vpack.c.b16 %v4694, %v4693
        %v4721 = vpack.c.b16 %v4696, %v4695
        %v4722 = vpack.c.b16 %v4698, %v4697
        %v4723 = vpack.c.b16 %v4700, %v4699
        %v4724 = vpack.c.b16 %v4702, %v4701
        %v4725 = vpack.c.b16 %v4704, %v4703
        %v4726 = vpack.c.b16 %v4706, %v4705
        %v4727 = vpack.c.b16 %v4708, %v4707
        %v4728 = vpack.c.b16 %v4710, %v4709
        %v4729 = vpack.c.b16 %v4712, %v4711
        %v4730 = vpack.c.b16 %v4714, %v4713
        %4747 = vmatprep.subr.bf16.mxu0 0
        %4748 = vmatpush1.bf16.msra.mxu0 %v4715
        %4749 = vmatprep.subr.bf16.mxu0 0
        %4750 = vmatpush1.bf16.msra.mxu0 %v4716
        %4751 = vmatprep.subr.bf16.mxu0 0
        %4752 = vmatpush1.bf16.msra.mxu0 %v4717
        %4753 = vmatprep.subr.bf16.mxu0 0
        %4754 = vmatpush1.bf16.msra.mxu0 %v4718
        %4755 = vmatprep.subr.bf16.mxu0 0
        %4756 = vmatpush1.bf16.msra.mxu0 %v4719
        %4757 = vmatprep.subr.bf16.mxu0 0
        %4758 = vmatpush1.bf16.msra.mxu0 %v4720
        %4759 = vmatprep.subr.bf16.mxu0 0
        %4760 = vmatpush1.bf16.msra.mxu0 %v4721
        %4761 = vmatprep.subr.bf16.mxu0 0
        %4762 = vmatpush1.bf16.msra.mxu0 %v4722
        %4763 = vmatprep.subr.bf16.mxu0 0
        %4764 = vmatpush1.bf16.msra.mxu0 %v4723
        %4765 = vmatprep.subr.bf16.mxu0 0
        %4766 = vmatpush1.bf16.msra.mxu0 %v4724
        %4767 = vmatprep.subr.bf16.mxu0 0
        %4768 = vmatpush1.bf16.msra.mxu0 %v4725
        %4769 = vmatprep.subr.bf16.mxu0 0
        %4770 = vmatpush1.bf16.msra.mxu0 %v4726
        %4771 = vmatprep.subr.bf16.mxu0 0
        %4772 = vmatpush1.bf16.msra.mxu0 %v4727
        %4773 = vmatprep.subr.bf16.mxu0 0
        %4774 = vmatpush1.bf16.msra.mxu0 %v4728
        %4775 = vmatprep.subr.bf16.mxu0 0
        %4776 = vmatpush1.bf16.msra.mxu0 %v4729
        %4777 = vmatprep.subr.bf16.mxu0 0
        %4778 = vmatpush1.bf16.msra.mxu0 %v4730
        %4779 = vmatprep.mubr.bf16.mxu0 %v4648
        %4780 = vmatmul.mubr.bf16.gmra.mrb[0].mxu0 %v4647
        %v4781 = vpop.f32.mrb[0].mxu0
        %v4782 = vadd.f32 0.0, %v4781
        %v4783 = vpop.f32.mrb[0].mxu0
        %v4784 = vpop.f32.mrb[0].mxu0
        %v4785 = vpop.f32.mrb[0].mxu0
        %4786 = vdwg.mxu0
        %v4787 = vadd.f32 %v4614, %v4782
        %v4788 = vmax.f32 %v4787, 0.0
        %v4789 = vpack.c.bf16 %v4788, %v4788
        %v4790 = vld [vmem:[%s6] sm:$0xf]
        %v4791 = vld [vmem:[%s6 + $0x4] sm:$0xf]
        %v4792 = vld [vmem:[%s6 + $0x8] sm:$0xf]
        %v4793 = vld [vmem:[%s6 + $0xc] sm:$0xf]
        %v4794 = vld [vmem:[%s6 + $0x10] sm:$0xf]
        %v4795 = vld [vmem:[%s6 + $0x14] sm:$0xf]
        %v4796 = vld [vmem:[%s6 + $0x18] sm:$0xf]
        %v4797 = vld [vmem:[%s6 + $0x1c] sm:$0xf]
        %v4806 = vunpack.c.l.b16 %v4790
        %v4807 = vunpack.c.l.b16 %v4791
        %v4808 = vunpack.c.l.b16 %v4792
        %v4809 = vunpack.c.l.b16 %v4793
        %v4810 = vunpack.c.l.b16 %v4794
        %v4811 = vunpack.c.l.b16 %v4795
        %v4812 = vunpack.c.l.b16 %v4796
        %v4813 = vunpack.c.l.b16 %v4797
        %v4814 = vpack.c.b16 %v4807, %v4806
        %v4815 = vpack.c.b16 %v4809, %v4808
        %v4816 = vpack.c.b16 %v4811, %v4810
        %v4817 = vpack.c.b16 %v4813, %v4812
        %v4823 = vsel %vm485, %v4789, 0
        %4825 = vmatprep.subr.bf16.mxu0 0
        %4826 = vmatpush1.bf16.msra.mxu0 %v4814
        %4827 = vmatprep.subr.bf16.mxu0 0
        %4828 = vmatpush1.bf16.msra.mxu0 %v4815
        %4829 = vmatprep.subr.bf16.mxu0 0
        %4830 = vmatpush1.bf16.msra.mxu0 %v4816
        %4831 = vmatprep.subr.bf16.mxu0 0
        %4832 = vmatpush1.bf16.msra.mxu0 %v4817
        %4833 = vmatprep.subr.bf16.mxu0 0
        %4834 = vmatpush1.bf16.msra.mxu0 0
        %4835 = vmatprep.subr.bf16.mxu0 0
        %4836 = vmatpush1.bf16.msra.mxu0 0
        %4837 = vmatprep.subr.bf16.mxu0 0
        %4838 = vmatpush1.bf16.msra.mxu0 0
        %4839 = vmatprep.subr.bf16.mxu0 0
        %4840 = vmatpush1.bf16.msra.mxu0 0
        %4841 = vmatprep.subr.bf16.mxu0 0
        %4842 = vmatpush1.bf16.msra.mxu0 0
        %4843 = vmatprep.subr.bf16.mxu0 0
        %4844 = vmatpush1.bf16.msra.mxu0 0
        %4845 = vmatprep.subr.bf16.mxu0 0
        %4846 = vmatpush1.bf16.msra.mxu0 0
        %4847 = vmatprep.subr.bf16.mxu0 0
        %4848 = vmatpush1.bf16.msra.mxu0 0
        %4849 = vmatprep.subr.bf16.mxu0 0
        %4850 = vmatpush1.bf16.msra.mxu0 0
        %4851 = vmatprep.subr.bf16.mxu0 0
        %4852 = vmatpush1.bf16.msra.mxu0 0
        %4853 = vmatprep.subr.bf16.mxu0 0
        %4854 = vmatpush1.bf16.msra.mxu0 0
        %4855 = vmatprep.subr.bf16.mxu0 0
        %4856 = vmatpush1.bf16.msra.mxu0 0
        %4857 = vmatprep.mubr.bf16.mxu0 0
        %4858 = vmatmul.mubr.bf16.gmra.mrb[0].mxu0 %v4823
        %v4859 = vpop.f32.mrb[0].mxu0
        %v4860 = vadd.f32 0.0, %v4859
        %v4861 = vpop.f32.mrb[0].mxu0
        %v4862 = vpop.f32.mrb[0].mxu0
        %v4863 = vpop.f32.mrb[0].mxu0
        %4864 = vdwg.mxu0
        %v4865 = vtanh.pop %v4860
        %vm4866 = vcmask 122880
        %4867 = vst.msk [vmem:[%s270] sm:$0x1] %vm4866, %v4865
        %s4868 = sand.u32 %s181, 1
        %s4869 = scalar_lea.sflag [#allocation3], %s4868
        %s4870 = sand.u32 %s181, 1
        %s4871 = scalar_lea.vmem [#allocation2], %s4870
        // Predicated region
        $region49: #{encoder_forward.1} parent=47 // pred_check
          %p4872 = pneg %p191
        $region50: #{encoder_forward.1} parent=47 // pred_check_branch
          %4874 = sbr.rel (%p4872) target = $region52
        $region51: #{encoder_forward.1} parent=47 // pred_region
          %s4876 = ssub.s32 16, 16
          %4877 = vsyncadd %s4869, %s4876
          %s4878 = smul.addr %s21, 16
          %s4879 = scalar_lea.hbm %s7, %s4878
          %s4881 = sshll.u32 %s4871, 4
          %s4882 = int_to_ptr.vmem [resolvable:$true] %s4881
          %4884 = dma.vmem_to_hbm [thread:$0]  %s4882, 16, %s4879, %s4869
        $region52: #{encoder_forward.1} parent=47 // pred_fallthru
          _
      $region48: #{encoder_forward.1} parent=5 // pred_fallthru
        _
      %p4885 = scmp.le.s32.totalorder 2, %s16
      // Predicated region
      $region53: #{encoder_forward.1} parent=5 // pred_check
        %p4886 = pneg %p4885
      $region54: #{encoder_forward.1} parent=5 // pred_check_branch
        %4888 = sbr.rel (%p4886) target = $region56
      $region55: #{encoder_forward.1} parent=5 // pred_region
        %s4889 = ssub.s32 %s16, 2
        // Predicated region
        $region57: #{encoder_forward.1} parent=55 // pred_check
          %p4890 = pneg %p197
        $region58: #{encoder_forward.1} parent=55 // pred_check_branch
          %4892 = sbr.rel (%p4890) target = $region60
        $region59: #{encoder_forward.1} parent=55 // pred_region
          %s4893 = sand.u32 %s182, 1
          %s4894 = scalar_lea.sflag [#allocation3], %s4893
          %s4895 = sand.u32 %s182, 1
          %s4896 = scalar_lea.vmem [#allocation2], %s4895
          %4897 = dma.done %s4894, 16
        $region60: #{encoder_forward.1} parent=55 // pred_fallthru
          _
      $region56: #{encoder_forward.1} parent=5 // pred_fallthru
        _
    $region6: #{encoder_forward.1} parent=1 // loop_footer
      %s20 = sadd.s32 1, %s16
    $region7: #{encoder_forward.1} parent=1 // loop_footer_branch
      %15 = sbr.rel target = $region3
    $region8: #{encoder_forward.1} parent=1 // loop_exit
      _
    %4898 = vsyncpa [#allocation3], 1
    %s4899 = scalar_lea.sflag [#allocation3], 1
    %4900 = vsyncpa %s4899, 1

</llo_original>
